<compile_context>
chip_gen: v5e
topology: v5e:2x2
jax: 0.10.0
libtpu: 0.0.40
codegen_flags: <defaults>
</compile_context>

<pallas_src>
import functools
import math

import jax
import jax.numpy as jnp
from jax.experimental import pallas as pl
from jax.experimental.pallas import tpu as pltpu


_TM = 256                        # row tile for all matmul-style kernels
_VMEM_LIMIT = 32 * 1024 * 1024   # safe ceiling on v5e/v6e/v7x


def _round_up(x, m):
    return ((x + m - 1) // m) * m


def _compiler_params():
    # "parallel": row tiles are independent -> shards across the 2 TensorCores of a
    # v7x chip (no-op on single-TC v5e/v6e).
    return pltpu.CompilerParams(
        dimension_semantics=("parallel",),
        vmem_limit_bytes=_VMEM_LIMIT,
    )


# ---------------------------------------------------------------------------
# Kernel 1: row-tiled fused matmul + bias (+ ReLU):   y = act(x @ w + b)
# ---------------------------------------------------------------------------
def _matmul_bias_kernel(x_ref, w_ref, b_ref, o_ref, *, relu):
    acc = jnp.dot(x_ref[...], w_ref[...], preferred_element_type=jnp.float32)
    acc = acc + b_ref[...]
    if relu:
        acc = jnp.maximum(acc, 0.0)
    o_ref[...] = acc.astype(o_ref.dtype)


def matmul_bias(x, w, b, *, relu=False, out_dtype=jnp.float32, tm=_TM):
    """Tiled over M (grid); K and N stay whole (both are small in this model)."""
    m, k = x.shape
    k2, n = w.shape
    assert k == k2
    mp = _round_up(m, tm)
    if mp != m:
        x = jnp.pad(x, ((0, mp - m), (0, 0)))
    flops = 2 * mp * k * n
    bytes_accessed = (mp * k * x.dtype.itemsize + k * n * w.dtype.itemsize
                      + mp * n * jnp.dtype(out_dtype).itemsize)
    out = pl.pallas_call(
        functools.partial(_matmul_bias_kernel, relu=relu),
        out_shape=jax.ShapeDtypeStruct((mp, n), out_dtype),
        grid=(mp // tm,),
        in_specs=[
            pl.BlockSpec((tm, k), lambda i: (i, 0)),
            pl.BlockSpec((k, n), lambda i: (0, 0)),
            pl.BlockSpec((1, n), lambda i: (0, 0)),
        ],
        out_specs=pl.BlockSpec((tm, n), lambda i: (i, 0)),
        compiler_params=_compiler_params(),
        cost_estimate=pl.CostEstimate(flops=flops, transcendentals=0,
                                      bytes_accessed=bytes_accessed),
    )(x, w, b.reshape(1, n).astype(jnp.float32))
    return out[:m] if mp != m else out


# ---------------------------------------------------------------------------
# Kernel 2: fused RPN head over the flattened, zero-padded feature map.
#   rows = padded spatial positions (n, y, x) row-major, cols = channels.
#   t   = relu( sum over 9 taps of  x[rows + di*Wp + dj] @ W_rpn[di,dj]  + b_rpn )
#   out = t @ [W_obj | W_del] + [b_obj | b_del]
#   Halo rows past the tile come from the *next* row tile (second input), so the
#   9x im2col tensor and `t` never touch HBM.
# ---------------------------------------------------------------------------
def _rpn_fused_kernel(a_ref, b_ref, w1_ref, b1_ref, w2_ref, b2_ref, o_ref,
                      xbuf, *, wp):
    tm, c = a_ref.shape
    halo = 2 * wp + 2
    # Assemble rows [i*tm, i*tm + tm + halo) of the flattened feature map in VMEM.
    xbuf[0:tm, :] = a_ref[...].astype(jnp.float32)
    xbuf[tm:tm + halo, :] = b_ref[0:halo, :].astype(jnp.float32)
    acc = jnp.zeros((tm, c), jnp.float32)
    for t in range(9):
        di, dj = divmod(t, 3)
        off = di * wp + dj
        acc = acc + jnp.dot(xbuf[off:off + tm, :],
                            w1_ref[t * c:(t + 1) * c, :],
                            preferred_element_type=jnp.float32)
    t_act = jnp.maximum(acc + b1_ref[...], 0.0)            # 3x3 conv + bias + ReLU
    out = jnp.dot(t_act, w2_ref[...], preferred_element_type=jnp.float32)
    o_ref[...] = (out + b2_ref[...]).astype(o_ref.dtype)   # fused 1x1 heads


def rpn_fused(feat, w_rpn, b_rpn, w_head, b_head, *, tm=_TM):
    """feat: (N, Ho, Wo, C) bf16 feature map -> (N, Ho, Wo, n_head) f32 where the
    last dim is [objectness logits (A) | anchor deltas (4A) | pad]."""
    n, ho, wo, c = feat.shape
    hp, wp = ho + 2, wo + 2
    halo = 2 * wp + 2
    tm = max(tm, _round_up(halo, 8))            # the halo must fit in one next-tile
    n2 = w_head.shape[1]

    fpad = jnp.pad(feat, ((0, 0), (1, 1), (1, 1), (0, 0)))   # conv zero padding
    m = n * hp * wp
    mp = _round_up(m, tm)
    # Pad by one extra tile so the "next tile" (halo source) of the last grid
    # step is in bounds.  The conv is evaluated at every padded position; the
    # extra / wrapped rows produce garbage that is sliced away below.
    f2 = jnp.pad(fpad.reshape(m, c), ((0, mp + tm - m), (0, 0)))

    flops = mp * (2 * 9 * c * c + 2 * c * n2)
    bytes_accessed = 2 * mp * c * f2.dtype.itemsize + mp * n2 * 4
    out = pl.pallas_call(
        functools.partial(_rpn_fused_kernel, wp=wp),
        out_shape=jax.ShapeDtypeStruct((mp, n2), jnp.float32),
        grid=(mp // tm,),
        in_specs=[
            pl.BlockSpec((tm, c), lambda i: (i, 0)),       # current row tile
            pl.BlockSpec((tm, c), lambda i: (i + 1, 0)),   # next tile (halo rows)
            pl.BlockSpec((9 * c, c), lambda i: (0, 0)),    # W_rpn, tap-major rows
            pl.BlockSpec((1, c), lambda i: (0, 0)),        # b_rpn
            pl.BlockSpec((c, n2), lambda i: (0, 0)),       # [W_obj | W_del]
            pl.BlockSpec((1, n2), lambda i: (0, 0)),       # [b_obj | b_del]
        ],
        out_specs=pl.BlockSpec((tm, n2), lambda i: (i, 0)),
        scratch_shapes=[pltpu.VMEM((tm + _round_up(halo, 8), c), jnp.float32)],
        compiler_params=_compiler_params(),
        cost_estimate=pl.CostEstimate(flops=flops, transcendentals=0,
                                      bytes_accessed=bytes_accessed),
    )(f2, f2, w_rpn, b_rpn.reshape(1, c).astype(jnp.float32),
      w_head, b_head.reshape(1, n2).astype(jnp.float32))
    out = out[:m].reshape(n, hp, wp, n2)
    return out[:, :ho, :wo, :]


# ---------------------------------------------------------------------------
# im2col (glue) for the stride-2 backbone conv only (Cin=3 => small expansion).
# ---------------------------------------------------------------------------
def _im2col(x, ksize, stride):
    """x is already spatially padded; K axis ordered tap-major / channel-minor,
    matching w.reshape(kh*kw*cin, cout)."""
    n, h, w, c = x.shape
    ho = (h - ksize) // stride + 1
    wo = (w - ksize) // stride + 1
    cols = []
    for i in range(ksize):
        for j in range(ksize):
            cols.append(x[:, i:i + stride * ho:stride, j:j + stride * wo:stride, :])
    return jnp.concatenate(cols, axis=-1), ho, wo


# ---------------------------------------------------------------------------
# Model: backbone + RPN proposal path of GeneralizedRCNN.
# ---------------------------------------------------------------------------
class GeneralizedRCNNPallas:
    def __init__(self, key, in_channels=3, feat_channels=32, num_anchors=3,
                 anchor_sizes=(8.0, 16.0, 32.0), size_divisibility=32,
                 pre_nms_topk=50):
        self.size_divisibility = size_divisibility
        self.num_anchors = num_anchors
        self.anchor_sizes = anchor_sizes
        self.pre_nms_topk = pre_nms_topk
        self.feat_channels = feat_channels
        self.feat_stride = 2                         # backbone conv stride
        self.scale_clamp = math.log(1000.0 / 16.0)   # detectron2 delta clamp

        # cfg.MODEL.PIXEL_MEAN / PIXEL_STD (detectron2 BGR defaults)
        self.pixel_mean = jnp.array([103.53, 116.28, 123.675], jnp.float32)
        self.pixel_std = jnp.array([57.375, 57.12, 58.395], jnp.float32)

        k = jax.random.split(key, 8)
        s = 0.05
        w_bb = s * jax.random.normal(k[0], (3, 3, in_channels, feat_channels), jnp.float32)
        b_bb = s * jax.random.normal(k[1], (feat_channels,), jnp.float32)
        w_rpn = s * jax.random.normal(k[2], (3, 3, feat_channels, feat_channels), jnp.float32)
        b_rpn = s * jax.random.normal(k[3], (feat_channels,), jnp.float32)
        w_obj = s * jax.random.normal(k[4], (feat_channels, num_anchors), jnp.float32)
        b_obj = s * jax.random.normal(k[5], (num_anchors,), jnp.float32)
        w_del = s * jax.random.normal(k[6], (feat_channels, 4 * num_anchors), jnp.float32)
        b_del = s * jax.random.normal(k[7], (4 * num_anchors,), jnp.float32)

        # Backbone conv with the pixel normalizer folded in:
        #   conv((x-mean)/std, W) == conv(x, W/std) - sum_taps W*mean/std
        # exact everywhere because images are padded with pixel_mean below.
        inv_std = 1.0 / self.pixel_std
        w_fold = w_bb * inv_std[None, None, :, None]
        b_fold = b_bb - jnp.einsum("hwio,i->o", w_bb, self.pixel_mean * inv_std)
        k_bb = 3 * 3 * in_channels
        self.k_bb_pad = _round_up(k_bb, 32)          # aligned K (27 -> 32)
        w_flat = jnp.pad(w_fold.reshape(k_bb, feat_channels),
                         ((0, self.k_bb_pad - k_bb), (0, 0)))
        self.w_bb = w_flat.astype(jnp.bfloat16)
        self.b_bb = b_fold.astype(jnp.float32)

        # RPN 3x3 conv + fused 1x1 heads.  Weights stay f32 (tiny); the fused
        # kernel stages its shifted row windows in f32 VMEM while the feature
        # map itself travels through HBM as bf16.
        self.w_rpn = w_rpn.reshape(9 * feat_channels, feat_channels).astype(jnp.float32)
        self.b_rpn = b_rpn.astype(jnp.float32)
        n_head = num_anchors + 4 * num_anchors                     # 3 + 12 = 15
        n_head_pad = _round_up(n_head, 8)                          # 16
        w_head = jnp.concatenate([w_obj, w_del], axis=1)
        b_head = jnp.concatenate([b_obj, b_del], axis=0)
        self.w_head = jnp.pad(w_head, ((0, 0), (0, n_head_pad - n_head))).astype(jnp.float32)
        self.b_head = jnp.pad(b_head, (0, n_head_pad - n_head)).astype(jnp.float32)

        # jit the image-tensor -> (logits, deltas) core so XLA fuses the glue
        # (padding / im2col / reshapes) around the Pallas kernels.
        self._core = jax.jit(self._features_and_predictions)

    # ---- backbone + RPN (jitted) --------------------------------------------
    def _features_and_predictions(self, imgs):
        n, H, W, C = imgs.shape
        ph = (-H) % self.size_divisibility
        pw = (-W) % self.size_divisibility
        # ImageList.from_tensors padding + the conv halo of 1, filled with
        # pixel_mean so the folded normalization sees exactly 0 there.
        pads = ((0, 0), (1, 1 + ph), (1, 1 + pw), (0, 0))
        imgs_p = jnp.pad(imgs, pads)
        mask = jnp.pad(jnp.ones((n, H, W, 1), jnp.float32), pads)
        imgs_p = (imgs_p + (1.0 - mask) * self.pixel_mean).astype(jnp.bfloat16)

        # backbone: 3x3 stride-2 conv (+ folded normalization) + ReLU
        patches, ho, wo = _im2col(imgs_p, 3, self.feat_stride)
        flat = patches.reshape(n * ho * wo, 9 * C)
        flat = jnp.pad(flat, ((0, 0), (0, self.k_bb_pad - 9 * C)))
        feat = matmul_bias(flat, self.w_bb, self.b_bb, relu=True,
                           out_dtype=jnp.bfloat16)
        feat = feat.reshape(n, ho, wo, self.feat_channels)

        # RPN 3x3 conv + ReLU + objectness/delta heads, one fused kernel
        head = rpn_fused(feat, self.w_rpn, self.b_rpn, self.w_head, self.b_head)
        A = self.num_anchors
        logits = head[..., :A]                 # (N, Ho, Wo, A)
        deltas = head[..., A:A + 4 * A]        # (N, Ho, Wo, 4A)
        return logits, deltas

    # ---- anchors / decoding (plain JAX glue) --------------------------------
    def _anchors(self, ho, wo):
        ys = (jnp.arange(ho, dtype=jnp.float32) + 0.5) * self.feat_stride
        xs = (jnp.arange(wo, dtype=jnp.float32) + 0.5) * self.feat_stride
        cy, cx = jnp.meshgrid(ys, xs, indexing="ij")
        sizes = jnp.array(self.anchor_sizes, jnp.float32)
        half = sizes[None, None, :] * 0.5
        x1 = cx[..., None] - half
        y1 = cy[..., None] - half
        x2 = cx[..., None] + half
        y2 = cy[..., None] + half
        anchors = jnp.stack([x1, y1, x2, y2], axis=-1)
        return anchors.reshape(-1, 4)

    def _apply_deltas(self, anchors, deltas, img_h, img_w):
        wa = anchors[:, 2] - anchors[:, 0]
        ha = anchors[:, 3] - anchors[:, 1]
        cxa = anchors[:, 0] + 0.5 * wa
        cya = anchors[:, 1] + 0.5 * ha
        dx, dy, dw, dh = deltas[:, 0], deltas[:, 1], deltas[:, 2], deltas[:, 3]
        dw = jnp.minimum(dw, self.scale_clamp)
        dh = jnp.minimum(dh, self.scale_clamp)
        cx = dx * wa + cxa
        cy = dy * ha + cya
        pw = jnp.exp(dw) * wa
        ph = jnp.exp(dh) * ha
        boxes = jnp.stack([cx - 0.5 * pw, cy - 0.5 * ph,
                           cx + 0.5 * pw, cy + 0.5 * ph], axis=-1)
        # clip to the (unpadded) per-image size, as detectron2 does
        boxes = jnp.stack([jnp.clip(boxes[:, 0], 0.0, img_w),
                           jnp.clip(boxes[:, 1], 0.0, img_h),
                           jnp.clip(boxes[:, 2], 0.0, img_w),
                           jnp.clip(boxes[:, 3], 0.0, img_h)], axis=-1)
        return boxes

    # ---- forward -------------------------------------------------------------
    def __call__(self, batched_inputs):
        # torch-style CHW images -> HWC
        images = [jnp.transpose(d["image"].astype(jnp.float32), (1, 2, 0))
                  for d in batched_inputs]
        image_sizes = [(im.shape[0], im.shape[1]) for im in images]
        imgs = jnp.stack(images, axis=0)                        # (N, H, W, C)

        logits, deltas = self._core(imgs)
        n, ho, wo, A = logits.shape
        anchors = self._anchors(ho, wo)
        logits_flat = logits.reshape(n, ho * wo * A)
        deltas_flat = deltas.reshape(n, ho * wo * A, 4)

        k = min(self.pre_nms_topk, ho * wo * A)
        processed_results = []
        for i in range(n):
            img_h, img_w = image_sizes[i]
            boxes = self._apply_deltas(anchors, deltas_flat[i],
                                       float(img_h), float(img_w))
            scores, idx = jax.lax.top_k(logits_flat[i], k)
            boxes = boxes[idx]
            # detector_postprocess: rescale to requested output height/width
            out_h = batched_inputs[i].get("height", img_h)
            out_w = batched_inputs[i].get("width", img_w)
            sx = out_w / float(img_w)
            sy = out_h / float(img_h)
            boxes = boxes * jnp.array([sx, sy, sx, sy], jnp.float32)
            # TODO(synk): NMS / roi_heads / Instances: data-dependent variable-length
            # outputs with no clean Pallas equivalent; top-k pre-NMS proposals returned.
            processed_results.append({
                "proposals": {
                    "proposal_boxes": boxes,          # (k, 4) xyxy
                    "objectness_logits": scores,      # (k,)
                }
            })
        return processed_results


# ---------------------------------------------------------------------------
if __name__ == "__main__":
    key = jax.random.PRNGKey(0)
    k_model, k_img0, k_img1 = jax.random.split(key, 3)

    model = GeneralizedRCNNPallas(k_model, in_channels=3, feat_channels=32,
                                  num_anchors=3, size_divisibility=32,
                                  pre_nms_topk=50)

    # batch=2 images, CHW (3, 32, 32), like the "image" entries of batched_inputs.
    batched_inputs = [
        {"image": 255.0 * jax.random.uniform(k_img0, (3, 32, 32), jnp.float32),
         "height": 32, "width": 32},
        {"image": 255.0 * jax.random.uniform(k_img1, (3, 32, 32), jnp.float32),
         "height": 32, "width": 32},
    ]

    results = model(batched_inputs)
    for r in results:
        jax.block_until_ready(r["proposals"]["proposal_boxes"])
        jax.block_until_ready(r["proposals"]["objectness_logits"])

    assert results[0]["proposals"]["proposal_boxes"].shape == (50, 4)
    assert results[0]["proposals"]["objectness_logits"].shape == (50,)
    print("KERNEL_OK")
</pallas_src>

<mosaic_0001>
module attributes {stable_mosaic.version = 11 : i64} {
  func.func @_matmul_bias_kernel(%arg0: i32, %arg1: memref<256x32xbf16, #tpu.memory_space<vmem>>, %arg2: memref<32x32xbf16, #tpu.memory_space<vmem>>, %arg3: memref<1x32xf32, #tpu.memory_space<vmem>>, %arg4: memref<256x32xbf16, #tpu.memory_space<vmem>>) attributes {dimension_semantics = [#tpu.dimension_semantics<parallel>], iteration_bounds = array<i64: 2>, scalar_prefetch = 0 : i64, scratch_operands = 0 : i64, tpu.core_type = #tpu.core_type<tc>, window_params = [{transform_indices = @transform_0, window_bounds = array<i64: 256, 32>}, {pipeline_mode = #tpu.pipeline_mode<synchronous>, transform_indices = @transform_1, window_bounds = array<i64: 32, 32>}, {pipeline_mode = #tpu.pipeline_mode<synchronous>, transform_indices = @transform_2, window_bounds = array<i64: 1, 32>}, {transform_indices = @transform_3, window_bounds = array<i64: 256, 32>}]} {
    %c0 = arith.constant 0 : index
    %c0_0 = arith.constant 0 : index
    %0 = vector.load %arg1[%c0, %c0_0] : memref<256x32xbf16, #tpu.memory_space<vmem>>, vector<256x32xbf16>
    %c0_1 = arith.constant 0 : index
    %c0_2 = arith.constant 0 : index
    %1 = vector.load %arg2[%c0_1, %c0_2] : memref<32x32xbf16, #tpu.memory_space<vmem>>, vector<32x32xbf16>
    %cst = arith.constant dense<0.000000e+00> : vector<256x32xf32>
    %2 = tpu.matmul %0, %1, %cst {dimension_numbers = #tpu.dot_dimension_numbers<[1], [0], [0], [1], [0, 0, 1, 1], [], []>} : vector<256x32xbf16>, vector<32x32xbf16>, vector<256x32xf32> -> vector<256x32xf32>
    %c0_3 = arith.constant 0 : index
    %c0_4 = arith.constant 0 : index
    %3 = vector.load %arg3[%c0_3, %c0_4] : memref<1x32xf32, #tpu.memory_space<vmem>>, vector<1x32xf32>
    %4 = vector.broadcast %3 : vector<1x32xf32> to vector<256x32xf32>
    %5 = arith.addf %2, %4 : vector<256x32xf32>
    %cst_5 = arith.constant 0.000000e+00 : f32
    %6 = vector.broadcast %cst_5 : f32 to vector<256x32xf32>
    %7 = arith.maximumf %5, %6 : vector<256x32xf32>
    %8 = arith.truncf %7 : vector<256x32xf32> to vector<256x32xbf16>
    %c0_6 = arith.constant 0 : index
    %c0_7 = arith.constant 0 : index
    %9 = vector.load %arg4[%c0_6, %c0_7] : memref<256x32xbf16, #tpu.memory_space<vmem>>, vector<256x32xbf16>
    tpu.vector_store %arg4[%c0_6, %c0_7], %8 {strides = array<i32>} : memref<256x32xbf16, #tpu.memory_space<vmem>>, vector<256x32xbf16>,
    return
  }
  func.func @transform_0(%arg0: i32) -> (i32, i32) {
    %c0_i32 = arith.constant 0 : i32
    %c0_i32_0 = arith.constant 0 : i32
    return %arg0, %c0_i32 : i32, i32
  }
  func.func @transform_1(%arg0: i32) -> (i32, i32) {
    %c0_i32 = arith.constant 0 : i32
    %c0_i32_0 = arith.constant 0 : i32
    %c0_i32_1 = arith.constant 0 : i32
    return %c0_i32, %c0_i32_0 : i32, i32
  }
  func.func @transform_2(%arg0: i32) -> (i32, i32) {
    %c0_i32 = arith.constant 0 : i32
    %c0_i32_0 = arith.constant 0 : i32
    %c0_i32_1 = arith.constant 0 : i32
    return %c0_i32, %c0_i32_0 : i32, i32
  }
  func.func @transform_3(%arg0: i32) -> (i32, i32) {
    %c0_i32 = arith.constant 0 : i32
    %c0_i32_0 = arith.constant 0 : i32
    return %arg0, %c0_i32 : i32, i32
  }
}

module attributes {stable_mosaic.version = 11 : i64} {
  func.func @_rpn_fused_kernel(%arg0: i32, %arg1: memref<256x32xbf16, #tpu.memory_space<vmem>>, %arg2: memref<256x32xbf16, #tpu.memory_space<vmem>>, %arg3: memref<288x32xf32, #tpu.memory_space<vmem>>, %arg4: memref<1x32xf32, #tpu.memory_space<vmem>>, %arg5: memref<32x16xf32, #tpu.memory_space<vmem>>, %arg6: memref<1x16xf32, #tpu.memory_space<vmem>>, %arg7: memref<256x16xf32, #tpu.memory_space<vmem>>, %arg8: memref<296x32xf32, #tpu.memory_space<vmem>>) attributes {dimension_semantics = [#tpu.dimension_semantics<parallel>], iteration_bounds = array<i64: 3>, scalar_prefetch = 0 : i64, scratch_operands = 1 : i64, tpu.core_type = #tpu.core_type<tc>, window_params = [{transform_indices = @transform_0, window_bounds = array<i64: 256, 32>}, {transform_indices = @transform_1, window_bounds = array<i64: 256, 32>}, {pipeline_mode = #tpu.pipeline_mode<synchronous>, transform_indices = @transform_2, window_bounds = array<i64: 288, 32>}, {pipeline_mode = #tpu.pipeline_mode<synchronous>, transform_indices = @transform_3, window_bounds = array<i64: 1, 32>}, {pipeline_mode = #tpu.pipeline_mode<synchronous>, transform_indices = @transform_4, window_bounds = array<i64: 32, 16>}, {pipeline_mode = #tpu.pipeline_mode<synchronous>, transform_indices = @transform_5, window_bounds = array<i64: 1, 16>}, {transform_indices = @transform_6, window_bounds = array<i64: 256, 16>}]} {
    %c0 = arith.constant 0 : index
    %c0_0 = arith.constant 0 : index
    %0 = vector.load %arg1[%c0, %c0_0] : memref<256x32xbf16, #tpu.memory_space<vmem>>, vector<256x32xbf16>
    %1 = arith.extf %0 : vector<256x32xbf16> to vector<256x32xf32>
    %c0_1 = arith.constant 0 : index
    %c0_2 = arith.constant 0 : index
    %2 = vector.load %arg8[%c0_1, %c0_2] : memref<296x32xf32, #tpu.memory_space<vmem>>, vector<256x32xf32>
    tpu.vector_store %arg8[%c0_1, %c0_2], %1 {strides = array<i32>} : memref<296x32xf32, #tpu.memory_space<vmem>>, vector<256x32xf32>,
    %c0_3 = arith.constant 0 : index
    %c0_4 = arith.constant 0 : index
    %3 = vector.load %arg2[%c0_3, %c0_4] : memref<256x32xbf16, #tpu.memory_space<vmem>>, vector<38x32xbf16>
    %4 = arith.extf %3 : vector<38x32xbf16> to vector<38x32xf32>
    %c256 = arith.constant 256 : index
    %c0_5 = arith.constant 0 : index
    %5 = vector.load %arg8[%c256, %c0_5] : memref<296x32xf32, #tpu.memory_space<vmem>>, vector<38x32xf32>
    tpu.vector_store %arg8[%c256, %c0_5], %4 {strides = array<i32>} : memref<296x32xf32, #tpu.memory_space<vmem>>, vector<38x32xf32>,
    %cst = arith.constant 0.000000e+00 : f32
    %6 = vector.broadcast %cst : f32 to vector<256x32xf32>
    %c0_6 = arith.constant 0 : index
    %c0_7 = arith.constant 0 : index
    %7 = vector.load %arg8[%c0_6, %c0_7] : memref<296x32xf32, #tpu.memory_space<vmem>>, vector<256x32xf32>
    %c0_8 = arith.constant 0 : index
    %c0_9 = arith.constant 0 : index
    %8 = vector.load %arg3[%c0_8, %c0_9] : memref<288x32xf32, #tpu.memory_space<vmem>>, vector<32x32xf32>
    %cst_10 = arith.constant dense<0.000000e+00> : vector<256x32xf32>
    %9 = tpu.matmul %7, %8, %cst_10 {dimension_numbers = #tpu.dot_dimension_numbers<[1], [0], [0], [1], [0, 0, 1, 1], [], []>} : vector<256x32xf32>, vector<32x32xf32>, vector<256x32xf32> -> vector<256x32xf32>
    %10 = arith.addf %6, %9 : vector<256x32xf32>
    %c1 = arith.constant 1 : index
    %c0_11 = arith.constant 0 : index
    %11 = vector.load %arg8[%c1, %c0_11] : memref<296x32xf32, #tpu.memory_space<vmem>>, vector<256x32xf32>
    %c32 = arith.constant 32 : index
    %c0_12 = arith.constant 0 : index
    %12 = vector.load %arg3[%c32, %c0_12] : memref<288x32xf32, #tpu.memory_space<vmem>>, vector<32x32xf32>
    %cst_13 = arith.constant dense<0.000000e+00> : vector<256x32xf32>
    %13 = tpu.matmul %11, %12, %cst_13 {dimension_numbers = #tpu.dot_dimension_numbers<[1], [0], [0], [1], [0, 0, 1, 1], [], []>} : vector<256x32xf32>, vector<32x32xf32>, vector<256x32xf32> -> vector<256x32xf32>
    %14 = arith.addf %10, %13 : vector<256x32xf32>
    %c2 = arith.constant 2 : index
    %c0_14 = arith.constant 0 : index
    %15 = vector.load %arg8[%c2, %c0_14] : memref<296x32xf32, #tpu.memory_space<vmem>>, vector<256x32xf32>
    %c64 = arith.constant 64 : index
    %c0_15 = arith.constant 0 : index
    %16 = vector.load %arg3[%c64, %c0_15] : memref<288x32xf32, #tpu.memory_space<vmem>>, vector<32x32xf32>
    %cst_16 = arith.constant dense<0.000000e+00> : vector<256x32xf32>
    %17 = tpu.matmul %15, %16, %cst_16 {dimension_numbers = #tpu.dot_dimension_numbers<[1], [0], [0], [1], [0, 0, 1, 1], [], []>} : vector<256x32xf32>, vector<32x32xf32>, vector<256x32xf32> -> vector<256x32xf32>
    %18 = arith.addf %14, %17 : vector<256x32xf32>
    %c18 = arith.constant 18 : index
    %c0_17 = arith.constant 0 : index
    %19 = vector.load %arg8[%c18, %c0_17] : memref<296x32xf32, #tpu.memory_space<vmem>>, vector<256x32xf32>
    %c96 = arith.constant 96 : index
    %c0_18 = arith.constant 0 : index
    %20 = vector.load %arg3[%c96, %c0_18] : memref<288x32xf32, #tpu.memory_space<vmem>>, vector<32x32xf32>
    %cst_19 = arith.constant dense<0.000000e+00> : vector<256x32xf32>
    %21 = tpu.matmul %19, %20, %cst_19 {dimension_numbers = #tpu.dot_dimension_numbers<[1], [0], [0], [1], [0, 0, 1, 1], [], []>} : vector<256x32xf32>, vector<32x32xf32>, vector<256x32xf32> -> vector<256x32xf32>
    %22 = arith.addf %18, %21 : vector<256x32xf32>
    %c19 = arith.constant 19 : index
    %c0_20 = arith.constant 0 : index
    %23 = vector.load %arg8[%c19, %c0_20] : memref<296x32xf32, #tpu.memory_space<vmem>>, vector<256x32xf32>
    %c128 = arith.constant 128 : index
    %c0_21 = arith.constant 0 : index
    %24 = vector.load %arg3[%c128, %c0_21] : memref<288x32xf32, #tpu.memory_space<vmem>>, vector<32x32xf32>
    %cst_22 = arith.constant dense<0.000000e+00> : vector<256x32xf32>
    %25 = tpu.matmul %23, %24, %cst_22 {dimension_numbers = #tpu.dot_dimension_numbers<[1], [0], [0], [1], [0, 0, 1, 1], [], []>} : vector<256x32xf32>, vector<32x32xf32>, vector<256x32xf32> -> vector<256x32xf32>
    %26 = arith.addf %22, %25 : vector<256x32xf32>
    %c20 = arith.constant 20 : index
    %c0_23 = arith.constant 0 : index
    %27 = vector.load %arg8[%c20, %c0_23] : memref<296x32xf32, #tpu.memory_space<vmem>>, vector<256x32xf32>
    %c160 = arith.constant 160 : index
    %c0_24 = arith.constant 0 : index
    %28 = vector.load %arg3[%c160, %c0_24] : memref<288x32xf32, #tpu.memory_space<vmem>>, vector<32x32xf32>
    %cst_25 = arith.constant dense<0.000000e+00> : vector<256x32xf32>
    %29 = tpu.matmul %27, %28, %cst_25 {dimension_numbers = #tpu.dot_dimension_numbers<[1], [0], [0], [1], [0, 0, 1, 1], [], []>} : vector<256x32xf32>, vector<32x32xf32>, vector<256x32xf32> -> vector<256x32xf32>
    %30 = arith.addf %26, %29 : vector<256x32xf32>
    %c36 = arith.constant 36 : index
    %c0_26 = arith.constant 0 : index
    %31 = vector.load %arg8[%c36, %c0_26] : memref<296x32xf32, #tpu.memory_space<vmem>>, vector<256x32xf32>
    %c192 = arith.constant 192 : index
    %c0_27 = arith.constant 0 : index
    %32 = vector.load %arg3[%c192, %c0_27] : memref<288x32xf32, #tpu.memory_space<vmem>>, vector<32x32xf32>
    %cst_28 = arith.constant dense<0.000000e+00> : vector<256x32xf32>
    %33 = tpu.matmul %31, %32, %cst_28 {dimension_numbers = #tpu.dot_dimension_numbers<[1], [0], [0], [1], [0, 0, 1, 1], [], []>} : vector<256x32xf32>, vector<32x32xf32>, vector<256x32xf32> -> vector<256x32xf32>
    %34 = arith.addf %30, %33 : vector<256x32xf32>
    %c37 = arith.constant 37 : index
    %c0_29 = arith.constant 0 : index
    %35 = vector.load %arg8[%c37, %c0_29] : memref<296x32xf32, #tpu.memory_space<vmem>>, vector<256x32xf32>
    %c224 = arith.constant 224 : index
    %c0_30 = arith.constant 0 : index
    %36 = vector.load %arg3[%c224, %c0_30] : memref<288x32xf32, #tpu.memory_space<vmem>>, vector<32x32xf32>
    %cst_31 = arith.constant dense<0.000000e+00> : vector<256x32xf32>
    %37 = tpu.matmul %35, %36, %cst_31 {dimension_numbers = #tpu.dot_dimension_numbers<[1], [0], [0], [1], [0, 0, 1, 1], [], []>} : vector<256x32xf32>, vector<32x32xf32>, vector<256x32xf32> -> vector<256x32xf32>
    %38 = arith.addf %34, %37 : vector<256x32xf32>
    %c38 = arith.constant 38 : index
    %c0_32 = arith.constant 0 : index
    %39 = vector.load %arg8[%c38, %c0_32] : memref<296x32xf32, #tpu.memory_space<vmem>>, vector<256x32xf32>
    %c256_33 = arith.constant 256 : index
    %c0_34 = arith.constant 0 : index
    %40 = vector.load %arg3[%c256_33, %c0_34] : memref<288x32xf32, #tpu.memory_space<vmem>>, vector<32x32xf32>
    %cst_35 = arith.constant dense<0.000000e+00> : vector<256x32xf32>
    %41 = tpu.matmul %39, %40, %cst_35 {dimension_numbers = #tpu.dot_dimension_numbers<[1], [0], [0], [1], [0, 0, 1, 1], [], []>} : vector<256x32xf32>, vector<32x32xf32>, vector<256x32xf32> -> vector<256x32xf32>
    %42 = arith.addf %38, %41 : vector<256x32xf32>
    %c0_36 = arith.constant 0 : index
    %c0_37 = arith.constant 0 : index
    %43 = vector.load %arg4[%c0_36, %c0_37] : memref<1x32xf32, #tpu.memory_space<vmem>>, vector<1x32xf32>
    %44 = vector.broadcast %43 : vector<1x32xf32> to vector<256x32xf32>
    %45 = arith.addf %42, %44 : vector<256x32xf32>
    %cst_38 = arith.constant 0.000000e+00 : f32
    %46 = vector.broadcast %cst_38 : f32 to vector<256x32xf32>
    %47 = arith.maximumf %45, %46 : vector<256x32xf32>
    %c0_39 = arith.constant 0 : index
    %c0_40 = arith.constant 0 : index
    %48 = vector.load %arg5[%c0_39, %c0_40] : memref<32x16xf32, #tpu.memory_space<vmem>>, vector<32x16xf32>
    %cst_41 = arith.constant dense<0.000000e+00> : vector<256x16xf32>
    %49 = tpu.matmul %47, %48, %cst_41 {dimension_numbers = #tpu.dot_dimension_numbers<[1], [0], [0], [1], [0, 0, 1, 1], [], []>} : vector<256x32xf32>, vector<32x16xf32>, vector<256x16xf32> -> vector<256x16xf32>
    %c0_42 = arith.constant 0 : index
    %c0_43 = arith.constant 0 : index
    %50 = vector.load %arg6[%c0_42, %c0_43] : memref<1x16xf32, #tpu.memory_space<vmem>>, vector<1x16xf32>
    %51 = vector.broadcast %50 : vector<1x16xf32> to vector<256x16xf32>
    %52 = arith.addf %49, %51 : vector<256x16xf32>
    %c0_44 = arith.constant 0 : index
    %c0_45 = arith.constant 0 : index
    %53 = vector.load %arg7[%c0_44, %c0_45] : memref<256x16xf32, #tpu.memory_space<vmem>>, vector<256x16xf32>
    tpu.vector_store %arg7[%c0_44, %c0_45], %52 {strides = array<i32>} : memref<256x16xf32, #tpu.memory_space<vmem>>, vector<256x16xf32>,
    return
  }
  func.func @transform_0(%arg0: i32) -> (i32, i32) {
    %c0_i32 = arith.constant 0 : i32
    %c0_i32_0 = arith.constant 0 : i32
    return %arg0, %c0_i32 : i32, i32
  }
  func.func @transform_1(%arg0: i32) -> (i32, i32) {
    %c1_i32 = arith.constant 1 : i32
    %0 = arith.addi %arg0, %c1_i32 : i32
    %c0_i32 = arith.constant 0 : i32
    %c0_i32_0 = arith.constant 0 : i32
    return %0, %c0_i32 : i32, i32
  }
  func.func @transform_2(%arg0: i32) -> (i32, i32) {
    %c0_i32 = arith.constant 0 : i32
    %c0_i32_0 = arith.constant 0 : i32
    %c0_i32_1 = arith.constant 0 : i32
    return %c0_i32, %c0_i32_0 : i32, i32
  }
  func.func @transform_3(%arg0: i32) -> (i32, i32) {
    %c0_i32 = arith.constant 0 : i32
    %c0_i32_0 = arith.constant 0 : i32
    %c0_i32_1 = arith.constant 0 : i32
    return %c0_i32, %c0_i32_0 : i32, i32
  }
  func.func @transform_4(%arg0: i32) -> (i32, i32) {
    %c0_i32 = arith.constant 0 : i32
    %c0_i32_0 = arith.constant 0 : i32
    %c0_i32_1 = arith.constant 0 : i32
    return %c0_i32, %c0_i32_0 : i32, i32
  }
  func.func @transform_5(%arg0: i32) -> (i32, i32) {
    %c0_i32 = arith.constant 0 : i32
    %c0_i32_0 = arith.constant 0 : i32
    %c0_i32_1 = arith.constant 0 : i32
    return %c0_i32, %c0_i32_0 : i32, i32
  }
  func.func @transform_6(%arg0: i32) -> (i32, i32) {
    %c0_i32 = arith.constant 0 : i32
    %c0_i32_0 = arith.constant 0 : i32
    return %arg0, %c0_i32 : i32, i32
  }
}

</mosaic_0001>

<llo_original>
// kernel: _features_and_predictions.2
$region0: #{_features_and_predictions.2}
  #allocation0 [shape = 'u32[]', space=smem, size = 0x4, offset = 0x4, fixed_abs, tag = 'smem constant byte address 0x4 - core index']
  #allocation1 [shape = 'u32[72,128]{1,0:T(1,128)}', space=vmem, size = 0x9000, scoped, tag = 'internal scratch']
  %s0 = inlined_call_operand.vmem [shape: bf16[512,32], index: 0, kind: input, shape index: {}]
  %s1 = inlined_call_operand.vmem [shape: bf16[32,32], index: 1, kind: input, shape index: {}]
  %s2 = inlined_call_operand.vmem [shape: f32[1,32], index: 2, kind: input, shape index: {}]
  %s3 = inlined_call_operand.vmem [shape: bf16[512,32], index: 3, kind: output, shape index: {}]
  %s4 = sld [smem:[#allocation0]]
  $region45: #{_features_and_predictions.2} parent=0
    _
  %s6 = ssub.s32 1, %s4
  %s7 = scalar_select 0, %s6, %s4
  loop: start=0, step=1, limit=4
  $region2: #{_features_and_predictions.2} parent=0 // loop_pre_header
    _
  $region3: #{_features_and_predictions.2} parent=0 // loop_header
    %s9 = sphi 0, %s13
    %p10 = scmp.ge.s32.totalorder %s9, 4
    %s19 = sphi 0, %s21
    %s22 = sphi 0, %s19
    %s23 = sphi 0, %s22
    %s39 = sphi 0, %s23
    %s43 = sphi 0, %s43
    %s45 = sphi 0, %s43
    %s46 = sphi 0, %s45
    %s60 = sphi 0, %s46
    %s64 = sphi 0, %s64
    %s66 = sphi 0, %s64
    %s67 = sphi 0, %s66
    %s81 = sphi 0, %s67
    %s87 = sphi 0, %s89
    %s90 = sphi 0, %s87
    %s91 = sphi 0, %s90
    %s107 = sphi 0, %s91
  $region4: #{_features_and_predictions.2} parent=0 // loop_header_branch
    %12 = sbr.rel (%p10) target = $region8
  $region5: #{_features_and_predictions.2} parent=0 // loop_body
    %s14 = ssub.s32 %s9, 1
    %s15 = ssub.s32 %s9, 2
    %s16 = sadd.s32 %s9, 1
    %s17 = ssub.s32 %s9, %s16
    %p18 = scmp.eq.s32.totalorder %s17, 0
    %s20 = sadd.s32 %s19, 1
    %s21 = scalar_select %p18, %s19, %s20
    %p24 = pneg %p18
    %p25 = scmp.eq.s32.totalorder %s9, 1
    %p26 = por %p24, %p25
    %p27 = scmp.ne.s32.totalorder %s19, %s22
    %p28 = scmp.eq.s32.totalorder %s9, 0
    %p29 = por %p27, %p28
    %p30 = scmp.ne.s32.totalorder %s19, %s22
    %p31 = scmp.eq.s32.totalorder %s14, 1
    %p32 = por %p30, %p31
    %p33 = scmp.ne.s32.totalorder %s22, %s23
    %p34 = scmp.eq.s32.totalorder %s14, 0
    %p35 = por %p33, %p34
    %p36 = scmp.ne.s32.totalorder %s22, %s23
    %p37 = scmp.eq.s32.totalorder %s15, 1
    %p38 = por %p36, %p37
    %p40 = scmp.ne.s32.totalorder %s23, %s39
    %p41 = scmp.eq.s32.totalorder %s15, 0
    %p42 = por %p40, %p41
    %s44 = sadd.s32 %s43, 1
    %p47 = scmp.eq.s32.totalorder %s9, 1
    %p48 = scmp.ne.s32.totalorder %s43, %s45
    %p49 = scmp.eq.s32.totalorder %s9, 0
    %p50 = por %p48, %p49
    %p51 = scmp.ne.s32.totalorder %s43, %s45
    %p52 = scmp.eq.s32.totalorder %s14, 1
    %p53 = por %p51, %p52
    %p54 = scmp.ne.s32.totalorder %s45, %s46
    %p55 = scmp.eq.s32.totalorder %s14, 0
    %p56 = por %p54, %p55
    %p57 = scmp.ne.s32.totalorder %s45, %s46
    %p58 = scmp.eq.s32.totalorder %s15, 1
    %p59 = por %p57, %p58
    %p61 = scmp.ne.s32.totalorder %s46, %s60
    %p62 = scmp.eq.s32.totalorder %s15, 0
    %p63 = por %p61, %p62
    %s65 = sadd.s32 %s64, 1
    %p68 = scmp.eq.s32.totalorder %s9, 1
    %p69 = scmp.ne.s32.totalorder %s64, %s66
    %p70 = scmp.eq.s32.totalorder %s9, 0
    %p71 = por %p69, %p70
    %p72 = scmp.ne.s32.totalorder %s64, %s66
    %p73 = scmp.eq.s32.totalorder %s14, 1
    %p74 = por %p72, %p73
    %p75 = scmp.ne.s32.totalorder %s66, %s67
    %p76 = scmp.eq.s32.totalorder %s14, 0
    %p77 = por %p75, %p76
    %p78 = scmp.ne.s32.totalorder %s66, %s67
    %p79 = scmp.eq.s32.totalorder %s15, 1
    %p80 = por %p78, %p79
    %p82 = scmp.ne.s32.totalorder %s67, %s81
    %p83 = scmp.eq.s32.totalorder %s15, 0
    %p84 = por %p82, %p83
    %s85 = ssub.s32 %s9, %s16
    %p86 = scmp.eq.s32.totalorder %s85, 0
    %s88 = sadd.s32 %s87, 1
    %s89 = scalar_select %p86, %s87, %s88
    %p92 = pneg %p86
    %p93 = scmp.eq.s32.totalorder %s9, 1
    %p94 = por %p92, %p93
    %p95 = scmp.ne.s32.totalorder %s87, %s90
    %p96 = scmp.eq.s32.totalorder %s9, 0
    %p97 = por %p95, %p96
    %p98 = scmp.ne.s32.totalorder %s87, %s90
    %p99 = scmp.eq.s32.totalorder %s14, 1
    %p100 = por %p98, %p99
    %p101 = scmp.ne.s32.totalorder %s90, %s91
    %p102 = scmp.eq.s32.totalorder %s14, 0
    %p103 = por %p101, %p102
    %p104 = scmp.ne.s32.totalorder %s90, %s91
    %p105 = scmp.eq.s32.totalorder %s15, 1
    %p106 = por %p104, %p105
    %p108 = scmp.ne.s32.totalorder %s91, %s107
    %p109 = scmp.eq.s32.totalorder %s15, 0
    %p110 = por %p108, %p109
    %p111 = scmp.le.s32.totalorder 1, %s9
    %p112 = scmp.lt.s32.totalorder %s9, 3
    %p113 = pnand %p111, %p112
    %p114 = pneg %p113
    // Predicated region
    $region9: #{_features_and_predictions.2} parent=5 // pred_check
      _
    $region10: #{_features_and_predictions.2} parent=5 // pred_check_branch
      %116 = sbr.rel (%p113) target = $region12
    $region11: #{_features_and_predictions.2} parent=5 // pred_region
      %s117 = ssub.s32 %s9, 1
      // Predicated region
      $region13: #{_features_and_predictions.2} parent=11 // pred_check
        %p118 = pneg %p56
      $region14: #{_features_and_predictions.2} parent=11 // pred_check_branch
        %120 = sbr.rel (%p118) target = $region16
      $region15: #{_features_and_predictions.2} parent=11 // pred_region
        _
      $region16: #{_features_and_predictions.2} parent=11 // pred_fallthru
        _
      // Predicated region
      $region17: #{_features_and_predictions.2} parent=11 // pred_check
        %p121 = pneg %p77
      $region18: #{_features_and_predictions.2} parent=11 // pred_check_branch
        %123 = sbr.rel (%p121) target = $region20
      $region19: #{_features_and_predictions.2} parent=11 // pred_region
        _
      $region20: #{_features_and_predictions.2} parent=11 // pred_fallthru
        _
    $region12: #{_features_and_predictions.2} parent=5 // pred_fallthru
      _
    %p124 = scmp.lt.s32.totalorder %s9, 2
    // Predicated region
    $region21: #{_features_and_predictions.2} parent=5 // pred_check
      %p125 = pneg %p124
    $region22: #{_features_and_predictions.2} parent=5 // pred_check_branch
      %127 = sbr.rel (%p125) target = $region24
    $region23: #{_features_and_predictions.2} parent=5 // pred_region
      // Predicated region
      $region25: #{_features_and_predictions.2} parent=23 // pred_check
        %p128 = pneg %p29
      $region26: #{_features_and_predictions.2} parent=23 // pred_check_branch
        %130 = sbr.rel (%p128) target = $region28
      $region27: #{_features_and_predictions.2} parent=23 // pred_region
        %s131 = smul.u32 32, %s9
        %p132 = scmp.lt.s32.totalorder %s131, 63
        %s133 = scalar_select %p132, %s131, 63
        %s134 = smul.addr %s133, 4
        %s135 = scalar_lea.vmem %s0, %s134
        %s136 = smul.u32 32, %s9
      $region28: #{_features_and_predictions.2} parent=23 // pred_fallthru
        _
    $region24: #{_features_and_predictions.2} parent=5 // pred_fallthru
      _
    %p137 = scmp.le.s32.totalorder 1, %s9
    %p138 = scmp.lt.s32.totalorder %s9, 3
    %p139 = pnand %p137, %p138
    %p140 = pneg %p139
    // Predicated region
    $region29: #{_features_and_predictions.2} parent=5 // pred_check
      _
    $region30: #{_features_and_predictions.2} parent=5 // pred_check_branch
      %142 = sbr.rel (%p139) target = $region32
    $region31: #{_features_and_predictions.2} parent=5 // pred_region
      %s143 = ssub.s32 %s9, 1
      %s144 = smul.u32 32, %s14
      %p145 = scmp.lt.s32.totalorder %s144, 63
      %s146 = scalar_select %p145, %s144, 63
      %s147 = smul.addr %s146, 4
      %s148 = scalar_lea.vmem %s0, %s147
      %p149 = pneg %p35
      %p150 = pneg %p32
      %p151 = pneg %p56
      %p152 = pneg %p53
      %p153 = pneg %p77
      %p154 = pneg %p74
      %p155 = pneg %p103
      %p156 = pneg %p100
      %s157 = smul.u32 32, %s14
      %p158 = scmp.lt.s32.totalorder %s157, 63
      %s159 = scalar_select %p158, %s157, 63
      %s160 = smul.addr %s159, 4
      %s161 = scalar_lea.vmem %s3, %s160
      %s162 = smul.u32 32, %s14
      %p163 = scmp.lt.s32.totalorder %s162, 63
      %s164 = scalar_select %p163, %s162, 63
      %s165 = smul.addr %s164, 4
      %s166 = scalar_lea.vmem %s0, %s165
      %s167 = smul.u32 32, %s14
      %s168 = smul.u32 32, %s14
      %p169 = scmp.lt.s32.totalorder %s168, 63
      %s170 = scalar_select %p169, %s168, 63
      %s171 = smul.addr %s170, 4
      %s172 = scalar_lea.vmem %s3, %s171
      %s173 = smul.u32 32, %s14
      %v175 = vld [vmem:[%s166] sm:$0xf]
      %v176 = vld [vmem:[%s166 + $0x4] sm:$0xf]
      %v177 = vld [vmem:[%s166 + $0x8] sm:$0xf]
      %v178 = vld [vmem:[%s166 + $0xc] sm:$0xf]
      %v179 = vld [vmem:[%s166 + $0x10] sm:$0xf]
      %v180 = vld [vmem:[%s166 + $0x14] sm:$0xf]
      %v181 = vld [vmem:[%s166 + $0x18] sm:$0xf]
      %v182 = vld [vmem:[%s166 + $0x1c] sm:$0xf]
      %v183 = vld [vmem:[%s166 + $0x20] sm:$0xf]
      %v184 = vld [vmem:[%s166 + $0x24] sm:$0xf]
      %v185 = vld [vmem:[%s166 + $0x28] sm:$0xf]
      %v186 = vld [vmem:[%s166 + $0x2c] sm:$0xf]
      %v187 = vld [vmem:[%s166 + $0x30] sm:$0xf]
      %v188 = vld [vmem:[%s166 + $0x34] sm:$0xf]
      %v189 = vld [vmem:[%s166 + $0x38] sm:$0xf]
      %v190 = vld [vmem:[%s166 + $0x3c] sm:$0xf]
      %v191 = vld [vmem:[%s166 + $0x40] sm:$0xf]
      %v192 = vld [vmem:[%s166 + $0x44] sm:$0xf]
      %v193 = vld [vmem:[%s166 + $0x48] sm:$0xf]
      %v194 = vld [vmem:[%s166 + $0x4c] sm:$0xf]
      %v195 = vld [vmem:[%s166 + $0x50] sm:$0xf]
      %v196 = vld [vmem:[%s166 + $0x54] sm:$0xf]
      %v197 = vld [vmem:[%s166 + $0x58] sm:$0xf]
      %v198 = vld [vmem:[%s166 + $0x5c] sm:$0xf]
      %v199 = vld [vmem:[%s166 + $0x60] sm:$0xf]
      %v200 = vld [vmem:[%s166 + $0x64] sm:$0xf]
      %v201 = vld [vmem:[%s166 + $0x68] sm:$0xf]
      %v202 = vld [vmem:[%s166 + $0x6c] sm:$0xf]
      %v203 = vld [vmem:[%s166 + $0x70] sm:$0xf]
      %v204 = vld [vmem:[%s166 + $0x74] sm:$0xf]
      %v205 = vld [vmem:[%s166 + $0x78] sm:$0xf]
      %v206 = vld [vmem:[%s166 + $0x7c] sm:$0xf]
      %v207 = vld [vmem:[%s1] sm:$0xf]
      %v208 = vld [vmem:[%s1 + $0x4] sm:$0xf]
      %v209 = vld [vmem:[%s1 + $0x8] sm:$0xf]
      %v210 = vld [vmem:[%s1 + $0xc] sm:$0xf]
      %v211 = vld [vmem:[%s2] sm:$0x1]
      %v213 = vperm.slane %v211, 0
      %v247 = vunpack.c.l.b16 %v175
      %v248 = vunpack.c.l.b16 %v176
      %v249 = vunpack.c.l.b16 %v177
      %v250 = vunpack.c.l.b16 %v178
      %v251 = vunpack.c.l.b16 %v179
      %v252 = vunpack.c.l.b16 %v180
      %v253 = vunpack.c.l.b16 %v181
      %v254 = vunpack.c.l.b16 %v182
      %v255 = vunpack.c.l.b16 %v183
      %v256 = vunpack.c.l.b16 %v184
      %v257 = vunpack.c.l.b16 %v185
      %v258 = vunpack.c.l.b16 %v186
      %v259 = vunpack.c.l.b16 %v187
      %v260 = vunpack.c.l.b16 %v188
      %v261 = vunpack.c.l.b16 %v189
      %v262 = vunpack.c.l.b16 %v190
      %v263 = vunpack.c.l.b16 %v191
      %v264 = vunpack.c.l.b16 %v192
      %v265 = vunpack.c.l.b16 %v193
      %v266 = vunpack.c.l.b16 %v194
      %v267 = vunpack.c.l.b16 %v195
      %v268 = vunpack.c.l.b16 %v196
      %v269 = vunpack.c.l.b16 %v197
      %v270 = vunpack.c.l.b16 %v198
      %v271 = vunpack.c.l.b16 %v199
      %v272 = vunpack.c.l.b16 %v200
      %v273 = vunpack.c.l.b16 %v201
      %v274 = vunpack.c.l.b16 %v202
      %v275 = vunpack.c.l.b16 %v203
      %v276 = vunpack.c.l.b16 %v204
      %v277 = vunpack.c.l.b16 %v205
      %v278 = vunpack.c.l.b16 %v206
      %v279 = vpack.c.b16 %v248, %v247
      %v280 = vpack.c.b16 %v250, %v249
      %v281 = vpack.c.b16 %v252, %v251
      %v282 = vpack.c.b16 %v254, %v253
      %v283 = vpack.c.b16 %v256, %v255
      %v284 = vpack.c.b16 %v258, %v257
      %v285 = vpack.c.b16 %v260, %v259
      %v286 = vpack.c.b16 %v262, %v261
      %v287 = vpack.c.b16 %v264, %v263
      %v288 = vpack.c.b16 %v266, %v265
      %v289 = vpack.c.b16 %v268, %v267
      %v290 = vpack.c.b16 %v270, %v269
      %v291 = vpack.c.b16 %v272, %v271
      %v292 = vpack.c.b16 %v274, %v273
      %v293 = vpack.c.b16 %v276, %v275
      %v294 = vpack.c.b16 %v278, %v277
      %v299 = vunpack.c.l.b16 %v207
      %v300 = vunpack.c.l.b16 %v208
      %v301 = vunpack.c.l.b16 %v209
      %v302 = vunpack.c.l.b16 %v210
      %v303 = vpack.c.b16 %v300, %v299
      %v304 = vpack.c.b16 %v302, %v301
      %vm307 = vcmask 261120
      %v309 = vsel %vm307, %v279, 0
      %v312 = vsel %vm307, %v280, 0
      %v315 = vsel %vm307, %v281, 0
      %v318 = vsel %vm307, %v282, 0
      %v321 = vsel %vm307, %v283, 0
      %v324 = vsel %vm307, %v284, 0
      %v327 = vsel %vm307, %v285, 0
      %v330 = vsel %vm307, %v286, 0
      %v333 = vsel %vm307, %v287, 0
      %v336 = vsel %vm307, %v288, 0
      %v339 = vsel %vm307, %v289, 0
      %v342 = vsel %vm307, %v290, 0
      %v345 = vsel %vm307, %v291, 0
      %v348 = vsel %vm307, %v292, 0
      %v351 = vsel %vm307, %v293, 0
      %v354 = vsel %vm307, %v294, 0
      %356 = vmatpush.bf16.msra.mxu0 0
      %357 = vmatpush.bf16.msra.mxu0 0
      %358 = vmatpush.bf16.msra.mxu0 0
      %359 = vmatpush.bf16.msra.mxu0 0
      %360 = vmatpush.bf16.msra.mxu0 0
      %361 = vmatpush.bf16.msra.mxu0 0
      %362 = vmatpush.bf16.msra.mxu0 %v304
      %363 = vmatpush.bf16.msra.mxu0 %v303
      %364 = vmatmul.bf16.gmra.mxu0 %v309
      %v365 = vpop.f32.mrf.mxu0
      %v366 = vadd.f32 %v213, %v365
      %v367 = vpop.f32.mrf.mxu0
      %v368 = vadd.f32 %v213, %v367
      %369 = vmatmul.bf16.gmra.mxu0 %v312
      %v370 = vpop.f32.mrf.mxu0
      %v371 = vadd.f32 %v213, %v370
      %v372 = vpop.f32.mrf.mxu0
      %v373 = vadd.f32 %v213, %v372
      %374 = vmatmul.bf16.gmra.mxu0 %v315
      %v375 = vpop.f32.mrf.mxu0
      %v376 = vadd.f32 %v213, %v375
      %v377 = vpop.f32.mrf.mxu0
      %v378 = vadd.f32 %v213, %v377
      %379 = vmatmul.bf16.gmra.mxu0 %v318
      %v380 = vpop.f32.mrf.mxu0
      %v381 = vadd.f32 %v213, %v380
      %v382 = vpop.f32.mrf.mxu0
      %v383 = vadd.f32 %v213, %v382
      %384 = vmatmul.bf16.gmra.mxu0 %v321
      %v385 = vpop.f32.mrf.mxu0
      %v386 = vadd.f32 %v213, %v385
      %v387 = vpop.f32.mrf.mxu0
      %v388 = vadd.f32 %v213, %v387
      %389 = vmatmul.bf16.gmra.mxu0 %v324
      %v390 = vpop.f32.mrf.mxu0
      %v391 = vadd.f32 %v213, %v390
      %v392 = vpop.f32.mrf.mxu0
      %v393 = vadd.f32 %v213, %v392
      %394 = vmatmul.bf16.gmra.mxu0 %v327
      %v395 = vpop.f32.mrf.mxu0
      %v396 = vadd.f32 %v213, %v395
      %v397 = vpop.f32.mrf.mxu0
      %v398 = vadd.f32 %v213, %v397
      %399 = vmatmul.bf16.gmra.mxu0 %v330
      %v400 = vpop.f32.mrf.mxu0
      %v401 = vadd.f32 %v213, %v400
      %v402 = vpop.f32.mrf.mxu0
      %v403 = vadd.f32 %v213, %v402
      %404 = vmatmul.bf16.gmra.mxu0 %v333
      %v405 = vpop.f32.mrf.mxu0
      %v406 = vadd.f32 %v213, %v405
      %v407 = vpop.f32.mrf.mxu0
      %v408 = vadd.f32 %v213, %v407
      %409 = vmatmul.bf16.gmra.mxu0 %v336
      %v410 = vpop.f32.mrf.mxu0
      %v411 = vadd.f32 %v213, %v410
      %v412 = vpop.f32.mrf.mxu0
      %v413 = vadd.f32 %v213, %v412
      %414 = vmatmul.bf16.gmra.mxu0 %v339
      %v415 = vpop.f32.mrf.mxu0
      %v416 = vadd.f32 %v213, %v415
      %v417 = vpop.f32.mrf.mxu0
      %v418 = vadd.f32 %v213, %v417
      %419 = vmatmul.bf16.gmra.mxu0 %v342
      %v420 = vpop.f32.mrf.mxu0
      %v421 = vadd.f32 %v213, %v420
      %v422 = vpop.f32.mrf.mxu0
      %v423 = vadd.f32 %v213, %v422
      %424 = vmatmul.bf16.gmra.mxu0 %v345
      %v425 = vpop.f32.mrf.mxu0
      %v426 = vadd.f32 %v213, %v425
      %v427 = vpop.f32.mrf.mxu0
      %v428 = vadd.f32 %v213, %v427
      %429 = vmatmul.bf16.gmra.mxu0 %v348
      %v430 = vpop.f32.mrf.mxu0
      %v431 = vadd.f32 %v213, %v430
      %v432 = vpop.f32.mrf.mxu0
      %v433 = vadd.f32 %v213, %v432
      %434 = vmatmul.bf16.gmra.mxu0 %v351
      %v435 = vpop.f32.mrf.mxu0
      %v436 = vadd.f32 %v213, %v435
      %v437 = vpop.f32.mrf.mxu0
      %v438 = vadd.f32 %v213, %v437
      %439 = vmatmul.bf16.gmra.mxu0 %v354
      %v440 = vpop.f32.mrf.mxu0
      %v441 = vadd.f32 %v213, %v440
      %v442 = vpop.f32.mrf.mxu0
      %v443 = vadd.f32 %v213, %v442
      %444 = vdwg.mxu0
      %v445 = vmax.f32 %v366, 0.0
      %v446 = vmax.f32 %v368, 0.0
      %v447 = vmax.f32 %v371, 0.0
      %v448 = vmax.f32 %v373, 0.0
      %v449 = vmax.f32 %v376, 0.0
      %v450 = vmax.f32 %v378, 0.0
      %v451 = vmax.f32 %v381, 0.0
      %v452 = vmax.f32 %v383, 0.0
      %v453 = vmax.f32 %v386, 0.0
      %v454 = vmax.f32 %v388, 0.0
      %v455 = vmax.f32 %v391, 0.0
      %v456 = vmax.f32 %v393, 0.0
      %v457 = vmax.f32 %v396, 0.0
      %v458 = vmax.f32 %v398, 0.0
      %v459 = vmax.f32 %v401, 0.0
      %v460 = vmax.f32 %v403, 0.0
      %v461 = vmax.f32 %v406, 0.0
      %v462 = vmax.f32 %v408, 0.0
      %v463 = vmax.f32 %v411, 0.0
      %v464 = vmax.f32 %v413, 0.0
      %v465 = vmax.f32 %v416, 0.0
      %v466 = vmax.f32 %v418, 0.0
      %v467 = vmax.f32 %v421, 0.0
      %v468 = vmax.f32 %v423, 0.0
      %v469 = vmax.f32 %v426, 0.0
      %v470 = vmax.f32 %v428, 0.0
      %v471 = vmax.f32 %v431, 0.0
      %v472 = vmax.f32 %v433, 0.0
      %v473 = vmax.f32 %v436, 0.0
      %v474 = vmax.f32 %v438, 0.0
      %v475 = vmax.f32 %v441, 0.0
      %v476 = vmax.f32 %v443, 0.0
      %v477 = vpack.c.bf16 %v445, %v445
      %v478 = vpack.c.bf16 %v446, %v446
      %v479 = vpack.c.bf16 %v447, %v447
      %v480 = vpack.c.bf16 %v448, %v448
      %v481 = vpack.c.bf16 %v449, %v449
      %v482 = vpack.c.bf16 %v450, %v450
      %v483 = vpack.c.bf16 %v451, %v451
      %v484 = vpack.c.bf16 %v452, %v452
      %v485 = vpack.c.bf16 %v453, %v453
      %v486 = vpack.c.bf16 %v454, %v454
      %v487 = vpack.c.bf16 %v455, %v455
      %v488 = vpack.c.bf16 %v456, %v456
      %v489 = vpack.c.bf16 %v457, %v457
      %v490 = vpack.c.bf16 %v458, %v458
      %v491 = vpack.c.bf16 %v459, %v459
      %v492 = vpack.c.bf16 %v460, %v460
      %v493 = vpack.c.bf16 %v461, %v461
      %v494 = vpack.c.bf16 %v462, %v462
      %v495 = vpack.c.bf16 %v463, %v463
      %v496 = vpack.c.bf16 %v464, %v464
      %v497 = vpack.c.bf16 %v465, %v465
      %v498 = vpack.c.bf16 %v466, %v466
      %v499 = vpack.c.bf16 %v467, %v467
      %v500 = vpack.c.bf16 %v468, %v468
      %v501 = vpack.c.bf16 %v469, %v469
      %v502 = vpack.c.bf16 %v470, %v470
      %v503 = vpack.c.bf16 %v471, %v471
      %v504 = vpack.c.bf16 %v472, %v472
      %v505 = vpack.c.bf16 %v473, %v473
      %v506 = vpack.c.bf16 %v474, %v474
      %v507 = vpack.c.bf16 %v475, %v475
      %v508 = vpack.c.bf16 %v476, %v476
      %vm509 = vcmask 257024
      %510 = vst.msk [vmem:[%s172] sm:$0xf] %vm509, %v477
      %511 = vst.msk [vmem:[%s172 + $0x4] sm:$0xf] %vm509, %v478
      %512 = vst.msk [vmem:[%s172 + $0x8] sm:$0xf] %vm509, %v479
      %513 = vst.msk [vmem:[%s172 + $0xc] sm:$0xf] %vm509, %v480
      %514 = vst.msk [vmem:[%s172 + $0x10] sm:$0xf] %vm509, %v481
      %515 = vst.msk [vmem:[%s172 + $0x14] sm:$0xf] %vm509, %v482
      %516 = vst.msk [vmem:[%s172 + $0x18] sm:$0xf] %vm509, %v483
      %517 = vst.msk [vmem:[%s172 + $0x1c] sm:$0xf] %vm509, %v484
      %518 = vst.msk [vmem:[%s172 + $0x20] sm:$0xf] %vm509, %v485
      %519 = vst.msk [vmem:[%s172 + $0x24] sm:$0xf] %vm509, %v486
      %520 = vst.msk [vmem:[%s172 + $0x28] sm:$0xf] %vm509, %v487
      %521 = vst.msk [vmem:[%s172 + $0x2c] sm:$0xf] %vm509, %v488
      %522 = vst.msk [vmem:[%s172 + $0x30] sm:$0xf] %vm509, %v489
      %523 = vst.msk [vmem:[%s172 + $0x34] sm:$0xf] %vm509, %v490
      %524 = vst.msk [vmem:[%s172 + $0x38] sm:$0xf] %vm509, %v491
      %525 = vst.msk [vmem:[%s172 + $0x3c] sm:$0xf] %vm509, %v492
      %526 = vst.msk [vmem:[%s172 + $0x40] sm:$0xf] %vm509, %v493
      %527 = vst.msk [vmem:[%s172 + $0x44] sm:$0xf] %vm509, %v494
      %528 = vst.msk [vmem:[%s172 + $0x48] sm:$0xf] %vm509, %v495
      %529 = vst.msk [vmem:[%s172 + $0x4c] sm:$0xf] %vm509, %v496
      %530 = vst.msk [vmem:[%s172 + $0x50] sm:$0xf] %vm509, %v497
      %531 = vst.msk [vmem:[%s172 + $0x54] sm:$0xf] %vm509, %v498
      %532 = vst.msk [vmem:[%s172 + $0x58] sm:$0xf] %vm509, %v499
      %533 = vst.msk [vmem:[%s172 + $0x5c] sm:$0xf] %vm509, %v500
      %534 = vst.msk [vmem:[%s172 + $0x60] sm:$0xf] %vm509, %v501
      %535 = vst.msk [vmem:[%s172 + $0x64] sm:$0xf] %vm509, %v502
      %536 = vst.msk [vmem:[%s172 + $0x68] sm:$0xf] %vm509, %v503
      %537 = vst.msk [vmem:[%s172 + $0x6c] sm:$0xf] %vm509, %v504
      %538 = vst.msk [vmem:[%s172 + $0x70] sm:$0xf] %vm509, %v505
      %539 = vst.msk [vmem:[%s172 + $0x74] sm:$0xf] %vm509, %v506
      %540 = vst.msk [vmem:[%s172 + $0x78] sm:$0xf] %vm509, %v507
      %541 = vst.msk [vmem:[%s172 + $0x7c] sm:$0xf] %vm509, %v508
      %s542 = smul.u32 32, %s14
      %p543 = scmp.lt.s32.totalorder %s542, 63
      %s544 = scalar_select %p543, %s542, 63
      %s545 = smul.addr %s544, 4
      %s546 = scalar_lea.vmem %s3, %s545
      // Predicated region
      $region33: #{_features_and_predictions.2} parent=31 // pred_check
        %p547 = pneg %p100
      $region34: #{_features_and_predictions.2} parent=31 // pred_check_branch
        %549 = sbr.rel (%p547) target = $region36
      $region35: #{_features_and_predictions.2} parent=31 // pred_region
        %s550 = smul.u32 32, %s14
      $region36: #{_features_and_predictions.2} parent=31 // pred_fallthru
        _
    $region32: #{_features_and_predictions.2} parent=5 // pred_fallthru
      _
    %p551 = scmp.le.s32.totalorder 2, %s9
    // Predicated region
    $region37: #{_features_and_predictions.2} parent=5 // pred_check
      %p552 = pneg %p551
    $region38: #{_features_and_predictions.2} parent=5 // pred_check_branch
      %554 = sbr.rel (%p552) target = $region40
    $region39: #{_features_and_predictions.2} parent=5 // pred_region
      %s555 = ssub.s32 %s9, 2
      // Predicated region
      $region41: #{_features_and_predictions.2} parent=39 // pred_check
        %p556 = pneg %p106
      $region42: #{_features_and_predictions.2} parent=39 // pred_check_branch
        %558 = sbr.rel (%p556) target = $region44
      $region43: #{_features_and_predictions.2} parent=39 // pred_region
        %s559 = smul.u32 32, %s15
        %p560 = scmp.lt.s32.totalorder %s559, 63
        %s561 = scalar_select %p560, %s559, 63
        %s562 = smul.addr %s561, 4
        %s563 = scalar_lea.vmem %s3, %s562
      $region44: #{_features_and_predictions.2} parent=39 // pred_fallthru
        _
    $region40: #{_features_and_predictions.2} parent=5 // pred_fallthru
      _
  $region6: #{_features_and_predictions.2} parent=0 // loop_footer
    %s13 = sadd.s32 1, %s9
  $region7: #{_features_and_predictions.2} parent=0 // loop_footer_branch
    %8 = sbr.rel target = $region3
  $region8: #{_features_and_predictions.2} parent=0 // loop_exit
    _

// kernel: _features_and_predictions.3
$region0: #{_features_and_predictions.3}
  #allocation0 [shape = 'u32[]', space=smem, size = 0x4, offset = 0x4, fixed_abs, tag = 'smem constant byte address 0x4 - core index']
  #allocation1 [shape = 'u32[72,128]{1,0:T(1,128)}', space=vmem, size = 0x9000, scoped, tag = 'internal scratch']
  #allocation2 [shape = 'f32[296,32]{1,0:T(8,128)}', space=vmem, size = 0x25000, scoped, tag = 'scratch operand']
  %s0 = inlined_call_operand.vmem [shape: bf16[1024,32], index: 0, kind: input, shape index: {}, may-alias: {0,1}]
  %s1 = inlined_call_operand.vmem [shape: bf16[1024,32], index: 1, kind: input, shape index: {}, may-alias: {0,1}]
  %s2 = inlined_call_operand.vmem [shape: f32[288,32], index: 2, kind: input, shape index: {}]
  %s3 = inlined_call_operand.vmem [shape: f32[1,32], index: 3, kind: input, shape index: {}]
  %s4 = inlined_call_operand.vmem [shape: f32[32,16], index: 4, kind: input, shape index: {}]
  %s5 = inlined_call_operand.vmem [shape: f32[1,16], index: 5, kind: input, shape index: {}]
  %s6 = inlined_call_operand.vmem [shape: f32[768,16], index: 6, kind: output, shape index: {}]
  %s7 = sld [smem:[#allocation0]]
  $region57: #{_features_and_predictions.3} parent=0
    _
  %s9 = ssub.s32 1, %s7
  %s10 = scalar_select 0, %s9, %s7
  loop: start=0, step=1, limit=5
  $region2: #{_features_and_predictions.3} parent=0 // loop_pre_header
    _
  $region3: #{_features_and_predictions.3} parent=0 // loop_header
    %s12 = sphi 0, %s16
    %p13 = scmp.ge.s32.totalorder %s12, 5
    %s22 = sphi 0, %s24
    %s25 = sphi 0, %s22
    %s26 = sphi 0, %s25
    %s42 = sphi 0, %s26
    %s50 = sphi 0, %s52
    %s53 = sphi 0, %s50
    %s54 = sphi 0, %s53
    %s70 = sphi 0, %s54
    %s74 = sphi 0, %s74
    %s76 = sphi 0, %s74
    %s77 = sphi 0, %s76
    %s91 = sphi 0, %s77
    %s95 = sphi 0, %s95
    %s97 = sphi 0, %s95
    %s98 = sphi 0, %s97
    %s112 = sphi 0, %s98
    %s116 = sphi 0, %s116
    %s118 = sphi 0, %s116
    %s119 = sphi 0, %s118
    %s133 = sphi 0, %s119
    %s137 = sphi 0, %s137
    %s139 = sphi 0, %s137
    %s140 = sphi 0, %s139
    %s154 = sphi 0, %s140
    %s160 = sphi 0, %s162
    %s163 = sphi 0, %s160
    %s164 = sphi 0, %s163
    %s180 = sphi 0, %s164
  $region4: #{_features_and_predictions.3} parent=0 // loop_header_branch
    %15 = sbr.rel (%p13) target = $region8
  $region5: #{_features_and_predictions.3} parent=0 // loop_body
    %s17 = ssub.s32 %s12, 1
    %s18 = ssub.s32 %s12, 2
    %s19 = sadd.s32 %s12, 1
    %s20 = ssub.s32 %s12, %s19
    %p21 = scmp.eq.s32.totalorder %s20, 0
    %s23 = sadd.s32 %s22, 1
    %s24 = scalar_select %p21, %s22, %s23
    %p27 = pneg %p21
    %p28 = scmp.eq.s32.totalorder %s12, 2
    %p29 = por %p27, %p28
    %p30 = scmp.ne.s32.totalorder %s22, %s25
    %p31 = scmp.eq.s32.totalorder %s12, 0
    %p32 = por %p30, %p31
    %p33 = scmp.ne.s32.totalorder %s22, %s25
    %p34 = scmp.eq.s32.totalorder %s17, 2
    %p35 = por %p33, %p34
    %p36 = scmp.ne.s32.totalorder %s25, %s26
    %p37 = scmp.eq.s32.totalorder %s17, 0
    %p38 = por %p36, %p37
    %p39 = scmp.ne.s32.totalorder %s25, %s26
    %p40 = scmp.eq.s32.totalorder %s18, 2
    %p41 = por %p39, %p40
    %p43 = scmp.ne.s32.totalorder %s26, %s42
    %p44 = scmp.eq.s32.totalorder %s18, 0
    %p45 = por %p43, %p44
    %s46 = sadd.s32 %s12, 1
    %s47 = sadd.s32 %s19, 1
    %s48 = ssub.s32 %s46, %s47
    %p49 = scmp.eq.s32.totalorder %s48, 0
    %s51 = sadd.s32 %s50, 1
    %s52 = scalar_select %p49, %s50, %s51
    %p55 = pneg %p49
    %p56 = scmp.eq.s32.totalorder %s12, 2
    %p57 = por %p55, %p56
    %p58 = scmp.ne.s32.totalorder %s50, %s53
    %p59 = scmp.eq.s32.totalorder %s12, 0
    %p60 = por %p58, %p59
    %p61 = scmp.ne.s32.totalorder %s50, %s53
    %p62 = scmp.eq.s32.totalorder %s17, 2
    %p63 = por %p61, %p62
    %p64 = scmp.ne.s32.totalorder %s53, %s54
    %p65 = scmp.eq.s32.totalorder %s17, 0
    %p66 = por %p64, %p65
    %p67 = scmp.ne.s32.totalorder %s53, %s54
    %p68 = scmp.eq.s32.totalorder %s18, 2
    %p69 = por %p67, %p68
    %p71 = scmp.ne.s32.totalorder %s54, %s70
    %p72 = scmp.eq.s32.totalorder %s18, 0
    %p73 = por %p71, %p72
    %s75 = sadd.s32 %s74, 1
    %p78 = scmp.eq.s32.totalorder %s12, 2
    %p79 = scmp.ne.s32.totalorder %s74, %s76
    %p80 = scmp.eq.s32.totalorder %s12, 0
    %p81 = por %p79, %p80
    %p82 = scmp.ne.s32.totalorder %s74, %s76
    %p83 = scmp.eq.s32.totalorder %s17, 2
    %p84 = por %p82, %p83
    %p85 = scmp.ne.s32.totalorder %s76, %s77
    %p86 = scmp.eq.s32.totalorder %s17, 0
    %p87 = por %p85, %p86
    %p88 = scmp.ne.s32.totalorder %s76, %s77
    %p89 = scmp.eq.s32.totalorder %s18, 2
    %p90 = por %p88, %p89
    %p92 = scmp.ne.s32.totalorder %s77, %s91
    %p93 = scmp.eq.s32.totalorder %s18, 0
    %p94 = por %p92, %p93
    %s96 = sadd.s32 %s95, 1
    %p99 = scmp.eq.s32.totalorder %s12, 2
    %p100 = scmp.ne.s32.totalorder %s95, %s97
    %p101 = scmp.eq.s32.totalorder %s12, 0
    %p102 = por %p100, %p101
    %p103 = scmp.ne.s32.totalorder %s95, %s97
    %p104 = scmp.eq.s32.totalorder %s17, 2
    %p105 = por %p103, %p104
    %p106 = scmp.ne.s32.totalorder %s97, %s98
    %p107 = scmp.eq.s32.totalorder %s17, 0
    %p108 = por %p106, %p107
    %p109 = scmp.ne.s32.totalorder %s97, %s98
    %p110 = scmp.eq.s32.totalorder %s18, 2
    %p111 = por %p109, %p110
    %p113 = scmp.ne.s32.totalorder %s98, %s112
    %p114 = scmp.eq.s32.totalorder %s18, 0
    %p115 = por %p113, %p114
    %s117 = sadd.s32 %s116, 1
    %p120 = scmp.eq.s32.totalorder %s12, 2
    %p121 = scmp.ne.s32.totalorder %s116, %s118
    %p122 = scmp.eq.s32.totalorder %s12, 0
    %p123 = por %p121, %p122
    %p124 = scmp.ne.s32.totalorder %s116, %s118
    %p125 = scmp.eq.s32.totalorder %s17, 2
    %p126 = por %p124, %p125
    %p127 = scmp.ne.s32.totalorder %s118, %s119
    %p128 = scmp.eq.s32.totalorder %s17, 0
    %p129 = por %p127, %p128
    %p130 = scmp.ne.s32.totalorder %s118, %s119
    %p131 = scmp.eq.s32.totalorder %s18, 2
    %p132 = por %p130, %p131
    %p134 = scmp.ne.s32.totalorder %s119, %s133
    %p135 = scmp.eq.s32.totalorder %s18, 0
    %p136 = por %p134, %p135
    %s138 = sadd.s32 %s137, 1
    %p141 = scmp.eq.s32.totalorder %s12, 2
    %p142 = scmp.ne.s32.totalorder %s137, %s139
    %p143 = scmp.eq.s32.totalorder %s12, 0
    %p144 = por %p142, %p143
    %p145 = scmp.ne.s32.totalorder %s137, %s139
    %p146 = scmp.eq.s32.totalorder %s17, 2
    %p147 = por %p145, %p146
    %p148 = scmp.ne.s32.totalorder %s139, %s140
    %p149 = scmp.eq.s32.totalorder %s17, 0
    %p150 = por %p148, %p149
    %p151 = scmp.ne.s32.totalorder %s139, %s140
    %p152 = scmp.eq.s32.totalorder %s18, 2
    %p153 = por %p151, %p152
    %p155 = scmp.ne.s32.totalorder %s140, %s154
    %p156 = scmp.eq.s32.totalorder %s18, 0
    %p157 = por %p155, %p156
    %s158 = ssub.s32 %s12, %s19
    %p159 = scmp.eq.s32.totalorder %s158, 0
    %s161 = sadd.s32 %s160, 1
    %s162 = scalar_select %p159, %s160, %s161
    %p165 = pneg %p159
    %p166 = scmp.eq.s32.totalorder %s12, 2
    %p167 = por %p165, %p166
    %p168 = scmp.ne.s32.totalorder %s160, %s163
    %p169 = scmp.eq.s32.totalorder %s12, 0
    %p170 = por %p168, %p169
    %p171 = scmp.ne.s32.totalorder %s160, %s163
    %p172 = scmp.eq.s32.totalorder %s17, 2
    %p173 = por %p171, %p172
    %p174 = scmp.ne.s32.totalorder %s163, %s164
    %p175 = scmp.eq.s32.totalorder %s17, 0
    %p176 = por %p174, %p175
    %p177 = scmp.ne.s32.totalorder %s163, %s164
    %p178 = scmp.eq.s32.totalorder %s18, 2
    %p179 = por %p177, %p178
    %p181 = scmp.ne.s32.totalorder %s164, %s180
    %p182 = scmp.eq.s32.totalorder %s18, 0
    %p183 = por %p181, %p182
    %p184 = scmp.le.s32.totalorder 1, %s12
    %p185 = scmp.lt.s32.totalorder %s12, 4
    %p186 = pnand %p184, %p185
    %p187 = pneg %p186
    // Predicated region
    $region9: #{_features_and_predictions.3} parent=5 // pred_check
      _
    $region10: #{_features_and_predictions.3} parent=5 // pred_check_branch
      %189 = sbr.rel (%p186) target = $region12
    $region11: #{_features_and_predictions.3} parent=5 // pred_region
      %s190 = ssub.s32 %s12, 1
      // Predicated region
      $region13: #{_features_and_predictions.3} parent=11 // pred_check
        %p191 = pneg %p87
      $region14: #{_features_and_predictions.3} parent=11 // pred_check_branch
        %193 = sbr.rel (%p191) target = $region16
      $region15: #{_features_and_predictions.3} parent=11 // pred_region
        _
      $region16: #{_features_and_predictions.3} parent=11 // pred_fallthru
        _
      // Predicated region
      $region17: #{_features_and_predictions.3} parent=11 // pred_check
        %p194 = pneg %p108
      $region18: #{_features_and_predictions.3} parent=11 // pred_check_branch
        %196 = sbr.rel (%p194) target = $region20
      $region19: #{_features_and_predictions.3} parent=11 // pred_region
        _
      $region20: #{_features_and_predictions.3} parent=11 // pred_fallthru
        _
      // Predicated region
      $region21: #{_features_and_predictions.3} parent=11 // pred_check
        %p197 = pneg %p129
      $region22: #{_features_and_predictions.3} parent=11 // pred_check_branch
        %199 = sbr.rel (%p197) target = $region24
      $region23: #{_features_and_predictions.3} parent=11 // pred_region
        _
      $region24: #{_features_and_predictions.3} parent=11 // pred_fallthru
        _
      // Predicated region
      $region25: #{_features_and_predictions.3} parent=11 // pred_check
        %p200 = pneg %p150
      $region26: #{_features_and_predictions.3} parent=11 // pred_check_branch
        %202 = sbr.rel (%p200) target = $region28
      $region27: #{_features_and_predictions.3} parent=11 // pred_region
        _
      $region28: #{_features_and_predictions.3} parent=11 // pred_fallthru
        _
    $region12: #{_features_and_predictions.3} parent=5 // pred_fallthru
      _
    %p203 = scmp.lt.s32.totalorder %s12, 3
    // Predicated region
    $region29: #{_features_and_predictions.3} parent=5 // pred_check
      %p204 = pneg %p203
    $region30: #{_features_and_predictions.3} parent=5 // pred_check_branch
      %206 = sbr.rel (%p204) target = $region32
    $region31: #{_features_and_predictions.3} parent=5 // pred_region
      // Predicated region
      $region33: #{_features_and_predictions.3} parent=31 // pred_check
        %p207 = pneg %p32
      $region34: #{_features_and_predictions.3} parent=31 // pred_check_branch
        %209 = sbr.rel (%p207) target = $region36
      $region35: #{_features_and_predictions.3} parent=31 // pred_region
        %s210 = smul.u32 32, %s12
        %p211 = scmp.lt.s32.totalorder %s210, 127
        %s212 = scalar_select %p211, %s210, 127
        %s213 = smul.addr %s212, 4
        %s214 = scalar_lea.vmem %s0, %s213
        %s215 = smul.u32 32, %s12
      $region36: #{_features_and_predictions.3} parent=31 // pred_fallthru
        _
      // Predicated region
      $region37: #{_features_and_predictions.3} parent=31 // pred_check
        %p216 = pneg %p60
      $region38: #{_features_and_predictions.3} parent=31 // pred_check_branch
        %218 = sbr.rel (%p216) target = $region40
      $region39: #{_features_and_predictions.3} parent=31 // pred_region
        %s219 = sadd.s32 %s12, 1
        %s220 = smul.u32 32, %s219
        %p221 = scmp.lt.s32.totalorder %s220, 127
        %s222 = scalar_select %p221, %s220, 127
        %s223 = smul.addr %s222, 4
        %s224 = scalar_lea.vmem %s1, %s223
        %s225 = sadd.s32 %s12, 1
        %s226 = smul.u32 32, %s225
      $region40: #{_features_and_predictions.3} parent=31 // pred_fallthru
        _
    $region32: #{_features_and_predictions.3} parent=5 // pred_fallthru
      _
    %p227 = scmp.le.s32.totalorder 1, %s12
    %p228 = scmp.lt.s32.totalorder %s12, 4
    %p229 = pnand %p227, %p228
    %p230 = pneg %p229
    // Predicated region
    $region41: #{_features_and_predictions.3} parent=5 // pred_check
      _
    $region42: #{_features_and_predictions.3} parent=5 // pred_check_branch
      %232 = sbr.rel (%p229) target = $region44
    $region43: #{_features_and_predictions.3} parent=5 // pred_region
      %s233 = ssub.s32 %s12, 1
      %s234 = smul.u32 32, %s17
      %p235 = scmp.lt.s32.totalorder %s234, 127
      %s236 = scalar_select %p235, %s234, 127
      %s237 = smul.addr %s236, 4
      %s238 = scalar_lea.vmem %s0, %s237
      %p239 = pneg %p38
      %p240 = pneg %p35
      %s241 = sadd.s32 %s17, 1
      %s242 = smul.u32 32, %s241
      %p243 = scmp.lt.s32.totalorder %s242, 127
      %s244 = scalar_select %p243, %s242, 127
      %s245 = smul.addr %s244, 4
      %s246 = scalar_lea.vmem %s1, %s245
      %p247 = pneg %p66
      %p248 = pneg %p63
      %p249 = pneg %p87
      %p250 = pneg %p84
      %p251 = pneg %p108
      %p252 = pneg %p105
      %p253 = pneg %p129
      %p254 = pneg %p126
      %p255 = pneg %p150
      %p256 = pneg %p147
      %p257 = pneg %p176
      %p258 = pneg %p173
      %s259 = smul.u32 32, %s17
      %p260 = scmp.lt.s32.totalorder %s259, 95
      %s261 = scalar_select %p260, %s259, 95
      %s262 = smul.addr %s261, 8
      %s263 = scalar_lea.vmem %s6, %s262
      %s264 = smul.u32 32, %s17
      %p265 = scmp.lt.s32.totalorder %s264, 127
      %s266 = scalar_select %p265, %s264, 127
      %s267 = smul.addr %s266, 4
      %s268 = scalar_lea.vmem %s0, %s267
      %s269 = smul.u32 32, %s17
      %s270 = sadd.s32 %s17, 1
      %s271 = smul.u32 32, %s270
      %p272 = scmp.lt.s32.totalorder %s271, 127
      %s273 = scalar_select %p272, %s271, 127
      %s274 = smul.addr %s273, 4
      %s275 = scalar_lea.vmem %s1, %s274
      %s276 = sadd.s32 %s17, 1
      %s277 = smul.u32 32, %s276
      %s278 = smul.u32 32, %s17
      %p279 = scmp.lt.s32.totalorder %s278, 95
      %s280 = scalar_select %p279, %s278, 95
      %s281 = smul.addr %s280, 8
      %s282 = scalar_lea.vmem %s6, %s281
      %s283 = smul.u32 32, %s17
      %v284 = vld [vmem:[%s268] sm:$0xf]
      %v285 = vld [vmem:[%s268 + $0x4] sm:$0xf]
      %v286 = vld [vmem:[%s268 + $0x8] sm:$0xf]
      %v287 = vld [vmem:[%s268 + $0xc] sm:$0xf]
      %v288 = vld [vmem:[%s268 + $0x10] sm:$0xf]
      %v289 = vld [vmem:[%s268 + $0x14] sm:$0xf]
      %v290 = vld [vmem:[%s268 + $0x18] sm:$0xf]
      %v291 = vld [vmem:[%s268 + $0x1c] sm:$0xf]
      %v292 = vld [vmem:[%s268 + $0x20] sm:$0xf]
      %v293 = vld [vmem:[%s268 + $0x24] sm:$0xf]
      %v294 = vld [vmem:[%s268 + $0x28] sm:$0xf]
      %v295 = vld [vmem:[%s268 + $0x2c] sm:$0xf]
      %v296 = vld [vmem:[%s268 + $0x30] sm:$0xf]
      %v297 = vld [vmem:[%s268 + $0x34] sm:$0xf]
      %v298 = vld [vmem:[%s268 + $0x38] sm:$0xf]
      %v299 = vld [vmem:[%s268 + $0x3c] sm:$0xf]
      %v300 = vld [vmem:[%s268 + $0x40] sm:$0xf]
      %v301 = vld [vmem:[%s268 + $0x44] sm:$0xf]
      %v302 = vld [vmem:[%s268 + $0x48] sm:$0xf]
      %v303 = vld [vmem:[%s268 + $0x4c] sm:$0xf]
      %v304 = vld [vmem:[%s268 + $0x50] sm:$0xf]
      %v305 = vld [vmem:[%s268 + $0x54] sm:$0xf]
      %v306 = vld [vmem:[%s268 + $0x58] sm:$0xf]
      %v307 = vld [vmem:[%s268 + $0x5c] sm:$0xf]
      %v308 = vld [vmem:[%s268 + $0x60] sm:$0xf]
      %v309 = vld [vmem:[%s268 + $0x64] sm:$0xf]
      %v310 = vld [vmem:[%s268 + $0x68] sm:$0xf]
      %v311 = vld [vmem:[%s268 + $0x6c] sm:$0xf]
      %v312 = vld [vmem:[%s268 + $0x70] sm:$0xf]
      %v313 = vld [vmem:[%s268 + $0x74] sm:$0xf]
      %v314 = vld [vmem:[%s268 + $0x78] sm:$0xf]
      %v315 = vld [vmem:[%s268 + $0x7c] sm:$0xf]
      %v316 = vunpack.c.l.bf16 %v284
      %v317 = vunpack.c.l.bf16 %v285
      %v318 = vunpack.c.l.bf16 %v286
      %v319 = vunpack.c.l.bf16 %v287
      %v320 = vunpack.c.l.bf16 %v288
      %v321 = vunpack.c.l.bf16 %v289
      %v322 = vunpack.c.l.bf16 %v290
      %v323 = vunpack.c.l.bf16 %v291
      %v324 = vunpack.c.l.bf16 %v292
      %v325 = vunpack.c.l.bf16 %v293
      %v326 = vunpack.c.l.bf16 %v294
      %v327 = vunpack.c.l.bf16 %v295
      %v328 = vunpack.c.l.bf16 %v296
      %v329 = vunpack.c.l.bf16 %v297
      %v330 = vunpack.c.l.bf16 %v298
      %v331 = vunpack.c.l.bf16 %v299
      %v332 = vunpack.c.l.bf16 %v300
      %v333 = vunpack.c.l.bf16 %v301
      %v334 = vunpack.c.l.bf16 %v302
      %v335 = vunpack.c.l.bf16 %v303
      %v336 = vunpack.c.l.bf16 %v304
      %v337 = vunpack.c.l.bf16 %v305
      %v338 = vunpack.c.l.bf16 %v306
      %v339 = vunpack.c.l.bf16 %v307
      %v340 = vunpack.c.l.bf16 %v308
      %v341 = vunpack.c.l.bf16 %v309
      %v342 = vunpack.c.l.bf16 %v310
      %v343 = vunpack.c.l.bf16 %v311
      %v344 = vunpack.c.l.bf16 %v312
      %v345 = vunpack.c.l.bf16 %v313
      %v346 = vunpack.c.l.bf16 %v314
      %v347 = vunpack.c.l.bf16 %v315
      %vm348 = vcmask 261120
      %349 = vst.msk [vmem:[#allocation2] sm:$0xff] %vm348, %v316
      %350 = vst.msk [vmem:[#allocation2 + $0x8] sm:$0xff] %vm348, %v317
      %351 = vst.msk [vmem:[#allocation2 + $0x10] sm:$0xff] %vm348, %v318
      %352 = vst.msk [vmem:[#allocation2 + $0x18] sm:$0xff] %vm348, %v319
      %353 = vst.msk [vmem:[#allocation2 + $0x20] sm:$0xff] %vm348, %v320
      %354 = vst.msk [vmem:[#allocation2 + $0x28] sm:$0xff] %vm348, %v321
      %355 = vst.msk [vmem:[#allocation2 + $0x30] sm:$0xff] %vm348, %v322
      %356 = vst.msk [vmem:[#allocation2 + $0x38] sm:$0xff] %vm348, %v323
      %357 = vst.msk [vmem:[#allocation2 + $0x40] sm:$0xff] %vm348, %v324
      %358 = vst.msk [vmem:[#allocation2 + $0x48] sm:$0xff] %vm348, %v325
      %359 = vst.msk [vmem:[#allocation2 + $0x50] sm:$0xff] %vm348, %v326
      %360 = vst.msk [vmem:[#allocation2 + $0x58] sm:$0xff] %vm348, %v327
      %361 = vst.msk [vmem:[#allocation2 + $0x60] sm:$0xff] %vm348, %v328
      %362 = vst.msk [vmem:[#allocation2 + $0x68] sm:$0xff] %vm348, %v329
      %363 = vst.msk [vmem:[#allocation2 + $0x70] sm:$0xff] %vm348, %v330
      %364 = vst.msk [vmem:[#allocation2 + $0x78] sm:$0xff] %vm348, %v331
      %365 = vst.msk [vmem:[#allocation2 + $0x80] sm:$0xff] %vm348, %v332
      %366 = vst.msk [vmem:[#allocation2 + $0x88] sm:$0xff] %vm348, %v333
      %367 = vst.msk [vmem:[#allocation2 + $0x90] sm:$0xff] %vm348, %v334
      %368 = vst.msk [vmem:[#allocation2 + $0x98] sm:$0xff] %vm348, %v335
      %369 = vst.msk [vmem:[#allocation2 + $0xa0] sm:$0xff] %vm348, %v336
      %370 = vst.msk [vmem:[#allocation2 + $0xa8] sm:$0xff] %vm348, %v337
      %371 = vst.msk [vmem:[#allocation2 + $0xb0] sm:$0xff] %vm348, %v338
      %372 = vst.msk [vmem:[#allocation2 + $0xb8] sm:$0xff] %vm348, %v339
      %373 = vst.msk [vmem:[#allocation2 + $0xc0] sm:$0xff] %vm348, %v340
      %374 = vst.msk [vmem:[#allocation2 + $0xc8] sm:$0xff] %vm348, %v341
      %375 = vst.msk [vmem:[#allocation2 + $0xd0] sm:$0xff] %vm348, %v342
      %376 = vst.msk [vmem:[#allocation2 + $0xd8] sm:$0xff] %vm348, %v343
      %377 = vst.msk [vmem:[#allocation2 + $0xe0] sm:$0xff] %vm348, %v344
      %378 = vst.msk [vmem:[#allocation2 + $0xe8] sm:$0xff] %vm348, %v345
      %379 = vst.msk [vmem:[#allocation2 + $0xf0] sm:$0xff] %vm348, %v346
      %380 = vst.msk [vmem:[#allocation2 + $0xf8] sm:$0xff] %vm348, %v347
      %v381 = vld [vmem:[%s275] sm:$0xf]
      %v382 = vld [vmem:[%s275 + $0x4] sm:$0xf]
      %v383 = vld [vmem:[%s275 + $0x8] sm:$0xf]
      %v384 = vld [vmem:[%s275 + $0xc] sm:$0xf]
      %v385 = vld [vmem:[%s275 + $0x10] sm:$0x7]
      %v386 = vunpack.c.l.bf16 %v381
      %v387 = vunpack.c.l.bf16 %v382
      %v388 = vunpack.c.l.bf16 %v383
      %v389 = vunpack.c.l.bf16 %v384
      %v390 = vunpack.c.l.bf16 %v385
      %391 = vst.msk [vmem:[#allocation2 + $0x100] sm:$0xff] %vm348, %v386
      %392 = vst.msk [vmem:[#allocation2 + $0x108] sm:$0xff] %vm348, %v387
      %393 = vst.msk [vmem:[#allocation2 + $0x110] sm:$0xff] %vm348, %v388
      %394 = vst.msk [vmem:[#allocation2 + $0x118] sm:$0xff] %vm348, %v389
      %vm395 = vcmask 259072
      %396 = vst.msk [vmem:[#allocation2 + $0x120] sm:$0x3f] %vm395, %v390
      %v397 = vld [vmem:[#allocation2] sm:$0xff]
      %v398 = vld [vmem:[#allocation2 + $0x8] sm:$0xff]
      %v399 = vld [vmem:[#allocation2 + $0x10] sm:$0xff]
      %v400 = vld [vmem:[#allocation2 + $0x18] sm:$0xff]
      %v401 = vld [vmem:[#allocation2 + $0x20] sm:$0xff]
      %v402 = vld [vmem:[#allocation2 + $0x28] sm:$0xff]
      %v403 = vld [vmem:[#allocation2 + $0x30] sm:$0xff]
      %v404 = vld [vmem:[#allocation2 + $0x38] sm:$0xff]
      %v405 = vld [vmem:[#allocation2 + $0x40] sm:$0xff]
      %v406 = vld [vmem:[#allocation2 + $0x48] sm:$0xff]
      %v407 = vld [vmem:[#allocation2 + $0x50] sm:$0xff]
      %v408 = vld [vmem:[#allocation2 + $0x58] sm:$0xff]
      %v409 = vld [vmem:[#allocation2 + $0x60] sm:$0xff]
      %v410 = vld [vmem:[#allocation2 + $0x68] sm:$0xff]
      %v411 = vld [vmem:[#allocation2 + $0x70] sm:$0xff]
      %v412 = vld [vmem:[#allocation2 + $0x78] sm:$0xff]
      %v413 = vld [vmem:[#allocation2 + $0x80] sm:$0xff]
      %v414 = vld [vmem:[#allocation2 + $0x88] sm:$0xff]
      %v415 = vld [vmem:[#allocation2 + $0x90] sm:$0xff]
      %v416 = vld [vmem:[#allocation2 + $0x98] sm:$0xff]
      %v417 = vld [vmem:[#allocation2 + $0xa0] sm:$0xff]
      %v418 = vld [vmem:[#allocation2 + $0xa8] sm:$0xff]
      %v419 = vld [vmem:[#allocation2 + $0xb0] sm:$0xff]
      %v420 = vld [vmem:[#allocation2 + $0xb8] sm:$0xff]
      %v421 = vld [vmem:[#allocation2 + $0xc0] sm:$0xff]
      %v422 = vld [vmem:[#allocation2 + $0xc8] sm:$0xff]
      %v423 = vld [vmem:[#allocation2 + $0xd0] sm:$0xff]
      %v424 = vld [vmem:[#allocation2 + $0xd8] sm:$0xff]
      %v425 = vld [vmem:[#allocation2 + $0xe0] sm:$0xff]
      %v426 = vld [vmem:[#allocation2 + $0xe8] sm:$0xff]
      %v427 = vld [vmem:[#allocation2 + $0xf0] sm:$0xff]
      %v428 = vld [vmem:[#allocation2 + $0xf8] sm:$0xff]
      %v429 = vld [vmem:[%s2] sm:$0xff]
      %v430 = vld [vmem:[%s2 + $0x8] sm:$0xff]
      %v431 = vld [vmem:[%s2 + $0x10] sm:$0xff]
      %v432 = vld [vmem:[%s2 + $0x18] sm:$0xff]
      %v433 = vld [vmem:[#allocation2 + $0x1] sm:$0xff]
      %v434 = vld [vmem:[#allocation2 + $0x9] sm:$0xff]
      %v435 = vld [vmem:[#allocation2 + $0x11] sm:$0xff]
      %v436 = vld [vmem:[#allocation2 + $0x19] sm:$0xff]
      %v437 = vld [vmem:[#allocation2 + $0x21] sm:$0xff]
      %v438 = vld [vmem:[#allocation2 + $0x29] sm:$0xff]
      %v439 = vld [vmem:[#allocation2 + $0x31] sm:$0xff]
      %v440 = vld [vmem:[#allocation2 + $0x39] sm:$0xff]
      %v441 = vld [vmem:[#allocation2 + $0x41] sm:$0xff]
      %v442 = vld [vmem:[#allocation2 + $0x49] sm:$0xff]
      %v443 = vld [vmem:[#allocation2 + $0x51] sm:$0xff]
      %v444 = vld [vmem:[#allocation2 + $0x59] sm:$0xff]
      %v445 = vld [vmem:[#allocation2 + $0x61] sm:$0xff]
      %v446 = vld [vmem:[#allocation2 + $0x69] sm:$0xff]
      %v447 = vld [vmem:[#allocation2 + $0x71] sm:$0xff]
      %v448 = vld [vmem:[#allocation2 + $0x79] sm:$0xff]
      %v449 = vld [vmem:[#allocation2 + $0x81] sm:$0xff]
      %v450 = vld [vmem:[#allocation2 + $0x89] sm:$0xff]
      %v451 = vld [vmem:[#allocation2 + $0x91] sm:$0xff]
      %v452 = vld [vmem:[#allocation2 + $0x99] sm:$0xff]
      %v453 = vld [vmem:[#allocation2 + $0xa1] sm:$0xff]
      %v454 = vld [vmem:[#allocation2 + $0xa9] sm:$0xff]
      %v455 = vld [vmem:[#allocation2 + $0xb1] sm:$0xff]
      %v456 = vld [vmem:[#allocation2 + $0xb9] sm:$0xff]
      %v457 = vld [vmem:[#allocation2 + $0xc1] sm:$0xff]
      %v458 = vld [vmem:[#allocation2 + $0xc9] sm:$0xff]
      %v459 = vld [vmem:[#allocation2 + $0xd1] sm:$0xff]
      %v460 = vld [vmem:[#allocation2 + $0xd9] sm:$0xff]
      %v461 = vld [vmem:[#allocation2 + $0xe1] sm:$0xff]
      %v462 = vld [vmem:[#allocation2 + $0xe9] sm:$0xff]
      %v463 = vld [vmem:[#allocation2 + $0xf1] sm:$0xff]
      %v464 = vld [vmem:[#allocation2 + $0xf9] sm:$0xff]
      %v465 = vld [vmem:[%s2 + $0x20] sm:$0xff]
      %v466 = vld [vmem:[%s2 + $0x28] sm:$0xff]
      %v467 = vld [vmem:[%s2 + $0x30] sm:$0xff]
      %v468 = vld [vmem:[%s2 + $0x38] sm:$0xff]
      %v470 = vsel %vm348, %v433, 0
      %v473 = vsel %vm348, %v434, 0
      %v476 = vsel %vm348, %v435, 0
      %v479 = vsel %vm348, %v436, 0
      %v482 = vsel %vm348, %v437, 0
      %v485 = vsel %vm348, %v438, 0
      %v488 = vsel %vm348, %v439, 0
      %v491 = vsel %vm348, %v440, 0
      %v494 = vsel %vm348, %v441, 0
      %v497 = vsel %vm348, %v442, 0
      %v500 = vsel %vm348, %v443, 0
      %v503 = vsel %vm348, %v444, 0
      %v506 = vsel %vm348, %v445, 0
      %v509 = vsel %vm348, %v446, 0
      %v512 = vsel %vm348, %v447, 0
      %v515 = vsel %vm348, %v448, 0
      %v518 = vsel %vm348, %v449, 0
      %v521 = vsel %vm348, %v450, 0
      %v524 = vsel %vm348, %v451, 0
      %v527 = vsel %vm348, %v452, 0
      %v530 = vsel %vm348, %v453, 0
      %v533 = vsel %vm348, %v454, 0
      %v536 = vsel %vm348, %v455, 0
      %v539 = vsel %vm348, %v456, 0
      %v542 = vsel %vm348, %v457, 0
      %v545 = vsel %vm348, %v458, 0
      %v548 = vsel %vm348, %v459, 0
      %v551 = vsel %vm348, %v460, 0
      %v554 = vsel %vm348, %v461, 0
      %v557 = vsel %vm348, %v462, 0
      %v560 = vsel %vm348, %v463, 0
      %v563 = vsel %vm348, %v464, 0
      %565 = vmatpush.msra.mxu0 0.0
      %566 = vmatpush.msra.mxu0 0.0
      %567 = vmatpush.msra.mxu0 0.0
      %568 = vmatpush.msra.mxu0 0.0
      %569 = vmatpush.msra.mxu0 0.0
      %570 = vmatpush.msra.mxu0 0.0
      %571 = vmatpush.msra.mxu0 0.0
      %572 = vmatpush.msra.mxu0 0.0
      %573 = vmatpush.msra.mxu0 0.0
      %574 = vmatpush.msra.mxu0 0.0
      %575 = vmatpush.msra.mxu0 0.0
      %576 = vmatpush.msra.mxu0 0.0
      %577 = vmatpush.msra.mxu0 %v468
      %578 = vmatpush.msra.mxu0 %v467
      %579 = vmatpush.msra.mxu0 %v466
      %580 = vmatpush.msra.mxu0 %v465
      %581 = vmatmul.f32.gmra.mxu0 %v470
      %v582 = vpop.f32.mrf.mxu0
      %v583 = vadd.f32 0.0, %v582
      %584 = vmatmul.f32.gmra.mxu0 %v473
      %v585 = vpop.f32.mrf.mxu0
      %v586 = vadd.f32 0.0, %v585
      %587 = vmatmul.f32.gmra.mxu0 %v476
      %v588 = vpop.f32.mrf.mxu0
      %v589 = vadd.f32 0.0, %v588
      %590 = vmatmul.f32.gmra.mxu0 %v479
      %v591 = vpop.f32.mrf.mxu0
      %v592 = vadd.f32 0.0, %v591
      %593 = vmatmul.f32.gmra.mxu0 %v482
      %v594 = vpop.f32.mrf.mxu0
      %v595 = vadd.f32 0.0, %v594
      %596 = vmatmul.f32.gmra.mxu0 %v485
      %v597 = vpop.f32.mrf.mxu0
      %v598 = vadd.f32 0.0, %v597
      %599 = vmatmul.f32.gmra.mxu0 %v488
      %v600 = vpop.f32.mrf.mxu0
      %v601 = vadd.f32 0.0, %v600
      %602 = vmatmul.f32.gmra.mxu0 %v491
      %v603 = vpop.f32.mrf.mxu0
      %v604 = vadd.f32 0.0, %v603
      %605 = vmatmul.f32.gmra.mxu0 %v494
      %v606 = vpop.f32.mrf.mxu0
      %v607 = vadd.f32 0.0, %v606
      %608 = vmatmul.f32.gmra.mxu0 %v497
      %v609 = vpop.f32.mrf.mxu0
      %v610 = vadd.f32 0.0, %v609
      %611 = vmatmul.f32.gmra.mxu0 %v500
      %v612 = vpop.f32.mrf.mxu0
      %v613 = vadd.f32 0.0, %v612
      %614 = vmatmul.f32.gmra.mxu0 %v503
      %v615 = vpop.f32.mrf.mxu0
      %v616 = vadd.f32 0.0, %v615
      %617 = vmatmul.f32.gmra.mxu0 %v506
      %v618 = vpop.f32.mrf.mxu0
      %v619 = vadd.f32 0.0, %v618
      %620 = vmatmul.f32.gmra.mxu0 %v509
      %v621 = vpop.f32.mrf.mxu0
      %v622 = vadd.f32 0.0, %v621
      %623 = vmatmul.f32.gmra.mxu0 %v512
      %v624 = vpop.f32.mrf.mxu0
      %v625 = vadd.f32 0.0, %v624
      %626 = vmatmul.f32.gmra.mxu0 %v515
      %v627 = vpop.f32.mrf.mxu0
      %v628 = vadd.f32 0.0, %v627
      %629 = vmatmul.f32.gmra.mxu0 %v518
      %v630 = vpop.f32.mrf.mxu0
      %v631 = vadd.f32 0.0, %v630
      %632 = vmatmul.f32.gmra.mxu0 %v521
      %v633 = vpop.f32.mrf.mxu0
      %v634 = vadd.f32 0.0, %v633
      %635 = vmatmul.f32.gmra.mxu0 %v524
      %v636 = vpop.f32.mrf.mxu0
      %v637 = vadd.f32 0.0, %v636
      %638 = vmatmul.f32.gmra.mxu0 %v527
      %v639 = vpop.f32.mrf.mxu0
      %v640 = vadd.f32 0.0, %v639
      %641 = vmatmul.f32.gmra.mxu0 %v530
      %v642 = vpop.f32.mrf.mxu0
      %v643 = vadd.f32 0.0, %v642
      %644 = vmatmul.f32.gmra.mxu0 %v533
      %v645 = vpop.f32.mrf.mxu0
      %v646 = vadd.f32 0.0, %v645
      %647 = vmatmul.f32.gmra.mxu0 %v536
      %v648 = vpop.f32.mrf.mxu0
      %v649 = vadd.f32 0.0, %v648
      %650 = vmatmul.f32.gmra.mxu0 %v539
      %v651 = vpop.f32.mrf.mxu0
      %v652 = vadd.f32 0.0, %v651
      %653 = vmatmul.f32.gmra.mxu0 %v542
      %v654 = vpop.f32.mrf.mxu0
      %v655 = vadd.f32 0.0, %v654
      %656 = vmatmul.f32.gmra.mxu0 %v545
      %v657 = vpop.f32.mrf.mxu0
      %v658 = vadd.f32 0.0, %v657
      %659 = vmatmul.f32.gmra.mxu0 %v548
      %v660 = vpop.f32.mrf.mxu0
      %v661 = vadd.f32 0.0, %v660
      %662 = vmatmul.f32.gmra.mxu0 %v551
      %v663 = vpop.f32.mrf.mxu0
      %v664 = vadd.f32 0.0, %v663
      %665 = vmatmul.f32.gmra.mxu0 %v554
      %v666 = vpop.f32.mrf.mxu0
      %v667 = vadd.f32 0.0, %v666
      %668 = vmatmul.f32.gmra.mxu0 %v557
      %v669 = vpop.f32.mrf.mxu0
      %v670 = vadd.f32 0.0, %v669
      %671 = vmatmul.f32.gmra.mxu0 %v560
      %v672 = vpop.f32.mrf.mxu0
      %v673 = vadd.f32 0.0, %v672
      %674 = vmatmul.f32.gmra.mxu0 %v563
      %v675 = vpop.f32.mrf.mxu0
      %v676 = vadd.f32 0.0, %v675
      %677 = vdwg.mxu0
      %v679 = vsel %vm348, %v397, 0
      %v682 = vsel %vm348, %v398, 0
      %v685 = vsel %vm348, %v399, 0
      %v688 = vsel %vm348, %v400, 0
      %v691 = vsel %vm348, %v401, 0
      %v694 = vsel %vm348, %v402, 0
      %v697 = vsel %vm348, %v403, 0
      %v700 = vsel %vm348, %v404, 0
      %v703 = vsel %vm348, %v405, 0
      %v706 = vsel %vm348, %v406, 0
      %v709 = vsel %vm348, %v407, 0
      %v712 = vsel %vm348, %v408, 0
      %v715 = vsel %vm348, %v409, 0
      %v718 = vsel %vm348, %v410, 0
      %v721 = vsel %vm348, %v411, 0
      %v724 = vsel %vm348, %v412, 0
      %v727 = vsel %vm348, %v413, 0
      %v730 = vsel %vm348, %v414, 0
      %v733 = vsel %vm348, %v415, 0
      %v736 = vsel %vm348, %v416, 0
      %v739 = vsel %vm348, %v417, 0
      %v742 = vsel %vm348, %v418, 0
      %v745 = vsel %vm348, %v419, 0
      %v748 = vsel %vm348, %v420, 0
      %v751 = vsel %vm348, %v421, 0
      %v754 = vsel %vm348, %v422, 0
      %v757 = vsel %vm348, %v423, 0
      %v760 = vsel %vm348, %v424, 0
      %v763 = vsel %vm348, %v425, 0
      %v766 = vsel %vm348, %v426, 0
      %v769 = vsel %vm348, %v427, 0
      %v772 = vsel %vm348, %v428, 0
      %774 = vmatpush.msra.mxu0 0.0
      %775 = vmatpush.msra.mxu0 0.0
      %776 = vmatpush.msra.mxu0 0.0
      %777 = vmatpush.msra.mxu0 0.0
      %778 = vmatpush.msra.mxu0 0.0
      %779 = vmatpush.msra.mxu0 0.0
      %780 = vmatpush.msra.mxu0 0.0
      %781 = vmatpush.msra.mxu0 0.0
      %782 = vmatpush.msra.mxu0 0.0
      %783 = vmatpush.msra.mxu0 0.0
      %784 = vmatpush.msra.mxu0 0.0
      %785 = vmatpush.msra.mxu0 0.0
      %786 = vmatpush.msra.mxu0 %v432
      %787 = vmatpush.msra.mxu0 %v431
      %788 = vmatpush.msra.mxu0 %v430
      %789 = vmatpush.msra.mxu0 %v429
      %790 = vmatmul.f32.gmra.mxu0 %v679
      %v791 = vpop.f32.mrf.mxu0
      %v792 = vadd.f32 %v583, %v791
      %793 = vmatmul.f32.gmra.mxu0 %v682
      %v794 = vpop.f32.mrf.mxu0
      %v795 = vadd.f32 %v586, %v794
      %796 = vmatmul.f32.gmra.mxu0 %v685
      %v797 = vpop.f32.mrf.mxu0
      %v798 = vadd.f32 %v589, %v797
      %799 = vmatmul.f32.gmra.mxu0 %v688
      %v800 = vpop.f32.mrf.mxu0
      %v801 = vadd.f32 %v592, %v800
      %802 = vmatmul.f32.gmra.mxu0 %v691
      %v803 = vpop.f32.mrf.mxu0
      %v804 = vadd.f32 %v595, %v803
      %805 = vmatmul.f32.gmra.mxu0 %v694
      %v806 = vpop.f32.mrf.mxu0
      %v807 = vadd.f32 %v598, %v806
      %808 = vmatmul.f32.gmra.mxu0 %v697
      %v809 = vpop.f32.mrf.mxu0
      %v810 = vadd.f32 %v601, %v809
      %811 = vmatmul.f32.gmra.mxu0 %v700
      %v812 = vpop.f32.mrf.mxu0
      %v813 = vadd.f32 %v604, %v812
      %814 = vmatmul.f32.gmra.mxu0 %v703
      %v815 = vpop.f32.mrf.mxu0
      %v816 = vadd.f32 %v607, %v815
      %817 = vmatmul.f32.gmra.mxu0 %v706
      %v818 = vpop.f32.mrf.mxu0
      %v819 = vadd.f32 %v610, %v818
      %820 = vmatmul.f32.gmra.mxu0 %v709
      %v821 = vpop.f32.mrf.mxu0
      %v822 = vadd.f32 %v613, %v821
      %823 = vmatmul.f32.gmra.mxu0 %v712
      %v824 = vpop.f32.mrf.mxu0
      %v825 = vadd.f32 %v616, %v824
      %826 = vmatmul.f32.gmra.mxu0 %v715
      %v827 = vpop.f32.mrf.mxu0
      %v828 = vadd.f32 %v619, %v827
      %829 = vmatmul.f32.gmra.mxu0 %v718
      %v830 = vpop.f32.mrf.mxu0
      %v831 = vadd.f32 %v622, %v830
      %832 = vmatmul.f32.gmra.mxu0 %v721
      %v833 = vpop.f32.mrf.mxu0
      %v834 = vadd.f32 %v625, %v833
      %835 = vmatmul.f32.gmra.mxu0 %v724
      %v836 = vpop.f32.mrf.mxu0
      %v837 = vadd.f32 %v628, %v836
      %838 = vmatmul.f32.gmra.mxu0 %v727
      %v839 = vpop.f32.mrf.mxu0
      %v840 = vadd.f32 %v631, %v839
      %841 = vmatmul.f32.gmra.mxu0 %v730
      %v842 = vpop.f32.mrf.mxu0
      %v843 = vadd.f32 %v634, %v842
      %844 = vmatmul.f32.gmra.mxu0 %v733
      %v845 = vpop.f32.mrf.mxu0
      %v846 = vadd.f32 %v637, %v845
      %847 = vmatmul.f32.gmra.mxu0 %v736
      %v848 = vpop.f32.mrf.mxu0
      %v849 = vadd.f32 %v640, %v848
      %850 = vmatmul.f32.gmra.mxu0 %v739
      %v851 = vpop.f32.mrf.mxu0
      %v852 = vadd.f32 %v643, %v851
      %853 = vmatmul.f32.gmra.mxu0 %v742
      %v854 = vpop.f32.mrf.mxu0
      %v855 = vadd.f32 %v646, %v854
      %856 = vmatmul.f32.gmra.mxu0 %v745
      %v857 = vpop.f32.mrf.mxu0
      %v858 = vadd.f32 %v649, %v857
      %859 = vmatmul.f32.gmra.mxu0 %v748
      %v860 = vpop.f32.mrf.mxu0
      %v861 = vadd.f32 %v652, %v860
      %862 = vmatmul.f32.gmra.mxu0 %v751
      %v863 = vpop.f32.mrf.mxu0
      %v864 = vadd.f32 %v655, %v863
      %865 = vmatmul.f32.gmra.mxu0 %v754
      %v866 = vpop.f32.mrf.mxu0
      %v867 = vadd.f32 %v658, %v866
      %868 = vmatmul.f32.gmra.mxu0 %v757
      %v869 = vpop.f32.mrf.mxu0
      %v870 = vadd.f32 %v661, %v869
      %871 = vmatmul.f32.gmra.mxu0 %v760
      %v872 = vpop.f32.mrf.mxu0
      %v873 = vadd.f32 %v664, %v872
      %874 = vmatmul.f32.gmra.mxu0 %v763
      %v875 = vpop.f32.mrf.mxu0
      %v876 = vadd.f32 %v667, %v875
      %877 = vmatmul.f32.gmra.mxu0 %v766
      %v878 = vpop.f32.mrf.mxu0
      %v879 = vadd.f32 %v670, %v878
      %880 = vmatmul.f32.gmra.mxu0 %v769
      %v881 = vpop.f32.mrf.mxu0
      %v882 = vadd.f32 %v673, %v881
      %883 = vmatmul.f32.gmra.mxu0 %v772
      %v884 = vpop.f32.mrf.mxu0
      %v885 = vadd.f32 %v676, %v884
      %886 = vdwg.mxu0
      %v887 = vld [vmem:[#allocation2 + $0x2] sm:$0xff]
      %v888 = vld [vmem:[#allocation2 + $0xa] sm:$0xff]
      %v889 = vld [vmem:[#allocation2 + $0x12] sm:$0xff]
      %v890 = vld [vmem:[#allocation2 + $0x1a] sm:$0xff]
      %v891 = vld [vmem:[#allocation2 + $0x22] sm:$0xff]
      %v892 = vld [vmem:[#allocation2 + $0x2a] sm:$0xff]
      %v893 = vld [vmem:[#allocation2 + $0x32] sm:$0xff]
      %v894 = vld [vmem:[#allocation2 + $0x3a] sm:$0xff]
      %v895 = vld [vmem:[#allocation2 + $0x42] sm:$0xff]
      %v896 = vld [vmem:[#allocation2 + $0x4a] sm:$0xff]
      %v897 = vld [vmem:[#allocation2 + $0x52] sm:$0xff]
      %v898 = vld [vmem:[#allocation2 + $0x5a] sm:$0xff]
      %v899 = vld [vmem:[#allocation2 + $0x62] sm:$0xff]
      %v900 = vld [vmem:[#allocation2 + $0x6a] sm:$0xff]
      %v901 = vld [vmem:[#allocation2 + $0x72] sm:$0xff]
      %v902 = vld [vmem:[#allocation2 + $0x7a] sm:$0xff]
      %v903 = vld [vmem:[#allocation2 + $0x82] sm:$0xff]
      %v904 = vld [vmem:[#allocation2 + $0x8a] sm:$0xff]
      %v905 = vld [vmem:[#allocation2 + $0x92] sm:$0xff]
      %v906 = vld [vmem:[#allocation2 + $0x9a] sm:$0xff]
      %v907 = vld [vmem:[#allocation2 + $0xa2] sm:$0xff]
      %v908 = vld [vmem:[#allocation2 + $0xaa] sm:$0xff]
      %v909 = vld [vmem:[#allocation2 + $0xb2] sm:$0xff]
      %v910 = vld [vmem:[#allocation2 + $0xba] sm:$0xff]
      %v911 = vld [vmem:[#allocation2 + $0xc2] sm:$0xff]
      %v912 = vld [vmem:[#allocation2 + $0xca] sm:$0xff]
      %v913 = vld [vmem:[#allocation2 + $0xd2] sm:$0xff]
      %v914 = vld [vmem:[#allocation2 + $0xda] sm:$0xff]
      %v915 = vld [vmem:[#allocation2 + $0xe2] sm:$0xff]
      %v916 = vld [vmem:[#allocation2 + $0xea] sm:$0xff]
      %v917 = vld [vmem:[#allocation2 + $0xf2] sm:$0xff]
      %v918 = vld [vmem:[#allocation2 + $0xfa] sm:$0xff]
      %v919 = vld [vmem:[%s2 + $0x40] sm:$0xff]
      %v920 = vld [vmem:[%s2 + $0x48] sm:$0xff]
      %v921 = vld [vmem:[%s2 + $0x50] sm:$0xff]
      %v922 = vld [vmem:[%s2 + $0x58] sm:$0xff]
      %v924 = vsel %vm348, %v887, 0
      %v927 = vsel %vm348, %v888, 0
      %v930 = vsel %vm348, %v889, 0
      %v933 = vsel %vm348, %v890, 0
      %v936 = vsel %vm348, %v891, 0
      %v939 = vsel %vm348, %v892, 0
      %v942 = vsel %vm348, %v893, 0
      %v945 = vsel %vm348, %v894, 0
      %v948 = vsel %vm348, %v895, 0
      %v951 = vsel %vm348, %v896, 0
      %v954 = vsel %vm348, %v897, 0
      %v957 = vsel %vm348, %v898, 0
      %v960 = vsel %vm348, %v899, 0
      %v963 = vsel %vm348, %v900, 0
      %v966 = vsel %vm348, %v901, 0
      %v969 = vsel %vm348, %v902, 0
      %v972 = vsel %vm348, %v903, 0
      %v975 = vsel %vm348, %v904, 0
      %v978 = vsel %vm348, %v905, 0
      %v981 = vsel %vm348, %v906, 0
      %v984 = vsel %vm348, %v907, 0
      %v987 = vsel %vm348, %v908, 0
      %v990 = vsel %vm348, %v909, 0
      %v993 = vsel %vm348, %v910, 0
      %v996 = vsel %vm348, %v911, 0
      %v999 = vsel %vm348, %v912, 0
      %v1002 = vsel %vm348, %v913, 0
      %v1005 = vsel %vm348, %v914, 0
      %v1008 = vsel %vm348, %v915, 0
      %v1011 = vsel %vm348, %v916, 0
      %v1014 = vsel %vm348, %v917, 0
      %v1017 = vsel %vm348, %v918, 0
      %1019 = vmatpush.msra.mxu0 0.0
      %1020 = vmatpush.msra.mxu0 0.0
      %1021 = vmatpush.msra.mxu0 0.0
      %1022 = vmatpush.msra.mxu0 0.0
      %1023 = vmatpush.msra.mxu0 0.0
      %1024 = vmatpush.msra.mxu0 0.0
      %1025 = vmatpush.msra.mxu0 0.0
      %1026 = vmatpush.msra.mxu0 0.0
      %1027 = vmatpush.msra.mxu0 0.0
      %1028 = vmatpush.msra.mxu0 0.0
      %1029 = vmatpush.msra.mxu0 0.0
      %1030 = vmatpush.msra.mxu0 0.0
      %1031 = vmatpush.msra.mxu0 %v922
      %1032 = vmatpush.msra.mxu0 %v921
      %1033 = vmatpush.msra.mxu0 %v920
      %1034 = vmatpush.msra.mxu0 %v919
      %1035 = vmatmul.f32.gmra.mxu0 %v924
      %v1036 = vpop.f32.mrf.mxu0
      %v1037 = vadd.f32 0.0, %v1036
      %1038 = vmatmul.f32.gmra.mxu0 %v927
      %v1039 = vpop.f32.mrf.mxu0
      %v1040 = vadd.f32 0.0, %v1039
      %1041 = vmatmul.f32.gmra.mxu0 %v930
      %v1042 = vpop.f32.mrf.mxu0
      %v1043 = vadd.f32 0.0, %v1042
      %1044 = vmatmul.f32.gmra.mxu0 %v933
      %v1045 = vpop.f32.mrf.mxu0
      %v1046 = vadd.f32 0.0, %v1045
      %1047 = vmatmul.f32.gmra.mxu0 %v936
      %v1048 = vpop.f32.mrf.mxu0
      %v1049 = vadd.f32 0.0, %v1048
      %1050 = vmatmul.f32.gmra.mxu0 %v939
      %v1051 = vpop.f32.mrf.mxu0
      %v1052 = vadd.f32 0.0, %v1051
      %1053 = vmatmul.f32.gmra.mxu0 %v942
      %v1054 = vpop.f32.mrf.mxu0
      %v1055 = vadd.f32 0.0, %v1054
      %1056 = vmatmul.f32.gmra.mxu0 %v945
      %v1057 = vpop.f32.mrf.mxu0
      %v1058 = vadd.f32 0.0, %v1057
      %1059 = vmatmul.f32.gmra.mxu0 %v948
      %v1060 = vpop.f32.mrf.mxu0
      %v1061 = vadd.f32 0.0, %v1060
      %1062 = vmatmul.f32.gmra.mxu0 %v951
      %v1063 = vpop.f32.mrf.mxu0
      %v1064 = vadd.f32 0.0, %v1063
      %1065 = vmatmul.f32.gmra.mxu0 %v954
      %v1066 = vpop.f32.mrf.mxu0
      %v1067 = vadd.f32 0.0, %v1066
      %1068 = vmatmul.f32.gmra.mxu0 %v957
      %v1069 = vpop.f32.mrf.mxu0
      %v1070 = vadd.f32 0.0, %v1069
      %1071 = vmatmul.f32.gmra.mxu0 %v960
      %v1072 = vpop.f32.mrf.mxu0
      %v1073 = vadd.f32 0.0, %v1072
      %1074 = vmatmul.f32.gmra.mxu0 %v963
      %v1075 = vpop.f32.mrf.mxu0
      %v1076 = vadd.f32 0.0, %v1075
      %1077 = vmatmul.f32.gmra.mxu0 %v966
      %v1078 = vpop.f32.mrf.mxu0
      %v1079 = vadd.f32 0.0, %v1078
      %1080 = vmatmul.f32.gmra.mxu0 %v969
      %v1081 = vpop.f32.mrf.mxu0
      %v1082 = vadd.f32 0.0, %v1081
      %1083 = vmatmul.f32.gmra.mxu0 %v972
      %v1084 = vpop.f32.mrf.mxu0
      %v1085 = vadd.f32 0.0, %v1084
      %1086 = vmatmul.f32.gmra.mxu0 %v975
      %v1087 = vpop.f32.mrf.mxu0
      %v1088 = vadd.f32 0.0, %v1087
      %1089 = vmatmul.f32.gmra.mxu0 %v978
      %v1090 = vpop.f32.mrf.mxu0
      %v1091 = vadd.f32 0.0, %v1090
      %1092 = vmatmul.f32.gmra.mxu0 %v981
      %v1093 = vpop.f32.mrf.mxu0
      %v1094 = vadd.f32 0.0, %v1093
      %1095 = vmatmul.f32.gmra.mxu0 %v984
      %v1096 = vpop.f32.mrf.mxu0
      %v1097 = vadd.f32 0.0, %v1096
      %1098 = vmatmul.f32.gmra.mxu0 %v987
      %v1099 = vpop.f32.mrf.mxu0
      %v1100 = vadd.f32 0.0, %v1099
      %1101 = vmatmul.f32.gmra.mxu0 %v990
      %v1102 = vpop.f32.mrf.mxu0
      %v1103 = vadd.f32 0.0, %v1102
      %1104 = vmatmul.f32.gmra.mxu0 %v993
      %v1105 = vpop.f32.mrf.mxu0
      %v1106 = vadd.f32 0.0, %v1105
      %1107 = vmatmul.f32.gmra.mxu0 %v996
      %v1108 = vpop.f32.mrf.mxu0
      %v1109 = vadd.f32 0.0, %v1108
      %1110 = vmatmul.f32.gmra.mxu0 %v999
      %v1111 = vpop.f32.mrf.mxu0
      %v1112 = vadd.f32 0.0, %v1111
      %1113 = vmatmul.f32.gmra.mxu0 %v1002
      %v1114 = vpop.f32.mrf.mxu0
      %v1115 = vadd.f32 0.0, %v1114
      %1116 = vmatmul.f32.gmra.mxu0 %v1005
      %v1117 = vpop.f32.mrf.mxu0
      %v1118 = vadd.f32 0.0, %v1117
      %1119 = vmatmul.f32.gmra.mxu0 %v1008
      %v1120 = vpop.f32.mrf.mxu0
      %v1121 = vadd.f32 0.0, %v1120
      %1122 = vmatmul.f32.gmra.mxu0 %v1011
      %v1123 = vpop.f32.mrf.mxu0
      %v1124 = vadd.f32 0.0, %v1123
      %1125 = vmatmul.f32.gmra.mxu0 %v1014
      %v1126 = vpop.f32.mrf.mxu0
      %v1127 = vadd.f32 0.0, %v1126
      %1128 = vmatmul.f32.gmra.mxu0 %v1017
      %v1129 = vpop.f32.mrf.mxu0
      %v1130 = vadd.f32 0.0, %v1129
      %1131 = vdwg.mxu0
      %v1132 = vadd.f32 %v792, %v1037
      %v1133 = vadd.f32 %v795, %v1040
      %v1134 = vadd.f32 %v798, %v1043
      %v1135 = vadd.f32 %v801, %v1046
      %v1136 = vadd.f32 %v804, %v1049
      %v1137 = vadd.f32 %v807, %v1052
      %v1138 = vadd.f32 %v810, %v1055
      %v1139 = vadd.f32 %v813, %v1058
      %v1140 = vadd.f32 %v816, %v1061
      %v1141 = vadd.f32 %v819, %v1064
      %v1142 = vadd.f32 %v822, %v1067
      %v1143 = vadd.f32 %v825, %v1070
      %v1144 = vadd.f32 %v828, %v1073
      %v1145 = vadd.f32 %v831, %v1076
      %v1146 = vadd.f32 %v834, %v1079
      %v1147 = vadd.f32 %v837, %v1082
      %v1148 = vadd.f32 %v840, %v1085
      %v1149 = vadd.f32 %v843, %v1088
      %v1150 = vadd.f32 %v846, %v1091
      %v1151 = vadd.f32 %v849, %v1094
      %v1152 = vadd.f32 %v852, %v1097
      %v1153 = vadd.f32 %v855, %v1100
      %v1154 = vadd.f32 %v858, %v1103
      %v1155 = vadd.f32 %v861, %v1106
      %v1156 = vadd.f32 %v864, %v1109
      %v1157 = vadd.f32 %v867, %v1112
      %v1158 = vadd.f32 %v870, %v1115
      %v1159 = vadd.f32 %v873, %v1118
      %v1160 = vadd.f32 %v876, %v1121
      %v1161 = vadd.f32 %v879, %v1124
      %v1162 = vadd.f32 %v882, %v1127
      %v1163 = vadd.f32 %v885, %v1130
      %v1164 = vld [vmem:[#allocation2 + $0x12] sm:$0xff]
      %v1165 = vld [vmem:[#allocation2 + $0x1a] sm:$0xff]
      %v1166 = vld [vmem:[#allocation2 + $0x22] sm:$0xff]
      %v1167 = vld [vmem:[#allocation2 + $0x2a] sm:$0xff]
      %v1168 = vld [vmem:[#allocation2 + $0x32] sm:$0xff]
      %v1169 = vld [vmem:[#allocation2 + $0x3a] sm:$0xff]
      %v1170 = vld [vmem:[#allocation2 + $0x42] sm:$0xff]
      %v1171 = vld [vmem:[#allocation2 + $0x4a] sm:$0xff]
      %v1172 = vld [vmem:[#allocation2 + $0x52] sm:$0xff]
      %v1173 = vld [vmem:[#allocation2 + $0x5a] sm:$0xff]
      %v1174 = vld [vmem:[#allocation2 + $0x62] sm:$0xff]
      %v1175 = vld [vmem:[#allocation2 + $0x6a] sm:$0xff]
      %v1176 = vld [vmem:[#allocation2 + $0x72] sm:$0xff]
      %v1177 = vld [vmem:[#allocation2 + $0x7a] sm:$0xff]
      %v1178 = vld [vmem:[#allocation2 + $0x82] sm:$0xff]
      %v1179 = vld [vmem:[#allocation2 + $0x8a] sm:$0xff]
      %v1180 = vld [vmem:[#allocation2 + $0x92] sm:$0xff]
      %v1181 = vld [vmem:[#allocation2 + $0x9a] sm:$0xff]
      %v1182 = vld [vmem:[#allocation2 + $0xa2] sm:$0xff]
      %v1183 = vld [vmem:[#allocation2 + $0xaa] sm:$0xff]
      %v1184 = vld [vmem:[#allocation2 + $0xb2] sm:$0xff]
      %v1185 = vld [vmem:[#allocation2 + $0xba] sm:$0xff]
      %v1186 = vld [vmem:[#allocation2 + $0xc2] sm:$0xff]
      %v1187 = vld [vmem:[#allocation2 + $0xca] sm:$0xff]
      %v1188 = vld [vmem:[#allocation2 + $0xd2] sm:$0xff]
      %v1189 = vld [vmem:[#allocation2 + $0xda] sm:$0xff]
      %v1190 = vld [vmem:[#allocation2 + $0xe2] sm:$0xff]
      %v1191 = vld [vmem:[#allocation2 + $0xea] sm:$0xff]
      %v1192 = vld [vmem:[#allocation2 + $0xf2] sm:$0xff]
      %v1193 = vld [vmem:[#allocation2 + $0xfa] sm:$0xff]
      %v1194 = vld [vmem:[#allocation2 + $0x102] sm:$0xff]
      %v1195 = vld [vmem:[#allocation2 + $0x10a] sm:$0xff]
      %v1196 = vld [vmem:[%s2 + $0x60] sm:$0xff]
      %v1197 = vld [vmem:[%s2 + $0x68] sm:$0xff]
      %v1198 = vld [vmem:[%s2 + $0x70] sm:$0xff]
      %v1199 = vld [vmem:[%s2 + $0x78] sm:$0xff]
      %v1201 = vsel %vm348, %v1164, 0
      %v1204 = vsel %vm348, %v1165, 0
      %v1207 = vsel %vm348, %v1166, 0
      %v1210 = vsel %vm348, %v1167, 0
      %v1213 = vsel %vm348, %v1168, 0
      %v1216 = vsel %vm348, %v1169, 0
      %v1219 = vsel %vm348, %v1170, 0
      %v1222 = vsel %vm348, %v1171, 0
      %v1225 = vsel %vm348, %v1172, 0
      %v1228 = vsel %vm348, %v1173, 0
      %v1231 = vsel %vm348, %v1174, 0
      %v1234 = vsel %vm348, %v1175, 0
      %v1237 = vsel %vm348, %v1176, 0
      %v1240 = vsel %vm348, %v1177, 0
      %v1243 = vsel %vm348, %v1178, 0
      %v1246 = vsel %vm348, %v1179, 0
      %v1249 = vsel %vm348, %v1180, 0
      %v1252 = vsel %vm348, %v1181, 0
      %v1255 = vsel %vm348, %v1182, 0
      %v1258 = vsel %vm348, %v1183, 0
      %v1261 = vsel %vm348, %v1184, 0
      %v1264 = vsel %vm348, %v1185, 0
      %v1267 = vsel %vm348, %v1186, 0
      %v1270 = vsel %vm348, %v1187, 0
      %v1273 = vsel %vm348, %v1188, 0
      %v1276 = vsel %vm348, %v1189, 0
      %v1279 = vsel %vm348, %v1190, 0
      %v1282 = vsel %vm348, %v1191, 0
      %v1285 = vsel %vm348, %v1192, 0
      %v1288 = vsel %vm348, %v1193, 0
      %v1291 = vsel %vm348, %v1194, 0
      %v1294 = vsel %vm348, %v1195, 0
      %1296 = vmatpush.msra.mxu0 0.0
      %1297 = vmatpush.msra.mxu0 0.0
      %1298 = vmatpush.msra.mxu0 0.0
      %1299 = vmatpush.msra.mxu0 0.0
      %1300 = vmatpush.msra.mxu0 0.0
      %1301 = vmatpush.msra.mxu0 0.0
      %1302 = vmatpush.msra.mxu0 0.0
      %1303 = vmatpush.msra.mxu0 0.0
      %1304 = vmatpush.msra.mxu0 0.0
      %1305 = vmatpush.msra.mxu0 0.0
      %1306 = vmatpush.msra.mxu0 0.0
      %1307 = vmatpush.msra.mxu0 0.0
      %1308 = vmatpush.msra.mxu0 %v1199
      %1309 = vmatpush.msra.mxu0 %v1198
      %1310 = vmatpush.msra.mxu0 %v1197
      %1311 = vmatpush.msra.mxu0 %v1196
      %1312 = vmatmul.f32.gmra.mxu0 %v1201
      %v1313 = vpop.f32.mrf.mxu0
      %v1314 = vadd.f32 0.0, %v1313
      %1315 = vmatmul.f32.gmra.mxu0 %v1204
      %v1316 = vpop.f32.mrf.mxu0
      %v1317 = vadd.f32 0.0, %v1316
      %1318 = vmatmul.f32.gmra.mxu0 %v1207
      %v1319 = vpop.f32.mrf.mxu0
      %v1320 = vadd.f32 0.0, %v1319
      %1321 = vmatmul.f32.gmra.mxu0 %v1210
      %v1322 = vpop.f32.mrf.mxu0
      %v1323 = vadd.f32 0.0, %v1322
      %1324 = vmatmul.f32.gmra.mxu0 %v1213
      %v1325 = vpop.f32.mrf.mxu0
      %v1326 = vadd.f32 0.0, %v1325
      %1327 = vmatmul.f32.gmra.mxu0 %v1216
      %v1328 = vpop.f32.mrf.mxu0
      %v1329 = vadd.f32 0.0, %v1328
      %1330 = vmatmul.f32.gmra.mxu0 %v1219
      %v1331 = vpop.f32.mrf.mxu0
      %v1332 = vadd.f32 0.0, %v1331
      %1333 = vmatmul.f32.gmra.mxu0 %v1222
      %v1334 = vpop.f32.mrf.mxu0
      %v1335 = vadd.f32 0.0, %v1334
      %1336 = vmatmul.f32.gmra.mxu0 %v1225
      %v1337 = vpop.f32.mrf.mxu0
      %v1338 = vadd.f32 0.0, %v1337
      %1339 = vmatmul.f32.gmra.mxu0 %v1228
      %v1340 = vpop.f32.mrf.mxu0
      %v1341 = vadd.f32 0.0, %v1340
      %1342 = vmatmul.f32.gmra.mxu0 %v1231
      %v1343 = vpop.f32.mrf.mxu0
      %v1344 = vadd.f32 0.0, %v1343
      %1345 = vmatmul.f32.gmra.mxu0 %v1234
      %v1346 = vpop.f32.mrf.mxu0
      %v1347 = vadd.f32 0.0, %v1346
      %1348 = vmatmul.f32.gmra.mxu0 %v1237
      %v1349 = vpop.f32.mrf.mxu0
      %v1350 = vadd.f32 0.0, %v1349
      %1351 = vmatmul.f32.gmra.mxu0 %v1240
      %v1352 = vpop.f32.mrf.mxu0
      %v1353 = vadd.f32 0.0, %v1352
      %1354 = vmatmul.f32.gmra.mxu0 %v1243
      %v1355 = vpop.f32.mrf.mxu0
      %v1356 = vadd.f32 0.0, %v1355
      %1357 = vmatmul.f32.gmra.mxu0 %v1246
      %v1358 = vpop.f32.mrf.mxu0
      %v1359 = vadd.f32 0.0, %v1358
      %1360 = vmatmul.f32.gmra.mxu0 %v1249
      %v1361 = vpop.f32.mrf.mxu0
      %v1362 = vadd.f32 0.0, %v1361
      %1363 = vmatmul.f32.gmra.mxu0 %v1252
      %v1364 = vpop.f32.mrf.mxu0
      %v1365 = vadd.f32 0.0, %v1364
      %1366 = vmatmul.f32.gmra.mxu0 %v1255
      %v1367 = vpop.f32.mrf.mxu0
      %v1368 = vadd.f32 0.0, %v1367
      %1369 = vmatmul.f32.gmra.mxu0 %v1258
      %v1370 = vpop.f32.mrf.mxu0
      %v1371 = vadd.f32 0.0, %v1370
      %1372 = vmatmul.f32.gmra.mxu0 %v1261
      %v1373 = vpop.f32.mrf.mxu0
      %v1374 = vadd.f32 0.0, %v1373
      %1375 = vmatmul.f32.gmra.mxu0 %v1264
      %v1376 = vpop.f32.mrf.mxu0
      %v1377 = vadd.f32 0.0, %v1376
      %1378 = vmatmul.f32.gmra.mxu0 %v1267
      %v1379 = vpop.f32.mrf.mxu0
      %v1380 = vadd.f32 0.0, %v1379
      %1381 = vmatmul.f32.gmra.mxu0 %v1270
      %v1382 = vpop.f32.mrf.mxu0
      %v1383 = vadd.f32 0.0, %v1382
      %1384 = vmatmul.f32.gmra.mxu0 %v1273
      %v1385 = vpop.f32.mrf.mxu0
      %v1386 = vadd.f32 0.0, %v1385
      %1387 = vmatmul.f32.gmra.mxu0 %v1276
      %v1388 = vpop.f32.mrf.mxu0
      %v1389 = vadd.f32 0.0, %v1388
      %1390 = vmatmul.f32.gmra.mxu0 %v1279
      %v1391 = vpop.f32.mrf.mxu0
      %v1392 = vadd.f32 0.0, %v1391
      %1393 = vmatmul.f32.gmra.mxu0 %v1282
      %v1394 = vpop.f32.mrf.mxu0
      %v1395 = vadd.f32 0.0, %v1394
      %1396 = vmatmul.f32.gmra.mxu0 %v1285
      %v1397 = vpop.f32.mrf.mxu0
      %v1398 = vadd.f32 0.0, %v1397
      %1399 = vmatmul.f32.gmra.mxu0 %v1288
      %v1400 = vpop.f32.mrf.mxu0
      %v1401 = vadd.f32 0.0, %v1400
      %1402 = vmatmul.f32.gmra.mxu0 %v1291
      %v1403 = vpop.f32.mrf.mxu0
      %v1404 = vadd.f32 0.0, %v1403
      %1405 = vmatmul.f32.gmra.mxu0 %v1294
      %v1406 = vpop.f32.mrf.mxu0
      %v1407 = vadd.f32 0.0, %v1406
      %1408 = vdwg.mxu0
      %v1409 = vadd.f32 %v1132, %v1314
      %v1410 = vadd.f32 %v1133, %v1317
      %v1411 = vadd.f32 %v1134, %v1320
      %v1412 = vadd.f32 %v1135, %v1323
      %v1413 = vadd.f32 %v1136, %v1326
      %v1414 = vadd.f32 %v1137, %v1329
      %v1415 = vadd.f32 %v1138, %v1332
      %v1416 = vadd.f32 %v1139, %v1335
      %v1417 = vadd.f32 %v1140, %v1338
      %v1418 = vadd.f32 %v1141, %v1341
      %v1419 = vadd.f32 %v1142, %v1344
      %v1420 = vadd.f32 %v1143, %v1347
      %v1421 = vadd.f32 %v1144, %v1350
      %v1422 = vadd.f32 %v1145, %v1353
      %v1423 = vadd.f32 %v1146, %v1356
      %v1424 = vadd.f32 %v1147, %v1359
      %v1425 = vadd.f32 %v1148, %v1362
      %v1426 = vadd.f32 %v1149, %v1365
      %v1427 = vadd.f32 %v1150, %v1368
      %v1428 = vadd.f32 %v1151, %v1371
      %v1429 = vadd.f32 %v1152, %v1374
      %v1430 = vadd.f32 %v1153, %v1377
      %v1431 = vadd.f32 %v1154, %v1380
      %v1432 = vadd.f32 %v1155, %v1383
      %v1433 = vadd.f32 %v1156, %v1386
      %v1434 = vadd.f32 %v1157, %v1389
      %v1435 = vadd.f32 %v1158, %v1392
      %v1436 = vadd.f32 %v1159, %v1395
      %v1437 = vadd.f32 %v1160, %v1398
      %v1438 = vadd.f32 %v1161, %v1401
      %v1439 = vadd.f32 %v1162, %v1404
      %v1440 = vadd.f32 %v1163, %v1407
      %v1441 = vld [vmem:[#allocation2 + $0x13] sm:$0xff]
      %v1442 = vld [vmem:[#allocation2 + $0x1b] sm:$0xff]
      %v1443 = vld [vmem:[#allocation2 + $0x23] sm:$0xff]
      %v1444 = vld [vmem:[#allocation2 + $0x2b] sm:$0xff]
      %v1445 = vld [vmem:[#allocation2 + $0x33] sm:$0xff]
      %v1446 = vld [vmem:[#allocation2 + $0x3b] sm:$0xff]
      %v1447 = vld [vmem:[#allocation2 + $0x43] sm:$0xff]
      %v1448 = vld [vmem:[#allocation2 + $0x4b] sm:$0xff]
      %v1449 = vld [vmem:[#allocation2 + $0x53] sm:$0xff]
      %v1450 = vld [vmem:[#allocation2 + $0x5b] sm:$0xff]
      %v1451 = vld [vmem:[#allocation2 + $0x63] sm:$0xff]
      %v1452 = vld [vmem:[#allocation2 + $0x6b] sm:$0xff]
      %v1453 = vld [vmem:[#allocation2 + $0x73] sm:$0xff]
      %v1454 = vld [vmem:[#allocation2 + $0x7b] sm:$0xff]
      %v1455 = vld [vmem:[#allocation2 + $0x83] sm:$0xff]
      %v1456 = vld [vmem:[#allocation2 + $0x8b] sm:$0xff]
      %v1457 = vld [vmem:[#allocation2 + $0x93] sm:$0xff]
      %v1458 = vld [vmem:[#allocation2 + $0x9b] sm:$0xff]
      %v1459 = vld [vmem:[#allocation2 + $0xa3] sm:$0xff]
      %v1460 = vld [vmem:[#allocation2 + $0xab] sm:$0xff]
      %v1461 = vld [vmem:[#allocation2 + $0xb3] sm:$0xff]
      %v1462 = vld [vmem:[#allocation2 + $0xbb] sm:$0xff]
      %v1463 = vld [vmem:[#allocation2 + $0xc3] sm:$0xff]
      %v1464 = vld [vmem:[#allocation2 + $0xcb] sm:$0xff]
      %v1465 = vld [vmem:[#allocation2 + $0xd3] sm:$0xff]
      %v1466 = vld [vmem:[#allocation2 + $0xdb] sm:$0xff]
      %v1467 = vld [vmem:[#allocation2 + $0xe3] sm:$0xff]
      %v1468 = vld [vmem:[#allocation2 + $0xeb] sm:$0xff]
      %v1469 = vld [vmem:[#allocation2 + $0xf3] sm:$0xff]
      %v1470 = vld [vmem:[#allocation2 + $0xfb] sm:$0xff]
      %v1471 = vld [vmem:[#allocation2 + $0x103] sm:$0xff]
      %v1472 = vld [vmem:[#allocation2 + $0x10b] sm:$0xff]
      %v1473 = vld [vmem:[%s2 + $0x80] sm:$0xff]
      %v1474 = vld [vmem:[%s2 + $0x88] sm:$0xff]
      %v1475 = vld [vmem:[%s2 + $0x90] sm:$0xff]
      %v1476 = vld [vmem:[%s2 + $0x98] sm:$0xff]
      %v1478 = vsel %vm348, %v1441, 0
      %v1481 = vsel %vm348, %v1442, 0
      %v1484 = vsel %vm348, %v1443, 0
      %v1487 = vsel %vm348, %v1444, 0
      %v1490 = vsel %vm348, %v1445, 0
      %v1493 = vsel %vm348, %v1446, 0
      %v1496 = vsel %vm348, %v1447, 0
      %v1499 = vsel %vm348, %v1448, 0
      %v1502 = vsel %vm348, %v1449, 0
      %v1505 = vsel %vm348, %v1450, 0
      %v1508 = vsel %vm348, %v1451, 0
      %v1511 = vsel %vm348, %v1452, 0
      %v1514 = vsel %vm348, %v1453, 0
      %v1517 = vsel %vm348, %v1454, 0
      %v1520 = vsel %vm348, %v1455, 0
      %v1523 = vsel %vm348, %v1456, 0
      %v1526 = vsel %vm348, %v1457, 0
      %v1529 = vsel %vm348, %v1458, 0
      %v1532 = vsel %vm348, %v1459, 0
      %v1535 = vsel %vm348, %v1460, 0
      %v1538 = vsel %vm348, %v1461, 0
      %v1541 = vsel %vm348, %v1462, 0
      %v1544 = vsel %vm348, %v1463, 0
      %v1547 = vsel %vm348, %v1464, 0
      %v1550 = vsel %vm348, %v1465, 0
      %v1553 = vsel %vm348, %v1466, 0
      %v1556 = vsel %vm348, %v1467, 0
      %v1559 = vsel %vm348, %v1468, 0
      %v1562 = vsel %vm348, %v1469, 0
      %v1565 = vsel %vm348, %v1470, 0
      %v1568 = vsel %vm348, %v1471, 0
      %v1571 = vsel %vm348, %v1472, 0
      %1573 = vmatpush.msra.mxu0 0.0
      %1574 = vmatpush.msra.mxu0 0.0
      %1575 = vmatpush.msra.mxu0 0.0
      %1576 = vmatpush.msra.mxu0 0.0
      %1577 = vmatpush.msra.mxu0 0.0
      %1578 = vmatpush.msra.mxu0 0.0
      %1579 = vmatpush.msra.mxu0 0.0
      %1580 = vmatpush.msra.mxu0 0.0
      %1581 = vmatpush.msra.mxu0 0.0
      %1582 = vmatpush.msra.mxu0 0.0
      %1583 = vmatpush.msra.mxu0 0.0
      %1584 = vmatpush.msra.mxu0 0.0
      %1585 = vmatpush.msra.mxu0 %v1476
      %1586 = vmatpush.msra.mxu0 %v1475
      %1587 = vmatpush.msra.mxu0 %v1474
      %1588 = vmatpush.msra.mxu0 %v1473
      %1589 = vmatmul.f32.gmra.mxu0 %v1478
      %v1590 = vpop.f32.mrf.mxu0
      %v1591 = vadd.f32 0.0, %v1590
      %1592 = vmatmul.f32.gmra.mxu0 %v1481
      %v1593 = vpop.f32.mrf.mxu0
      %v1594 = vadd.f32 0.0, %v1593
      %1595 = vmatmul.f32.gmra.mxu0 %v1484
      %v1596 = vpop.f32.mrf.mxu0
      %v1597 = vadd.f32 0.0, %v1596
      %1598 = vmatmul.f32.gmra.mxu0 %v1487
      %v1599 = vpop.f32.mrf.mxu0
      %v1600 = vadd.f32 0.0, %v1599
      %1601 = vmatmul.f32.gmra.mxu0 %v1490
      %v1602 = vpop.f32.mrf.mxu0
      %v1603 = vadd.f32 0.0, %v1602
      %1604 = vmatmul.f32.gmra.mxu0 %v1493
      %v1605 = vpop.f32.mrf.mxu0
      %v1606 = vadd.f32 0.0, %v1605
      %1607 = vmatmul.f32.gmra.mxu0 %v1496
      %v1608 = vpop.f32.mrf.mxu0
      %v1609 = vadd.f32 0.0, %v1608
      %1610 = vmatmul.f32.gmra.mxu0 %v1499
      %v1611 = vpop.f32.mrf.mxu0
      %v1612 = vadd.f32 0.0, %v1611
      %1613 = vmatmul.f32.gmra.mxu0 %v1502
      %v1614 = vpop.f32.mrf.mxu0
      %v1615 = vadd.f32 0.0, %v1614
      %1616 = vmatmul.f32.gmra.mxu0 %v1505
      %v1617 = vpop.f32.mrf.mxu0
      %v1618 = vadd.f32 0.0, %v1617
      %1619 = vmatmul.f32.gmra.mxu0 %v1508
      %v1620 = vpop.f32.mrf.mxu0
      %v1621 = vadd.f32 0.0, %v1620
      %1622 = vmatmul.f32.gmra.mxu0 %v1511
      %v1623 = vpop.f32.mrf.mxu0
      %v1624 = vadd.f32 0.0, %v1623
      %1625 = vmatmul.f32.gmra.mxu0 %v1514
      %v1626 = vpop.f32.mrf.mxu0
      %v1627 = vadd.f32 0.0, %v1626
      %1628 = vmatmul.f32.gmra.mxu0 %v1517
      %v1629 = vpop.f32.mrf.mxu0
      %v1630 = vadd.f32 0.0, %v1629
      %1631 = vmatmul.f32.gmra.mxu0 %v1520
      %v1632 = vpop.f32.mrf.mxu0
      %v1633 = vadd.f32 0.0, %v1632
      %1634 = vmatmul.f32.gmra.mxu0 %v1523
      %v1635 = vpop.f32.mrf.mxu0
      %v1636 = vadd.f32 0.0, %v1635
      %1637 = vmatmul.f32.gmra.mxu0 %v1526
      %v1638 = vpop.f32.mrf.mxu0
      %v1639 = vadd.f32 0.0, %v1638
      %1640 = vmatmul.f32.gmra.mxu0 %v1529
      %v1641 = vpop.f32.mrf.mxu0
      %v1642 = vadd.f32 0.0, %v1641
      %1643 = vmatmul.f32.gmra.mxu0 %v1532
      %v1644 = vpop.f32.mrf.mxu0
      %v1645 = vadd.f32 0.0, %v1644
      %1646 = vmatmul.f32.gmra.mxu0 %v1535
      %v1647 = vpop.f32.mrf.mxu0
      %v1648 = vadd.f32 0.0, %v1647
      %1649 = vmatmul.f32.gmra.mxu0 %v1538
      %v1650 = vpop.f32.mrf.mxu0
      %v1651 = vadd.f32 0.0, %v1650
      %1652 = vmatmul.f32.gmra.mxu0 %v1541
      %v1653 = vpop.f32.mrf.mxu0
      %v1654 = vadd.f32 0.0, %v1653
      %1655 = vmatmul.f32.gmra.mxu0 %v1544
      %v1656 = vpop.f32.mrf.mxu0
      %v1657 = vadd.f32 0.0, %v1656
      %1658 = vmatmul.f32.gmra.mxu0 %v1547
      %v1659 = vpop.f32.mrf.mxu0
      %v1660 = vadd.f32 0.0, %v1659
      %1661 = vmatmul.f32.gmra.mxu0 %v1550
      %v1662 = vpop.f32.mrf.mxu0
      %v1663 = vadd.f32 0.0, %v1662
      %1664 = vmatmul.f32.gmra.mxu0 %v1553
      %v1665 = vpop.f32.mrf.mxu0
      %v1666 = vadd.f32 0.0, %v1665
      %1667 = vmatmul.f32.gmra.mxu0 %v1556
      %v1668 = vpop.f32.mrf.mxu0
      %v1669 = vadd.f32 0.0, %v1668
      %1670 = vmatmul.f32.gmra.mxu0 %v1559
      %v1671 = vpop.f32.mrf.mxu0
      %v1672 = vadd.f32 0.0, %v1671
      %1673 = vmatmul.f32.gmra.mxu0 %v1562
      %v1674 = vpop.f32.mrf.mxu0
      %v1675 = vadd.f32 0.0, %v1674
      %1676 = vmatmul.f32.gmra.mxu0 %v1565
      %v1677 = vpop.f32.mrf.mxu0
      %v1678 = vadd.f32 0.0, %v1677
      %1679 = vmatmul.f32.gmra.mxu0 %v1568
      %v1680 = vpop.f32.mrf.mxu0
      %v1681 = vadd.f32 0.0, %v1680
      %1682 = vmatmul.f32.gmra.mxu0 %v1571
      %v1683 = vpop.f32.mrf.mxu0
      %v1684 = vadd.f32 0.0, %v1683
      %1685 = vdwg.mxu0
      %v1686 = vadd.f32 %v1409, %v1591
      %v1687 = vadd.f32 %v1410, %v1594
      %v1688 = vadd.f32 %v1411, %v1597
      %v1689 = vadd.f32 %v1412, %v1600
      %v1690 = vadd.f32 %v1413, %v1603
      %v1691 = vadd.f32 %v1414, %v1606
      %v1692 = vadd.f32 %v1415, %v1609
      %v1693 = vadd.f32 %v1416, %v1612
      %v1694 = vadd.f32 %v1417, %v1615
      %v1695 = vadd.f32 %v1418, %v1618
      %v1696 = vadd.f32 %v1419, %v1621
      %v1697 = vadd.f32 %v1420, %v1624
      %v1698 = vadd.f32 %v1421, %v1627
      %v1699 = vadd.f32 %v1422, %v1630
      %v1700 = vadd.f32 %v1423, %v1633
      %v1701 = vadd.f32 %v1424, %v1636
      %v1702 = vadd.f32 %v1425, %v1639
      %v1703 = vadd.f32 %v1426, %v1642
      %v1704 = vadd.f32 %v1427, %v1645
      %v1705 = vadd.f32 %v1428, %v1648
      %v1706 = vadd.f32 %v1429, %v1651
      %v1707 = vadd.f32 %v1430, %v1654
      %v1708 = vadd.f32 %v1431, %v1657
      %v1709 = vadd.f32 %v1432, %v1660
      %v1710 = vadd.f32 %v1433, %v1663
      %v1711 = vadd.f32 %v1434, %v1666
      %v1712 = vadd.f32 %v1435, %v1669
      %v1713 = vadd.f32 %v1436, %v1672
      %v1714 = vadd.f32 %v1437, %v1675
      %v1715 = vadd.f32 %v1438, %v1678
      %v1716 = vadd.f32 %v1439, %v1681
      %v1717 = vadd.f32 %v1440, %v1684
      %v1718 = vld [vmem:[#allocation2 + $0x14] sm:$0xff]
      %v1719 = vld [vmem:[#allocation2 + $0x1c] sm:$0xff]
      %v1720 = vld [vmem:[#allocation2 + $0x24] sm:$0xff]
      %v1721 = vld [vmem:[#allocation2 + $0x2c] sm:$0xff]
      %v1722 = vld [vmem:[#allocation2 + $0x34] sm:$0xff]
      %v1723 = vld [vmem:[#allocation2 + $0x3c] sm:$0xff]
      %v1724 = vld [vmem:[#allocation2 + $0x44] sm:$0xff]
      %v1725 = vld [vmem:[#allocation2 + $0x4c] sm:$0xff]
      %v1726 = vld [vmem:[#allocation2 + $0x54] sm:$0xff]
      %v1727 = vld [vmem:[#allocation2 + $0x5c] sm:$0xff]
      %v1728 = vld [vmem:[#allocation2 + $0x64] sm:$0xff]
      %v1729 = vld [vmem:[#allocation2 + $0x6c] sm:$0xff]
      %v1730 = vld [vmem:[#allocation2 + $0x74] sm:$0xff]
      %v1731 = vld [vmem:[#allocation2 + $0x7c] sm:$0xff]
      %v1732 = vld [vmem:[#allocation2 + $0x84] sm:$0xff]
      %v1733 = vld [vmem:[#allocation2 + $0x8c] sm:$0xff]
      %v1734 = vld [vmem:[#allocation2 + $0x94] sm:$0xff]
      %v1735 = vld [vmem:[#allocation2 + $0x9c] sm:$0xff]
      %v1736 = vld [vmem:[#allocation2 + $0xa4] sm:$0xff]
      %v1737 = vld [vmem:[#allocation2 + $0xac] sm:$0xff]
      %v1738 = vld [vmem:[#allocation2 + $0xb4] sm:$0xff]
      %v1739 = vld [vmem:[#allocation2 + $0xbc] sm:$0xff]
      %v1740 = vld [vmem:[#allocation2 + $0xc4] sm:$0xff]
      %v1741 = vld [vmem:[#allocation2 + $0xcc] sm:$0xff]
      %v1742 = vld [vmem:[#allocation2 + $0xd4] sm:$0xff]
      %v1743 = vld [vmem:[#allocation2 + $0xdc] sm:$0xff]
      %v1744 = vld [vmem:[#allocation2 + $0xe4] sm:$0xff]
      %v1745 = vld [vmem:[#allocation2 + $0xec] sm:$0xff]
      %v1746 = vld [vmem:[#allocation2 + $0xf4] sm:$0xff]
      %v1747 = vld [vmem:[#allocation2 + $0xfc] sm:$0xff]
      %v1748 = vld [vmem:[#allocation2 + $0x104] sm:$0xff]
      %v1749 = vld [vmem:[#allocation2 + $0x10c] sm:$0xff]
      %v1750 = vld [vmem:[%s2 + $0xa0] sm:$0xff]
      %v1751 = vld [vmem:[%s2 + $0xa8] sm:$0xff]
      %v1752 = vld [vmem:[%s2 + $0xb0] sm:$0xff]
      %v1753 = vld [vmem:[%s2 + $0xb8] sm:$0xff]
      %v1755 = vsel %vm348, %v1718, 0
      %v1758 = vsel %vm348, %v1719, 0
      %v1761 = vsel %vm348, %v1720, 0
      %v1764 = vsel %vm348, %v1721, 0
      %v1767 = vsel %vm348, %v1722, 0
      %v1770 = vsel %vm348, %v1723, 0
      %v1773 = vsel %vm348, %v1724, 0
      %v1776 = vsel %vm348, %v1725, 0
      %v1779 = vsel %vm348, %v1726, 0
      %v1782 = vsel %vm348, %v1727, 0
      %v1785 = vsel %vm348, %v1728, 0
      %v1788 = vsel %vm348, %v1729, 0
      %v1791 = vsel %vm348, %v1730, 0
      %v1794 = vsel %vm348, %v1731, 0
      %v1797 = vsel %vm348, %v1732, 0
      %v1800 = vsel %vm348, %v1733, 0
      %v1803 = vsel %vm348, %v1734, 0
      %v1806 = vsel %vm348, %v1735, 0
      %v1809 = vsel %vm348, %v1736, 0
      %v1812 = vsel %vm348, %v1737, 0
      %v1815 = vsel %vm348, %v1738, 0
      %v1818 = vsel %vm348, %v1739, 0
      %v1821 = vsel %vm348, %v1740, 0
      %v1824 = vsel %vm348, %v1741, 0
      %v1827 = vsel %vm348, %v1742, 0
      %v1830 = vsel %vm348, %v1743, 0
      %v1833 = vsel %vm348, %v1744, 0
      %v1836 = vsel %vm348, %v1745, 0
      %v1839 = vsel %vm348, %v1746, 0
      %v1842 = vsel %vm348, %v1747, 0
      %v1845 = vsel %vm348, %v1748, 0
      %v1848 = vsel %vm348, %v1749, 0
      %1850 = vmatpush.msra.mxu0 0.0
      %1851 = vmatpush.msra.mxu0 0.0
      %1852 = vmatpush.msra.mxu0 0.0
      %1853 = vmatpush.msra.mxu0 0.0
      %1854 = vmatpush.msra.mxu0 0.0
      %1855 = vmatpush.msra.mxu0 0.0
      %1856 = vmatpush.msra.mxu0 0.0
      %1857 = vmatpush.msra.mxu0 0.0
      %1858 = vmatpush.msra.mxu0 0.0
      %1859 = vmatpush.msra.mxu0 0.0
      %1860 = vmatpush.msra.mxu0 0.0
      %1861 = vmatpush.msra.mxu0 0.0
      %1862 = vmatpush.msra.mxu0 %v1753
      %1863 = vmatpush.msra.mxu0 %v1752
      %1864 = vmatpush.msra.mxu0 %v1751
      %1865 = vmatpush.msra.mxu0 %v1750
      %1866 = vmatmul.f32.gmra.mxu0 %v1755
      %v1867 = vpop.f32.mrf.mxu0
      %v1868 = vadd.f32 0.0, %v1867
      %1869 = vmatmul.f32.gmra.mxu0 %v1758
      %v1870 = vpop.f32.mrf.mxu0
      %v1871 = vadd.f32 0.0, %v1870
      %1872 = vmatmul.f32.gmra.mxu0 %v1761
      %v1873 = vpop.f32.mrf.mxu0
      %v1874 = vadd.f32 0.0, %v1873
      %1875 = vmatmul.f32.gmra.mxu0 %v1764
      %v1876 = vpop.f32.mrf.mxu0
      %v1877 = vadd.f32 0.0, %v1876
      %1878 = vmatmul.f32.gmra.mxu0 %v1767
      %v1879 = vpop.f32.mrf.mxu0
      %v1880 = vadd.f32 0.0, %v1879
      %1881 = vmatmul.f32.gmra.mxu0 %v1770
      %v1882 = vpop.f32.mrf.mxu0
      %v1883 = vadd.f32 0.0, %v1882
      %1884 = vmatmul.f32.gmra.mxu0 %v1773
      %v1885 = vpop.f32.mrf.mxu0
      %v1886 = vadd.f32 0.0, %v1885
      %1887 = vmatmul.f32.gmra.mxu0 %v1776
      %v1888 = vpop.f32.mrf.mxu0
      %v1889 = vadd.f32 0.0, %v1888
      %1890 = vmatmul.f32.gmra.mxu0 %v1779
      %v1891 = vpop.f32.mrf.mxu0
      %v1892 = vadd.f32 0.0, %v1891
      %1893 = vmatmul.f32.gmra.mxu0 %v1782
      %v1894 = vpop.f32.mrf.mxu0
      %v1895 = vadd.f32 0.0, %v1894
      %1896 = vmatmul.f32.gmra.mxu0 %v1785
      %v1897 = vpop.f32.mrf.mxu0
      %v1898 = vadd.f32 0.0, %v1897
      %1899 = vmatmul.f32.gmra.mxu0 %v1788
      %v1900 = vpop.f32.mrf.mxu0
      %v1901 = vadd.f32 0.0, %v1900
      %1902 = vmatmul.f32.gmra.mxu0 %v1791
      %v1903 = vpop.f32.mrf.mxu0
      %v1904 = vadd.f32 0.0, %v1903
      %1905 = vmatmul.f32.gmra.mxu0 %v1794
      %v1906 = vpop.f32.mrf.mxu0
      %v1907 = vadd.f32 0.0, %v1906
      %1908 = vmatmul.f32.gmra.mxu0 %v1797
      %v1909 = vpop.f32.mrf.mxu0
      %v1910 = vadd.f32 0.0, %v1909
      %1911 = vmatmul.f32.gmra.mxu0 %v1800
      %v1912 = vpop.f32.mrf.mxu0
      %v1913 = vadd.f32 0.0, %v1912
      %1914 = vmatmul.f32.gmra.mxu0 %v1803
      %v1915 = vpop.f32.mrf.mxu0
      %v1916 = vadd.f32 0.0, %v1915
      %1917 = vmatmul.f32.gmra.mxu0 %v1806
      %v1918 = vpop.f32.mrf.mxu0
      %v1919 = vadd.f32 0.0, %v1918
      %1920 = vmatmul.f32.gmra.mxu0 %v1809
      %v1921 = vpop.f32.mrf.mxu0
      %v1922 = vadd.f32 0.0, %v1921
      %1923 = vmatmul.f32.gmra.mxu0 %v1812
      %v1924 = vpop.f32.mrf.mxu0
      %v1925 = vadd.f32 0.0, %v1924
      %1926 = vmatmul.f32.gmra.mxu0 %v1815
      %v1927 = vpop.f32.mrf.mxu0
      %v1928 = vadd.f32 0.0, %v1927
      %1929 = vmatmul.f32.gmra.mxu0 %v1818
      %v1930 = vpop.f32.mrf.mxu0
      %v1931 = vadd.f32 0.0, %v1930
      %1932 = vmatmul.f32.gmra.mxu0 %v1821
      %v1933 = vpop.f32.mrf.mxu0
      %v1934 = vadd.f32 0.0, %v1933
      %1935 = vmatmul.f32.gmra.mxu0 %v1824
      %v1936 = vpop.f32.mrf.mxu0
      %v1937 = vadd.f32 0.0, %v1936
      %1938 = vmatmul.f32.gmra.mxu0 %v1827
      %v1939 = vpop.f32.mrf.mxu0
      %v1940 = vadd.f32 0.0, %v1939
      %1941 = vmatmul.f32.gmra.mxu0 %v1830
      %v1942 = vpop.f32.mrf.mxu0
      %v1943 = vadd.f32 0.0, %v1942
      %1944 = vmatmul.f32.gmra.mxu0 %v1833
      %v1945 = vpop.f32.mrf.mxu0
      %v1946 = vadd.f32 0.0, %v1945
      %1947 = vmatmul.f32.gmra.mxu0 %v1836
      %v1948 = vpop.f32.mrf.mxu0
      %v1949 = vadd.f32 0.0, %v1948
      %1950 = vmatmul.f32.gmra.mxu0 %v1839
      %v1951 = vpop.f32.mrf.mxu0
      %v1952 = vadd.f32 0.0, %v1951
      %1953 = vmatmul.f32.gmra.mxu0 %v1842
      %v1954 = vpop.f32.mrf.mxu0
      %v1955 = vadd.f32 0.0, %v1954
      %1956 = vmatmul.f32.gmra.mxu0 %v1845
      %v1957 = vpop.f32.mrf.mxu0
      %v1958 = vadd.f32 0.0, %v1957
      %1959 = vmatmul.f32.gmra.mxu0 %v1848
      %v1960 = vpop.f32.mrf.mxu0
      %v1961 = vadd.f32 0.0, %v1960
      %1962 = vdwg.mxu0
      %v1963 = vadd.f32 %v1686, %v1868
      %v1964 = vadd.f32 %v1687, %v1871
      %v1965 = vadd.f32 %v1688, %v1874
      %v1966 = vadd.f32 %v1689, %v1877
      %v1967 = vadd.f32 %v1690, %v1880
      %v1968 = vadd.f32 %v1691, %v1883
      %v1969 = vadd.f32 %v1692, %v1886
      %v1970 = vadd.f32 %v1693, %v1889
      %v1971 = vadd.f32 %v1694, %v1892
      %v1972 = vadd.f32 %v1695, %v1895
      %v1973 = vadd.f32 %v1696, %v1898
      %v1974 = vadd.f32 %v1697, %v1901
      %v1975 = vadd.f32 %v1698, %v1904
      %v1976 = vadd.f32 %v1699, %v1907
      %v1977 = vadd.f32 %v1700, %v1910
      %v1978 = vadd.f32 %v1701, %v1913
      %v1979 = vadd.f32 %v1702, %v1916
      %v1980 = vadd.f32 %v1703, %v1919
      %v1981 = vadd.f32 %v1704, %v1922
      %v1982 = vadd.f32 %v1705, %v1925
      %v1983 = vadd.f32 %v1706, %v1928
      %v1984 = vadd.f32 %v1707, %v1931
      %v1985 = vadd.f32 %v1708, %v1934
      %v1986 = vadd.f32 %v1709, %v1937
      %v1987 = vadd.f32 %v1710, %v1940
      %v1988 = vadd.f32 %v1711, %v1943
      %v1989 = vadd.f32 %v1712, %v1946
      %v1990 = vadd.f32 %v1713, %v1949
      %v1991 = vadd.f32 %v1714, %v1952
      %v1992 = vadd.f32 %v1715, %v1955
      %v1993 = vadd.f32 %v1716, %v1958
      %v1994 = vadd.f32 %v1717, %v1961
      %v1995 = vld [vmem:[#allocation2 + $0x24] sm:$0xff]
      %v1996 = vld [vmem:[#allocation2 + $0x2c] sm:$0xff]
      %v1997 = vld [vmem:[#allocation2 + $0x34] sm:$0xff]
      %v1998 = vld [vmem:[#allocation2 + $0x3c] sm:$0xff]
      %v1999 = vld [vmem:[#allocation2 + $0x44] sm:$0xff]
      %v2000 = vld [vmem:[#allocation2 + $0x4c] sm:$0xff]
      %v2001 = vld [vmem:[#allocation2 + $0x54] sm:$0xff]
      %v2002 = vld [vmem:[#allocation2 + $0x5c] sm:$0xff]
      %v2003 = vld [vmem:[#allocation2 + $0x64] sm:$0xff]
      %v2004 = vld [vmem:[#allocation2 + $0x6c] sm:$0xff]
      %v2005 = vld [vmem:[#allocation2 + $0x74] sm:$0xff]
      %v2006 = vld [vmem:[#allocation2 + $0x7c] sm:$0xff]
      %v2007 = vld [vmem:[#allocation2 + $0x84] sm:$0xff]
      %v2008 = vld [vmem:[#allocation2 + $0x8c] sm:$0xff]
      %v2009 = vld [vmem:[#allocation2 + $0x94] sm:$0xff]
      %v2010 = vld [vmem:[#allocation2 + $0x9c] sm:$0xff]
      %v2011 = vld [vmem:[#allocation2 + $0xa4] sm:$0xff]
      %v2012 = vld [vmem:[#allocation2 + $0xac] sm:$0xff]
      %v2013 = vld [vmem:[#allocation2 + $0xb4] sm:$0xff]
      %v2014 = vld [vmem:[#allocation2 + $0xbc] sm:$0xff]
      %v2015 = vld [vmem:[#allocation2 + $0xc4] sm:$0xff]
      %v2016 = vld [vmem:[#allocation2 + $0xcc] sm:$0xff]
      %v2017 = vld [vmem:[#allocation2 + $0xd4] sm:$0xff]
      %v2018 = vld [vmem:[#allocation2 + $0xdc] sm:$0xff]
      %v2019 = vld [vmem:[#allocation2 + $0xe4] sm:$0xff]
      %v2020 = vld [vmem:[#allocation2 + $0xec] sm:$0xff]
      %v2021 = vld [vmem:[#allocation2 + $0xf4] sm:$0xff]
      %v2022 = vld [vmem:[#allocation2 + $0xfc] sm:$0xff]
      %v2023 = vld [vmem:[#allocation2 + $0x104] sm:$0xff]
      %v2024 = vld [vmem:[#allocation2 + $0x10c] sm:$0xff]
      %v2025 = vld [vmem:[#allocation2 + $0x114] sm:$0xff]
      %v2026 = vld [vmem:[#allocation2 + $0x11c] sm:$0xff]
      %v2027 = vld [vmem:[%s2 + $0xc0] sm:$0xff]
      %v2028 = vld [vmem:[%s2 + $0xc8] sm:$0xff]
      %v2029 = vld [vmem:[%s2 + $0xd0] sm:$0xff]
      %v2030 = vld [vmem:[%s2 + $0xd8] sm:$0xff]
      %v2032 = vsel %vm348, %v1995, 0
      %v2035 = vsel %vm348, %v1996, 0
      %v2038 = vsel %vm348, %v1997, 0
      %v2041 = vsel %vm348, %v1998, 0
      %v2044 = vsel %vm348, %v1999, 0
      %v2047 = vsel %vm348, %v2000, 0
      %v2050 = vsel %vm348, %v2001, 0
      %v2053 = vsel %vm348, %v2002, 0
      %v2056 = vsel %vm348, %v2003, 0
      %v2059 = vsel %vm348, %v2004, 0
      %v2062 = vsel %vm348, %v2005, 0
      %v2065 = vsel %vm348, %v2006, 0
      %v2068 = vsel %vm348, %v2007, 0
      %v2071 = vsel %vm348, %v2008, 0
      %v2074 = vsel %vm348, %v2009, 0
      %v2077 = vsel %vm348, %v2010, 0
      %v2080 = vsel %vm348, %v2011, 0
      %v2083 = vsel %vm348, %v2012, 0
      %v2086 = vsel %vm348, %v2013, 0
      %v2089 = vsel %vm348, %v2014, 0
      %v2092 = vsel %vm348, %v2015, 0
      %v2095 = vsel %vm348, %v2016, 0
      %v2098 = vsel %vm348, %v2017, 0
      %v2101 = vsel %vm348, %v2018, 0
      %v2104 = vsel %vm348, %v2019, 0
      %v2107 = vsel %vm348, %v2020, 0
      %v2110 = vsel %vm348, %v2021, 0
      %v2113 = vsel %vm348, %v2022, 0
      %v2116 = vsel %vm348, %v2023, 0
      %v2119 = vsel %vm348, %v2024, 0
      %v2122 = vsel %vm348, %v2025, 0
      %v2125 = vsel %vm348, %v2026, 0
      %2127 = vmatpush.msra.mxu0 0.0
      %2128 = vmatpush.msra.mxu0 0.0
      %2129 = vmatpush.msra.mxu0 0.0
      %2130 = vmatpush.msra.mxu0 0.0
      %2131 = vmatpush.msra.mxu0 0.0
      %2132 = vmatpush.msra.mxu0 0.0
      %2133 = vmatpush.msra.mxu0 0.0
      %2134 = vmatpush.msra.mxu0 0.0
      %2135 = vmatpush.msra.mxu0 0.0
      %2136 = vmatpush.msra.mxu0 0.0
      %2137 = vmatpush.msra.mxu0 0.0
      %2138 = vmatpush.msra.mxu0 0.0
      %2139 = vmatpush.msra.mxu0 %v2030
      %2140 = vmatpush.msra.mxu0 %v2029
      %2141 = vmatpush.msra.mxu0 %v2028
      %2142 = vmatpush.msra.mxu0 %v2027
      %2143 = vmatmul.f32.gmra.mxu0 %v2032
      %v2144 = vpop.f32.mrf.mxu0
      %v2145 = vadd.f32 0.0, %v2144
      %2146 = vmatmul.f32.gmra.mxu0 %v2035
      %v2147 = vpop.f32.mrf.mxu0
      %v2148 = vadd.f32 0.0, %v2147
      %2149 = vmatmul.f32.gmra.mxu0 %v2038
      %v2150 = vpop.f32.mrf.mxu0
      %v2151 = vadd.f32 0.0, %v2150
      %2152 = vmatmul.f32.gmra.mxu0 %v2041
      %v2153 = vpop.f32.mrf.mxu0
      %v2154 = vadd.f32 0.0, %v2153
      %2155 = vmatmul.f32.gmra.mxu0 %v2044
      %v2156 = vpop.f32.mrf.mxu0
      %v2157 = vadd.f32 0.0, %v2156
      %2158 = vmatmul.f32.gmra.mxu0 %v2047
      %v2159 = vpop.f32.mrf.mxu0
      %v2160 = vadd.f32 0.0, %v2159
      %2161 = vmatmul.f32.gmra.mxu0 %v2050
      %v2162 = vpop.f32.mrf.mxu0
      %v2163 = vadd.f32 0.0, %v2162
      %2164 = vmatmul.f32.gmra.mxu0 %v2053
      %v2165 = vpop.f32.mrf.mxu0
      %v2166 = vadd.f32 0.0, %v2165
      %2167 = vmatmul.f32.gmra.mxu0 %v2056
      %v2168 = vpop.f32.mrf.mxu0
      %v2169 = vadd.f32 0.0, %v2168
      %2170 = vmatmul.f32.gmra.mxu0 %v2059
      %v2171 = vpop.f32.mrf.mxu0
      %v2172 = vadd.f32 0.0, %v2171
      %2173 = vmatmul.f32.gmra.mxu0 %v2062
      %v2174 = vpop.f32.mrf.mxu0
      %v2175 = vadd.f32 0.0, %v2174
      %2176 = vmatmul.f32.gmra.mxu0 %v2065
      %v2177 = vpop.f32.mrf.mxu0
      %v2178 = vadd.f32 0.0, %v2177
      %2179 = vmatmul.f32.gmra.mxu0 %v2068
      %v2180 = vpop.f32.mrf.mxu0
      %v2181 = vadd.f32 0.0, %v2180
      %2182 = vmatmul.f32.gmra.mxu0 %v2071
      %v2183 = vpop.f32.mrf.mxu0
      %v2184 = vadd.f32 0.0, %v2183
      %2185 = vmatmul.f32.gmra.mxu0 %v2074
      %v2186 = vpop.f32.mrf.mxu0
      %v2187 = vadd.f32 0.0, %v2186
      %2188 = vmatmul.f32.gmra.mxu0 %v2077
      %v2189 = vpop.f32.mrf.mxu0
      %v2190 = vadd.f32 0.0, %v2189
      %2191 = vmatmul.f32.gmra.mxu0 %v2080
      %v2192 = vpop.f32.mrf.mxu0
      %v2193 = vadd.f32 0.0, %v2192
      %2194 = vmatmul.f32.gmra.mxu0 %v2083
      %v2195 = vpop.f32.mrf.mxu0
      %v2196 = vadd.f32 0.0, %v2195
      %2197 = vmatmul.f32.gmra.mxu0 %v2086
      %v2198 = vpop.f32.mrf.mxu0
      %v2199 = vadd.f32 0.0, %v2198
      %2200 = vmatmul.f32.gmra.mxu0 %v2089
      %v2201 = vpop.f32.mrf.mxu0
      %v2202 = vadd.f32 0.0, %v2201
      %2203 = vmatmul.f32.gmra.mxu0 %v2092
      %v2204 = vpop.f32.mrf.mxu0
      %v2205 = vadd.f32 0.0, %v2204
      %2206 = vmatmul.f32.gmra.mxu0 %v2095
      %v2207 = vpop.f32.mrf.mxu0
      %v2208 = vadd.f32 0.0, %v2207
      %2209 = vmatmul.f32.gmra.mxu0 %v2098
      %v2210 = vpop.f32.mrf.mxu0
      %v2211 = vadd.f32 0.0, %v2210
      %2212 = vmatmul.f32.gmra.mxu0 %v2101
      %v2213 = vpop.f32.mrf.mxu0
      %v2214 = vadd.f32 0.0, %v2213
      %2215 = vmatmul.f32.gmra.mxu0 %v2104
      %v2216 = vpop.f32.mrf.mxu0
      %v2217 = vadd.f32 0.0, %v2216
      %2218 = vmatmul.f32.gmra.mxu0 %v2107
      %v2219 = vpop.f32.mrf.mxu0
      %v2220 = vadd.f32 0.0, %v2219
      %2221 = vmatmul.f32.gmra.mxu0 %v2110
      %v2222 = vpop.f32.mrf.mxu0
      %v2223 = vadd.f32 0.0, %v2222
      %2224 = vmatmul.f32.gmra.mxu0 %v2113
      %v2225 = vpop.f32.mrf.mxu0
      %v2226 = vadd.f32 0.0, %v2225
      %2227 = vmatmul.f32.gmra.mxu0 %v2116
      %v2228 = vpop.f32.mrf.mxu0
      %v2229 = vadd.f32 0.0, %v2228
      %2230 = vmatmul.f32.gmra.mxu0 %v2119
      %v2231 = vpop.f32.mrf.mxu0
      %v2232 = vadd.f32 0.0, %v2231
      %2233 = vmatmul.f32.gmra.mxu0 %v2122
      %v2234 = vpop.f32.mrf.mxu0
      %v2235 = vadd.f32 0.0, %v2234
      %2236 = vmatmul.f32.gmra.mxu0 %v2125
      %v2237 = vpop.f32.mrf.mxu0
      %v2238 = vadd.f32 0.0, %v2237
      %2239 = vdwg.mxu0
      %v2240 = vadd.f32 %v1963, %v2145
      %v2241 = vadd.f32 %v1964, %v2148
      %v2242 = vadd.f32 %v1965, %v2151
      %v2243 = vadd.f32 %v1966, %v2154
      %v2244 = vadd.f32 %v1967, %v2157
      %v2245 = vadd.f32 %v1968, %v2160
      %v2246 = vadd.f32 %v1969, %v2163
      %v2247 = vadd.f32 %v1970, %v2166
      %v2248 = vadd.f32 %v1971, %v2169
      %v2249 = vadd.f32 %v1972, %v2172
      %v2250 = vadd.f32 %v1973, %v2175
      %v2251 = vadd.f32 %v1974, %v2178
      %v2252 = vadd.f32 %v1975, %v2181
      %v2253 = vadd.f32 %v1976, %v2184
      %v2254 = vadd.f32 %v1977, %v2187
      %v2255 = vadd.f32 %v1978, %v2190
      %v2256 = vadd.f32 %v1979, %v2193
      %v2257 = vadd.f32 %v1980, %v2196
      %v2258 = vadd.f32 %v1981, %v2199
      %v2259 = vadd.f32 %v1982, %v2202
      %v2260 = vadd.f32 %v1983, %v2205
      %v2261 = vadd.f32 %v1984, %v2208
      %v2262 = vadd.f32 %v1985, %v2211
      %v2263 = vadd.f32 %v1986, %v2214
      %v2264 = vadd.f32 %v1987, %v2217
      %v2265 = vadd.f32 %v1988, %v2220
      %v2266 = vadd.f32 %v1989, %v2223
      %v2267 = vadd.f32 %v1990, %v2226
      %v2268 = vadd.f32 %v1991, %v2229
      %v2269 = vadd.f32 %v1992, %v2232
      %v2270 = vadd.f32 %v1993, %v2235
      %v2271 = vadd.f32 %v1994, %v2238
      %v2272 = vld [vmem:[#allocation2 + $0x25] sm:$0xff]
      %v2273 = vld [vmem:[#allocation2 + $0x2d] sm:$0xff]
      %v2274 = vld [vmem:[#allocation2 + $0x35] sm:$0xff]
      %v2275 = vld [vmem:[#allocation2 + $0x3d] sm:$0xff]
      %v2276 = vld [vmem:[#allocation2 + $0x45] sm:$0xff]
      %v2277 = vld [vmem:[#allocation2 + $0x4d] sm:$0xff]
      %v2278 = vld [vmem:[#allocation2 + $0x55] sm:$0xff]
      %v2279 = vld [vmem:[#allocation2 + $0x5d] sm:$0xff]
      %v2280 = vld [vmem:[#allocation2 + $0x65] sm:$0xff]
      %v2281 = vld [vmem:[#allocation2 + $0x6d] sm:$0xff]
      %v2282 = vld [vmem:[#allocation2 + $0x75] sm:$0xff]
      %v2283 = vld [vmem:[#allocation2 + $0x7d] sm:$0xff]
      %v2284 = vld [vmem:[#allocation2 + $0x85] sm:$0xff]
      %v2285 = vld [vmem:[#allocation2 + $0x8d] sm:$0xff]
      %v2286 = vld [vmem:[#allocation2 + $0x95] sm:$0xff]
      %v2287 = vld [vmem:[#allocation2 + $0x9d] sm:$0xff]
      %v2288 = vld [vmem:[#allocation2 + $0xa5] sm:$0xff]
      %v2289 = vld [vmem:[#allocation2 + $0xad] sm:$0xff]
      %v2290 = vld [vmem:[#allocation2 + $0xb5] sm:$0xff]
      %v2291 = vld [vmem:[#allocation2 + $0xbd] sm:$0xff]
      %v2292 = vld [vmem:[#allocation2 + $0xc5] sm:$0xff]
      %v2293 = vld [vmem:[#allocation2 + $0xcd] sm:$0xff]
      %v2294 = vld [vmem:[#allocation2 + $0xd5] sm:$0xff]
      %v2295 = vld [vmem:[#allocation2 + $0xdd] sm:$0xff]
      %v2296 = vld [vmem:[#allocation2 + $0xe5] sm:$0xff]
      %v2297 = vld [vmem:[#allocation2 + $0xed] sm:$0xff]
      %v2298 = vld [vmem:[#allocation2 + $0xf5] sm:$0xff]
      %v2299 = vld [vmem:[#allocation2 + $0xfd] sm:$0xff]
      %v2300 = vld [vmem:[#allocation2 + $0x105] sm:$0xff]
      %v2301 = vld [vmem:[#allocation2 + $0x10d] sm:$0xff]
      %v2302 = vld [vmem:[#allocation2 + $0x115] sm:$0xff]
      %v2303 = vld [vmem:[#allocation2 + $0x11d] sm:$0xff]
      %v2304 = vld [vmem:[%s2 + $0xe0] sm:$0xff]
      %v2305 = vld [vmem:[%s2 + $0xe8] sm:$0xff]
      %v2306 = vld [vmem:[%s2 + $0xf0] sm:$0xff]
      %v2307 = vld [vmem:[%s2 + $0xf8] sm:$0xff]
      %v2309 = vsel %vm348, %v2272, 0
      %v2312 = vsel %vm348, %v2273, 0
      %v2315 = vsel %vm348, %v2274, 0
      %v2318 = vsel %vm348, %v2275, 0
      %v2321 = vsel %vm348, %v2276, 0
      %v2324 = vsel %vm348, %v2277, 0
      %v2327 = vsel %vm348, %v2278, 0
      %v2330 = vsel %vm348, %v2279, 0
      %v2333 = vsel %vm348, %v2280, 0
      %v2336 = vsel %vm348, %v2281, 0
      %v2339 = vsel %vm348, %v2282, 0
      %v2342 = vsel %vm348, %v2283, 0
      %v2345 = vsel %vm348, %v2284, 0
      %v2348 = vsel %vm348, %v2285, 0
      %v2351 = vsel %vm348, %v2286, 0
      %v2354 = vsel %vm348, %v2287, 0
      %v2357 = vsel %vm348, %v2288, 0
      %v2360 = vsel %vm348, %v2289, 0
      %v2363 = vsel %vm348, %v2290, 0
      %v2366 = vsel %vm348, %v2291, 0
      %v2369 = vsel %vm348, %v2292, 0
      %v2372 = vsel %vm348, %v2293, 0
      %v2375 = vsel %vm348, %v2294, 0
      %v2378 = vsel %vm348, %v2295, 0
      %v2381 = vsel %vm348, %v2296, 0
      %v2384 = vsel %vm348, %v2297, 0
      %v2387 = vsel %vm348, %v2298, 0
      %v2390 = vsel %vm348, %v2299, 0
      %v2393 = vsel %vm348, %v2300, 0
      %v2396 = vsel %vm348, %v2301, 0
      %v2399 = vsel %vm348, %v2302, 0
      %v2402 = vsel %vm348, %v2303, 0
      %2404 = vmatpush.msra.mxu0 0.0
      %2405 = vmatpush.msra.mxu0 0.0
      %2406 = vmatpush.msra.mxu0 0.0
      %2407 = vmatpush.msra.mxu0 0.0
      %2408 = vmatpush.msra.mxu0 0.0
      %2409 = vmatpush.msra.mxu0 0.0
      %2410 = vmatpush.msra.mxu0 0.0
      %2411 = vmatpush.msra.mxu0 0.0
      %2412 = vmatpush.msra.mxu0 0.0
      %2413 = vmatpush.msra.mxu0 0.0
      %2414 = vmatpush.msra.mxu0 0.0
      %2415 = vmatpush.msra.mxu0 0.0
      %2416 = vmatpush.msra.mxu0 %v2307
      %2417 = vmatpush.msra.mxu0 %v2306
      %2418 = vmatpush.msra.mxu0 %v2305
      %2419 = vmatpush.msra.mxu0 %v2304
      %2420 = vmatmul.f32.gmra.mxu0 %v2309
      %v2421 = vpop.f32.mrf.mxu0
      %v2422 = vadd.f32 0.0, %v2421
      %2423 = vmatmul.f32.gmra.mxu0 %v2312
      %v2424 = vpop.f32.mrf.mxu0
      %v2425 = vadd.f32 0.0, %v2424
      %2426 = vmatmul.f32.gmra.mxu0 %v2315
      %v2427 = vpop.f32.mrf.mxu0
      %v2428 = vadd.f32 0.0, %v2427
      %2429 = vmatmul.f32.gmra.mxu0 %v2318
      %v2430 = vpop.f32.mrf.mxu0
      %v2431 = vadd.f32 0.0, %v2430
      %2432 = vmatmul.f32.gmra.mxu0 %v2321
      %v2433 = vpop.f32.mrf.mxu0
      %v2434 = vadd.f32 0.0, %v2433
      %2435 = vmatmul.f32.gmra.mxu0 %v2324
      %v2436 = vpop.f32.mrf.mxu0
      %v2437 = vadd.f32 0.0, %v2436
      %2438 = vmatmul.f32.gmra.mxu0 %v2327
      %v2439 = vpop.f32.mrf.mxu0
      %v2440 = vadd.f32 0.0, %v2439
      %2441 = vmatmul.f32.gmra.mxu0 %v2330
      %v2442 = vpop.f32.mrf.mxu0
      %v2443 = vadd.f32 0.0, %v2442
      %2444 = vmatmul.f32.gmra.mxu0 %v2333
      %v2445 = vpop.f32.mrf.mxu0
      %v2446 = vadd.f32 0.0, %v2445
      %2447 = vmatmul.f32.gmra.mxu0 %v2336
      %v2448 = vpop.f32.mrf.mxu0
      %v2449 = vadd.f32 0.0, %v2448
      %2450 = vmatmul.f32.gmra.mxu0 %v2339
      %v2451 = vpop.f32.mrf.mxu0
      %v2452 = vadd.f32 0.0, %v2451
      %2453 = vmatmul.f32.gmra.mxu0 %v2342
      %v2454 = vpop.f32.mrf.mxu0
      %v2455 = vadd.f32 0.0, %v2454
      %2456 = vmatmul.f32.gmra.mxu0 %v2345
      %v2457 = vpop.f32.mrf.mxu0
      %v2458 = vadd.f32 0.0, %v2457
      %2459 = vmatmul.f32.gmra.mxu0 %v2348
      %v2460 = vpop.f32.mrf.mxu0
      %v2461 = vadd.f32 0.0, %v2460
      %2462 = vmatmul.f32.gmra.mxu0 %v2351
      %v2463 = vpop.f32.mrf.mxu0
      %v2464 = vadd.f32 0.0, %v2463
      %2465 = vmatmul.f32.gmra.mxu0 %v2354
      %v2466 = vpop.f32.mrf.mxu0
      %v2467 = vadd.f32 0.0, %v2466
      %2468 = vmatmul.f32.gmra.mxu0 %v2357
      %v2469 = vpop.f32.mrf.mxu0
      %v2470 = vadd.f32 0.0, %v2469
      %2471 = vmatmul.f32.gmra.mxu0 %v2360
      %v2472 = vpop.f32.mrf.mxu0
      %v2473 = vadd.f32 0.0, %v2472
      %2474 = vmatmul.f32.gmra.mxu0 %v2363
      %v2475 = vpop.f32.mrf.mxu0
      %v2476 = vadd.f32 0.0, %v2475
      %2477 = vmatmul.f32.gmra.mxu0 %v2366
      %v2478 = vpop.f32.mrf.mxu0
      %v2479 = vadd.f32 0.0, %v2478
      %2480 = vmatmul.f32.gmra.mxu0 %v2369
      %v2481 = vpop.f32.mrf.mxu0
      %v2482 = vadd.f32 0.0, %v2481
      %2483 = vmatmul.f32.gmra.mxu0 %v2372
      %v2484 = vpop.f32.mrf.mxu0
      %v2485 = vadd.f32 0.0, %v2484
      %2486 = vmatmul.f32.gmra.mxu0 %v2375
      %v2487 = vpop.f32.mrf.mxu0
      %v2488 = vadd.f32 0.0, %v2487
      %2489 = vmatmul.f32.gmra.mxu0 %v2378
      %v2490 = vpop.f32.mrf.mxu0
      %v2491 = vadd.f32 0.0, %v2490
      %2492 = vmatmul.f32.gmra.mxu0 %v2381
      %v2493 = vpop.f32.mrf.mxu0
      %v2494 = vadd.f32 0.0, %v2493
      %2495 = vmatmul.f32.gmra.mxu0 %v2384
      %v2496 = vpop.f32.mrf.mxu0
      %v2497 = vadd.f32 0.0, %v2496
      %2498 = vmatmul.f32.gmra.mxu0 %v2387
      %v2499 = vpop.f32.mrf.mxu0
      %v2500 = vadd.f32 0.0, %v2499
      %2501 = vmatmul.f32.gmra.mxu0 %v2390
      %v2502 = vpop.f32.mrf.mxu0
      %v2503 = vadd.f32 0.0, %v2502
      %2504 = vmatmul.f32.gmra.mxu0 %v2393
      %v2505 = vpop.f32.mrf.mxu0
      %v2506 = vadd.f32 0.0, %v2505
      %2507 = vmatmul.f32.gmra.mxu0 %v2396
      %v2508 = vpop.f32.mrf.mxu0
      %v2509 = vadd.f32 0.0, %v2508
      %2510 = vmatmul.f32.gmra.mxu0 %v2399
      %v2511 = vpop.f32.mrf.mxu0
      %v2512 = vadd.f32 0.0, %v2511
      %2513 = vmatmul.f32.gmra.mxu0 %v2402
      %v2514 = vpop.f32.mrf.mxu0
      %v2515 = vadd.f32 0.0, %v2514
      %2516 = vdwg.mxu0
      %v2517 = vadd.f32 %v2240, %v2422
      %v2518 = vadd.f32 %v2241, %v2425
      %v2519 = vadd.f32 %v2242, %v2428
      %v2520 = vadd.f32 %v2243, %v2431
      %v2521 = vadd.f32 %v2244, %v2434
      %v2522 = vadd.f32 %v2245, %v2437
      %v2523 = vadd.f32 %v2246, %v2440
      %v2524 = vadd.f32 %v2247, %v2443
      %v2525 = vadd.f32 %v2248, %v2446
      %v2526 = vadd.f32 %v2249, %v2449
      %v2527 = vadd.f32 %v2250, %v2452
      %v2528 = vadd.f32 %v2251, %v2455
      %v2529 = vadd.f32 %v2252, %v2458
      %v2530 = vadd.f32 %v2253, %v2461
      %v2531 = vadd.f32 %v2254, %v2464
      %v2532 = vadd.f32 %v2255, %v2467
      %v2533 = vadd.f32 %v2256, %v2470
      %v2534 = vadd.f32 %v2257, %v2473
      %v2535 = vadd.f32 %v2258, %v2476
      %v2536 = vadd.f32 %v2259, %v2479
      %v2537 = vadd.f32 %v2260, %v2482
      %v2538 = vadd.f32 %v2261, %v2485
      %v2539 = vadd.f32 %v2262, %v2488
      %v2540 = vadd.f32 %v2263, %v2491
      %v2541 = vadd.f32 %v2264, %v2494
      %v2542 = vadd.f32 %v2265, %v2497
      %v2543 = vadd.f32 %v2266, %v2500
      %v2544 = vadd.f32 %v2267, %v2503
      %v2545 = vadd.f32 %v2268, %v2506
      %v2546 = vadd.f32 %v2269, %v2509
      %v2547 = vadd.f32 %v2270, %v2512
      %v2548 = vadd.f32 %v2271, %v2515
      %v2549 = vld [vmem:[#allocation2 + $0x26] sm:$0xff]
      %v2550 = vld [vmem:[#allocation2 + $0x2e] sm:$0xff]
      %v2551 = vld [vmem:[#allocation2 + $0x36] sm:$0xff]
      %v2552 = vld [vmem:[#allocation2 + $0x3e] sm:$0xff]
      %v2553 = vld [vmem:[#allocation2 + $0x46] sm:$0xff]
      %v2554 = vld [vmem:[#allocation2 + $0x4e] sm:$0xff]
      %v2555 = vld [vmem:[#allocation2 + $0x56] sm:$0xff]
      %v2556 = vld [vmem:[#allocation2 + $0x5e] sm:$0xff]
      %v2557 = vld [vmem:[#allocation2 + $0x66] sm:$0xff]
      %v2558 = vld [vmem:[#allocation2 + $0x6e] sm:$0xff]
      %v2559 = vld [vmem:[#allocation2 + $0x76] sm:$0xff]
      %v2560 = vld [vmem:[#allocation2 + $0x7e] sm:$0xff]
      %v2561 = vld [vmem:[#allocation2 + $0x86] sm:$0xff]
      %v2562 = vld [vmem:[#allocation2 + $0x8e] sm:$0xff]
      %v2563 = vld [vmem:[#allocation2 + $0x96] sm:$0xff]
      %v2564 = vld [vmem:[#allocation2 + $0x9e] sm:$0xff]
      %v2565 = vld [vmem:[#allocation2 + $0xa6] sm:$0xff]
      %v2566 = vld [vmem:[#allocation2 + $0xae] sm:$0xff]
      %v2567 = vld [vmem:[#allocation2 + $0xb6] sm:$0xff]
      %v2568 = vld [vmem:[#allocation2 + $0xbe] sm:$0xff]
      %v2569 = vld [vmem:[#allocation2 + $0xc6] sm:$0xff]
      %v2570 = vld [vmem:[#allocation2 + $0xce] sm:$0xff]
      %v2571 = vld [vmem:[#allocation2 + $0xd6] sm:$0xff]
      %v2572 = vld [vmem:[#allocation2 + $0xde] sm:$0xff]
      %v2573 = vld [vmem:[#allocation2 + $0xe6] sm:$0xff]
      %v2574 = vld [vmem:[#allocation2 + $0xee] sm:$0xff]
      %v2575 = vld [vmem:[#allocation2 + $0xf6] sm:$0xff]
      %v2576 = vld [vmem:[#allocation2 + $0xfe] sm:$0xff]
      %v2577 = vld [vmem:[#allocation2 + $0x106] sm:$0xff]
      %v2578 = vld [vmem:[#allocation2 + $0x10e] sm:$0xff]
      %v2579 = vld [vmem:[#allocation2 + $0x116] sm:$0xff]
      %v2580 = vld [vmem:[#allocation2 + $0x11e] sm:$0xff]
      %v2581 = vld [vmem:[%s2 + $0x100] sm:$0xff]
      %v2582 = vld [vmem:[%s2 + $0x108] sm:$0xff]
      %v2583 = vld [vmem:[%s2 + $0x110] sm:$0xff]
      %v2584 = vld [vmem:[%s2 + $0x118] sm:$0xff]
      %v2586 = vsel %vm348, %v2549, 0
      %v2589 = vsel %vm348, %v2550, 0
      %v2592 = vsel %vm348, %v2551, 0
      %v2595 = vsel %vm348, %v2552, 0
      %v2598 = vsel %vm348, %v2553, 0
      %v2601 = vsel %vm348, %v2554, 0
      %v2604 = vsel %vm348, %v2555, 0
      %v2607 = vsel %vm348, %v2556, 0
      %v2610 = vsel %vm348, %v2557, 0
      %v2613 = vsel %vm348, %v2558, 0
      %v2616 = vsel %vm348, %v2559, 0
      %v2619 = vsel %vm348, %v2560, 0
      %v2622 = vsel %vm348, %v2561, 0
      %v2625 = vsel %vm348, %v2562, 0
      %v2628 = vsel %vm348, %v2563, 0
      %v2631 = vsel %vm348, %v2564, 0
      %v2634 = vsel %vm348, %v2565, 0
      %v2637 = vsel %vm348, %v2566, 0
      %v2640 = vsel %vm348, %v2567, 0
      %v2643 = vsel %vm348, %v2568, 0
      %v2646 = vsel %vm348, %v2569, 0
      %v2649 = vsel %vm348, %v2570, 0
      %v2652 = vsel %vm348, %v2571, 0
      %v2655 = vsel %vm348, %v2572, 0
      %v2658 = vsel %vm348, %v2573, 0
      %v2661 = vsel %vm348, %v2574, 0
      %v2664 = vsel %vm348, %v2575, 0
      %v2667 = vsel %vm348, %v2576, 0
      %v2670 = vsel %vm348, %v2577, 0
      %v2673 = vsel %vm348, %v2578, 0
      %v2676 = vsel %vm348, %v2579, 0
      %v2679 = vsel %vm348, %v2580, 0
      %2681 = vmatpush.msra.mxu0 0.0
      %2682 = vmatpush.msra.mxu0 0.0
      %2683 = vmatpush.msra.mxu0 0.0
      %2684 = vmatpush.msra.mxu0 0.0
      %2685 = vmatpush.msra.mxu0 0.0
      %2686 = vmatpush.msra.mxu0 0.0
      %2687 = vmatpush.msra.mxu0 0.0
      %2688 = vmatpush.msra.mxu0 0.0
      %2689 = vmatpush.msra.mxu0 0.0
      %2690 = vmatpush.msra.mxu0 0.0
      %2691 = vmatpush.msra.mxu0 0.0
      %2692 = vmatpush.msra.mxu0 0.0
      %2693 = vmatpush.msra.mxu0 %v2584
      %2694 = vmatpush.msra.mxu0 %v2583
      %2695 = vmatpush.msra.mxu0 %v2582
      %2696 = vmatpush.msra.mxu0 %v2581
      %2697 = vmatmul.f32.gmra.mxu0 %v2586
      %v2698 = vpop.f32.mrf.mxu0
      %v2699 = vadd.f32 0.0, %v2698
      %2700 = vmatmul.f32.gmra.mxu0 %v2589
      %v2701 = vpop.f32.mrf.mxu0
      %v2702 = vadd.f32 0.0, %v2701
      %2703 = vmatmul.f32.gmra.mxu0 %v2592
      %v2704 = vpop.f32.mrf.mxu0
      %v2705 = vadd.f32 0.0, %v2704
      %2706 = vmatmul.f32.gmra.mxu0 %v2595
      %v2707 = vpop.f32.mrf.mxu0
      %v2708 = vadd.f32 0.0, %v2707
      %2709 = vmatmul.f32.gmra.mxu0 %v2598
      %v2710 = vpop.f32.mrf.mxu0
      %v2711 = vadd.f32 0.0, %v2710
      %2712 = vmatmul.f32.gmra.mxu0 %v2601
      %v2713 = vpop.f32.mrf.mxu0
      %v2714 = vadd.f32 0.0, %v2713
      %2715 = vmatmul.f32.gmra.mxu0 %v2604
      %v2716 = vpop.f32.mrf.mxu0
      %v2717 = vadd.f32 0.0, %v2716
      %2718 = vmatmul.f32.gmra.mxu0 %v2607
      %v2719 = vpop.f32.mrf.mxu0
      %v2720 = vadd.f32 0.0, %v2719
      %2721 = vmatmul.f32.gmra.mxu0 %v2610
      %v2722 = vpop.f32.mrf.mxu0
      %v2723 = vadd.f32 0.0, %v2722
      %2724 = vmatmul.f32.gmra.mxu0 %v2613
      %v2725 = vpop.f32.mrf.mxu0
      %v2726 = vadd.f32 0.0, %v2725
      %2727 = vmatmul.f32.gmra.mxu0 %v2616
      %v2728 = vpop.f32.mrf.mxu0
      %v2729 = vadd.f32 0.0, %v2728
      %2730 = vmatmul.f32.gmra.mxu0 %v2619
      %v2731 = vpop.f32.mrf.mxu0
      %v2732 = vadd.f32 0.0, %v2731
      %2733 = vmatmul.f32.gmra.mxu0 %v2622
      %v2734 = vpop.f32.mrf.mxu0
      %v2735 = vadd.f32 0.0, %v2734
      %2736 = vmatmul.f32.gmra.mxu0 %v2625
      %v2737 = vpop.f32.mrf.mxu0
      %v2738 = vadd.f32 0.0, %v2737
      %2739 = vmatmul.f32.gmra.mxu0 %v2628
      %v2740 = vpop.f32.mrf.mxu0
      %v2741 = vadd.f32 0.0, %v2740
      %2742 = vmatmul.f32.gmra.mxu0 %v2631
      %v2743 = vpop.f32.mrf.mxu0
      %v2744 = vadd.f32 0.0, %v2743
      %2745 = vmatmul.f32.gmra.mxu0 %v2634
      %v2746 = vpop.f32.mrf.mxu0
      %v2747 = vadd.f32 0.0, %v2746
      %2748 = vmatmul.f32.gmra.mxu0 %v2637
      %v2749 = vpop.f32.mrf.mxu0
      %v2750 = vadd.f32 0.0, %v2749
      %2751 = vmatmul.f32.gmra.mxu0 %v2640
      %v2752 = vpop.f32.mrf.mxu0
      %v2753 = vadd.f32 0.0, %v2752
      %2754 = vmatmul.f32.gmra.mxu0 %v2643
      %v2755 = vpop.f32.mrf.mxu0
      %v2756 = vadd.f32 0.0, %v2755
      %2757 = vmatmul.f32.gmra.mxu0 %v2646
      %v2758 = vpop.f32.mrf.mxu0
      %v2759 = vadd.f32 0.0, %v2758
      %2760 = vmatmul.f32.gmra.mxu0 %v2649
      %v2761 = vpop.f32.mrf.mxu0
      %v2762 = vadd.f32 0.0, %v2761
      %2763 = vmatmul.f32.gmra.mxu0 %v2652
      %v2764 = vpop.f32.mrf.mxu0
      %v2765 = vadd.f32 0.0, %v2764
      %2766 = vmatmul.f32.gmra.mxu0 %v2655
      %v2767 = vpop.f32.mrf.mxu0
      %v2768 = vadd.f32 0.0, %v2767
      %2769 = vmatmul.f32.gmra.mxu0 %v2658
      %v2770 = vpop.f32.mrf.mxu0
      %v2771 = vadd.f32 0.0, %v2770
      %2772 = vmatmul.f32.gmra.mxu0 %v2661
      %v2773 = vpop.f32.mrf.mxu0
      %v2774 = vadd.f32 0.0, %v2773
      %2775 = vmatmul.f32.gmra.mxu0 %v2664
      %v2776 = vpop.f32.mrf.mxu0
      %v2777 = vadd.f32 0.0, %v2776
      %2778 = vmatmul.f32.gmra.mxu0 %v2667
      %v2779 = vpop.f32.mrf.mxu0
      %v2780 = vadd.f32 0.0, %v2779
      %2781 = vmatmul.f32.gmra.mxu0 %v2670
      %v2782 = vpop.f32.mrf.mxu0
      %v2783 = vadd.f32 0.0, %v2782
      %2784 = vmatmul.f32.gmra.mxu0 %v2673
      %v2785 = vpop.f32.mrf.mxu0
      %v2786 = vadd.f32 0.0, %v2785
      %2787 = vmatmul.f32.gmra.mxu0 %v2676
      %v2788 = vpop.f32.mrf.mxu0
      %v2789 = vadd.f32 0.0, %v2788
      %2790 = vmatmul.f32.gmra.mxu0 %v2679
      %v2791 = vpop.f32.mrf.mxu0
      %v2792 = vadd.f32 0.0, %v2791
      %2793 = vdwg.mxu0
      %v2794 = vadd.f32 %v2517, %v2699
      %v2795 = vadd.f32 %v2518, %v2702
      %v2796 = vadd.f32 %v2519, %v2705
      %v2797 = vadd.f32 %v2520, %v2708
      %v2798 = vadd.f32 %v2521, %v2711
      %v2799 = vadd.f32 %v2522, %v2714
      %v2800 = vadd.f32 %v2523, %v2717
      %v2801 = vadd.f32 %v2524, %v2720
      %v2802 = vadd.f32 %v2525, %v2723
      %v2803 = vadd.f32 %v2526, %v2726
      %v2804 = vadd.f32 %v2527, %v2729
      %v2805 = vadd.f32 %v2528, %v2732
      %v2806 = vadd.f32 %v2529, %v2735
      %v2807 = vadd.f32 %v2530, %v2738
      %v2808 = vadd.f32 %v2531, %v2741
      %v2809 = vadd.f32 %v2532, %v2744
      %v2810 = vadd.f32 %v2533, %v2747
      %v2811 = vadd.f32 %v2534, %v2750
      %v2812 = vadd.f32 %v2535, %v2753
      %v2813 = vadd.f32 %v2536, %v2756
      %v2814 = vadd.f32 %v2537, %v2759
      %v2815 = vadd.f32 %v2538, %v2762
      %v2816 = vadd.f32 %v2539, %v2765
      %v2817 = vadd.f32 %v2540, %v2768
      %v2818 = vadd.f32 %v2541, %v2771
      %v2819 = vadd.f32 %v2542, %v2774
      %v2820 = vadd.f32 %v2543, %v2777
      %v2821 = vadd.f32 %v2544, %v2780
      %v2822 = vadd.f32 %v2545, %v2783
      %v2823 = vadd.f32 %v2546, %v2786
      %v2824 = vadd.f32 %v2547, %v2789
      %v2825 = vadd.f32 %v2548, %v2792
      %v2826 = vld [vmem:[%s3] sm:$0x1]
      %v2828 = vperm.slane %v2826, 0
      %v2830 = vadd.f32 %v2794, %v2828
      %v2831 = vadd.f32 %v2795, %v2828
      %v2832 = vadd.f32 %v2796, %v2828
      %v2833 = vadd.f32 %v2797, %v2828
      %v2834 = vadd.f32 %v2798, %v2828
      %v2835 = vadd.f32 %v2799, %v2828
      %v2836 = vadd.f32 %v2800, %v2828
      %v2837 = vadd.f32 %v2801, %v2828
      %v2838 = vadd.f32 %v2802, %v2828
      %v2839 = vadd.f32 %v2803, %v2828
      %v2840 = vadd.f32 %v2804, %v2828
      %v2841 = vadd.f32 %v2805, %v2828
      %v2842 = vadd.f32 %v2806, %v2828
      %v2843 = vadd.f32 %v2807, %v2828
      %v2844 = vadd.f32 %v2808, %v2828
      %v2845 = vadd.f32 %v2809, %v2828
      %v2846 = vadd.f32 %v2810, %v2828
      %v2847 = vadd.f32 %v2811, %v2828
      %v2848 = vadd.f32 %v2812, %v2828
      %v2849 = vadd.f32 %v2813, %v2828
      %v2850 = vadd.f32 %v2814, %v2828
      %v2851 = vadd.f32 %v2815, %v2828
      %v2852 = vadd.f32 %v2816, %v2828
      %v2853 = vadd.f32 %v2817, %v2828
      %v2854 = vadd.f32 %v2818, %v2828
      %v2855 = vadd.f32 %v2819, %v2828
      %v2856 = vadd.f32 %v2820, %v2828
      %v2857 = vadd.f32 %v2821, %v2828
      %v2858 = vadd.f32 %v2822, %v2828
      %v2859 = vadd.f32 %v2823, %v2828
      %v2860 = vadd.f32 %v2824, %v2828
      %v2861 = vadd.f32 %v2825, %v2828
      %v2862 = vmax.f32 %v2830, 0.0
      %v2863 = vmax.f32 %v2831, 0.0
      %v2864 = vmax.f32 %v2832, 0.0
      %v2865 = vmax.f32 %v2833, 0.0
      %v2866 = vmax.f32 %v2834, 0.0
      %v2867 = vmax.f32 %v2835, 0.0
      %v2868 = vmax.f32 %v2836, 0.0
      %v2869 = vmax.f32 %v2837, 0.0
      %v2870 = vmax.f32 %v2838, 0.0
      %v2871 = vmax.f32 %v2839, 0.0
      %v2872 = vmax.f32 %v2840, 0.0
      %v2873 = vmax.f32 %v2841, 0.0
      %v2874 = vmax.f32 %v2842, 0.0
      %v2875 = vmax.f32 %v2843, 0.0
      %v2876 = vmax.f32 %v2844, 0.0
      %v2877 = vmax.f32 %v2845, 0.0
      %v2878 = vmax.f32 %v2846, 0.0
      %v2879 = vmax.f32 %v2847, 0.0
      %v2880 = vmax.f32 %v2848, 0.0
      %v2881 = vmax.f32 %v2849, 0.0
      %v2882 = vmax.f32 %v2850, 0.0
      %v2883 = vmax.f32 %v2851, 0.0
      %v2884 = vmax.f32 %v2852, 0.0
      %v2885 = vmax.f32 %v2853, 0.0
      %v2886 = vmax.f32 %v2854, 0.0
      %v2887 = vmax.f32 %v2855, 0.0
      %v2888 = vmax.f32 %v2856, 0.0
      %v2889 = vmax.f32 %v2857, 0.0
      %v2890 = vmax.f32 %v2858, 0.0
      %v2891 = vmax.f32 %v2859, 0.0
      %v2892 = vmax.f32 %v2860, 0.0
      %v2893 = vmax.f32 %v2861, 0.0
      %v2894 = vld [vmem:[%s4] sm:$0xff]
      %v2895 = vld [vmem:[%s4 + $0x8] sm:$0xff]
      %v2896 = vld [vmem:[%s4 + $0x10] sm:$0xff]
      %v2897 = vld [vmem:[%s4 + $0x18] sm:$0xff]
      %v2898 = vld [vmem:[%s5] sm:$0x1]
      %v2900 = vperm.slane %v2898, 0
      %v2903 = vsel %vm348, %v2862, 0
      %v2906 = vsel %vm348, %v2863, 0
      %v2909 = vsel %vm348, %v2864, 0
      %v2912 = vsel %vm348, %v2865, 0
      %v2915 = vsel %vm348, %v2866, 0
      %v2918 = vsel %vm348, %v2867, 0
      %v2921 = vsel %vm348, %v2868, 0
      %v2924 = vsel %vm348, %v2869, 0
      %v2927 = vsel %vm348, %v2870, 0
      %v2930 = vsel %vm348, %v2871, 0
      %v2933 = vsel %vm348, %v2872, 0
      %v2936 = vsel %vm348, %v2873, 0
      %v2939 = vsel %vm348, %v2874, 0
      %v2942 = vsel %vm348, %v2875, 0
      %v2945 = vsel %vm348, %v2876, 0
      %v2948 = vsel %vm348, %v2877, 0
      %v2951 = vsel %vm348, %v2878, 0
      %v2954 = vsel %vm348, %v2879, 0
      %v2957 = vsel %vm348, %v2880, 0
      %v2960 = vsel %vm348, %v2881, 0
      %v2963 = vsel %vm348, %v2882, 0
      %v2966 = vsel %vm348, %v2883, 0
      %v2969 = vsel %vm348, %v2884, 0
      %v2972 = vsel %vm348, %v2885, 0
      %v2975 = vsel %vm348, %v2886, 0
      %v2978 = vsel %vm348, %v2887, 0
      %v2981 = vsel %vm348, %v2888, 0
      %v2984 = vsel %vm348, %v2889, 0
      %v2987 = vsel %vm348, %v2890, 0
      %v2990 = vsel %vm348, %v2891, 0
      %v2993 = vsel %vm348, %v2892, 0
      %v2996 = vsel %vm348, %v2893, 0
      %2998 = vmatpush.msra.mxu0 0.0
      %2999 = vmatpush.msra.mxu0 0.0
      %3000 = vmatpush.msra.mxu0 0.0
      %3001 = vmatpush.msra.mxu0 0.0
      %3002 = vmatpush.msra.mxu0 0.0
      %3003 = vmatpush.msra.mxu0 0.0
      %3004 = vmatpush.msra.mxu0 0.0
      %3005 = vmatpush.msra.mxu0 0.0
      %3006 = vmatpush.msra.mxu0 0.0
      %3007 = vmatpush.msra.mxu0 0.0
      %3008 = vmatpush.msra.mxu0 0.0
      %3009 = vmatpush.msra.mxu0 0.0
      %3010 = vmatpush.msra.mxu0 %v2897
      %3011 = vmatpush.msra.mxu0 %v2896
      %3012 = vmatpush.msra.mxu0 %v2895
      %3013 = vmatpush.msra.mxu0 %v2894
      %3014 = vmatmul.f32.gmra.mxu0 %v2903
      %v3015 = vpop.f32.mrf.mxu0
      %v3016 = vadd.f32 %v2900, %v3015
      %3017 = vmatmul.f32.gmra.mxu0 %v2906
      %v3018 = vpop.f32.mrf.mxu0
      %v3019 = vadd.f32 %v2900, %v3018
      %3020 = vmatmul.f32.gmra.mxu0 %v2909
      %v3021 = vpop.f32.mrf.mxu0
      %v3022 = vadd.f32 %v2900, %v3021
      %3023 = vmatmul.f32.gmra.mxu0 %v2912
      %v3024 = vpop.f32.mrf.mxu0
      %v3025 = vadd.f32 %v2900, %v3024
      %3026 = vmatmul.f32.gmra.mxu0 %v2915
      %v3027 = vpop.f32.mrf.mxu0
      %v3028 = vadd.f32 %v2900, %v3027
      %3029 = vmatmul.f32.gmra.mxu0 %v2918
      %v3030 = vpop.f32.mrf.mxu0
      %v3031 = vadd.f32 %v2900, %v3030
      %3032 = vmatmul.f32.gmra.mxu0 %v2921
      %v3033 = vpop.f32.mrf.mxu0
      %v3034 = vadd.f32 %v2900, %v3033
      %3035 = vmatmul.f32.gmra.mxu0 %v2924
      %v3036 = vpop.f32.mrf.mxu0
      %v3037 = vadd.f32 %v2900, %v3036
      %3038 = vmatmul.f32.gmra.mxu0 %v2927
      %v3039 = vpop.f32.mrf.mxu0
      %v3040 = vadd.f32 %v2900, %v3039
      %3041 = vmatmul.f32.gmra.mxu0 %v2930
      %v3042 = vpop.f32.mrf.mxu0
      %v3043 = vadd.f32 %v2900, %v3042
      %3044 = vmatmul.f32.gmra.mxu0 %v2933
      %v3045 = vpop.f32.mrf.mxu0
      %v3046 = vadd.f32 %v2900, %v3045
      %3047 = vmatmul.f32.gmra.mxu0 %v2936
      %v3048 = vpop.f32.mrf.mxu0
      %v3049 = vadd.f32 %v2900, %v3048
      %3050 = vmatmul.f32.gmra.mxu0 %v2939
      %v3051 = vpop.f32.mrf.mxu0
      %v3052 = vadd.f32 %v2900, %v3051
      %3053 = vmatmul.f32.gmra.mxu0 %v2942
      %v3054 = vpop.f32.mrf.mxu0
      %v3055 = vadd.f32 %v2900, %v3054
      %3056 = vmatmul.f32.gmra.mxu0 %v2945
      %v3057 = vpop.f32.mrf.mxu0
      %v3058 = vadd.f32 %v2900, %v3057
      %3059 = vmatmul.f32.gmra.mxu0 %v2948
      %v3060 = vpop.f32.mrf.mxu0
      %v3061 = vadd.f32 %v2900, %v3060
      %3062 = vmatmul.f32.gmra.mxu0 %v2951
      %v3063 = vpop.f32.mrf.mxu0
      %v3064 = vadd.f32 %v2900, %v3063
      %3065 = vmatmul.f32.gmra.mxu0 %v2954
      %v3066 = vpop.f32.mrf.mxu0
      %v3067 = vadd.f32 %v2900, %v3066
      %3068 = vmatmul.f32.gmra.mxu0 %v2957
      %v3069 = vpop.f32.mrf.mxu0
      %v3070 = vadd.f32 %v2900, %v3069
      %3071 = vmatmul.f32.gmra.mxu0 %v2960
      %v3072 = vpop.f32.mrf.mxu0
      %v3073 = vadd.f32 %v2900, %v3072
      %3074 = vmatmul.f32.gmra.mxu0 %v2963
      %v3075 = vpop.f32.mrf.mxu0
      %v3076 = vadd.f32 %v2900, %v3075
      %3077 = vmatmul.f32.gmra.mxu0 %v2966
      %v3078 = vpop.f32.mrf.mxu0
      %v3079 = vadd.f32 %v2900, %v3078
      %3080 = vmatmul.f32.gmra.mxu0 %v2969
      %v3081 = vpop.f32.mrf.mxu0
      %v3082 = vadd.f32 %v2900, %v3081
      %3083 = vmatmul.f32.gmra.mxu0 %v2972
      %v3084 = vpop.f32.mrf.mxu0
      %v3085 = vadd.f32 %v2900, %v3084
      %3086 = vmatmul.f32.gmra.mxu0 %v2975
      %v3087 = vpop.f32.mrf.mxu0
      %v3088 = vadd.f32 %v2900, %v3087
      %3089 = vmatmul.f32.gmra.mxu0 %v2978
      %v3090 = vpop.f32.mrf.mxu0
      %v3091 = vadd.f32 %v2900, %v3090
      %3092 = vmatmul.f32.gmra.mxu0 %v2981
      %v3093 = vpop.f32.mrf.mxu0
      %v3094 = vadd.f32 %v2900, %v3093
      %3095 = vmatmul.f32.gmra.mxu0 %v2984
      %v3096 = vpop.f32.mrf.mxu0
      %v3097 = vadd.f32 %v2900, %v3096
      %3098 = vmatmul.f32.gmra.mxu0 %v2987
      %v3099 = vpop.f32.mrf.mxu0
      %v3100 = vadd.f32 %v2900, %v3099
      %3101 = vmatmul.f32.gmra.mxu0 %v2990
      %v3102 = vpop.f32.mrf.mxu0
      %v3103 = vadd.f32 %v2900, %v3102
      %3104 = vmatmul.f32.gmra.mxu0 %v2993
      %v3105 = vpop.f32.mrf.mxu0
      %v3106 = vadd.f32 %v2900, %v3105
      %3107 = vmatmul.f32.gmra.mxu0 %v2996
      %v3108 = vpop.f32.mrf.mxu0
      %v3109 = vadd.f32 %v2900, %v3108
      %3110 = vdwg.mxu0
      %vm3111 = vcmask 130048
      %3112 = vst.msk [vmem:[%s282] sm:$0xff] %vm3111, %v3016
      %3113 = vst.msk [vmem:[%s282 + $0x8] sm:$0xff] %vm3111, %v3019
      %3114 = vst.msk [vmem:[%s282 + $0x10] sm:$0xff] %vm3111, %v3022
      %3115 = vst.msk [vmem:[%s282 + $0x18] sm:$0xff] %vm3111, %v3025
      %3116 = vst.msk [vmem:[%s282 + $0x20] sm:$0xff] %vm3111, %v3028
      %3117 = vst.msk [vmem:[%s282 + $0x28] sm:$0xff] %vm3111, %v3031
      %3118 = vst.msk [vmem:[%s282 + $0x30] sm:$0xff] %vm3111, %v3034
      %3119 = vst.msk [vmem:[%s282 + $0x38] sm:$0xff] %vm3111, %v3037
      %3120 = vst.msk [vmem:[%s282 + $0x40] sm:$0xff] %vm3111, %v3040
      %3121 = vst.msk [vmem:[%s282 + $0x48] sm:$0xff] %vm3111, %v3043
      %3122 = vst.msk [vmem:[%s282 + $0x50] sm:$0xff] %vm3111, %v3046
      %3123 = vst.msk [vmem:[%s282 + $0x58] sm:$0xff] %vm3111, %v3049
      %3124 = vst.msk [vmem:[%s282 + $0x60] sm:$0xff] %vm3111, %v3052
      %3125 = vst.msk [vmem:[%s282 + $0x68] sm:$0xff] %vm3111, %v3055
      %3126 = vst.msk [vmem:[%s282 + $0x70] sm:$0xff] %vm3111, %v3058
      %3127 = vst.msk [vmem:[%s282 + $0x78] sm:$0xff] %vm3111, %v3061
      %3128 = vst.msk [vmem:[%s282 + $0x80] sm:$0xff] %vm3111, %v3064
      %3129 = vst.msk [vmem:[%s282 + $0x88] sm:$0xff] %vm3111, %v3067
      %3130 = vst.msk [vmem:[%s282 + $0x90] sm:$0xff] %vm3111, %v3070
      %3131 = vst.msk [vmem:[%s282 + $0x98] sm:$0xff] %vm3111, %v3073
      %3132 = vst.msk [vmem:[%s282 + $0xa0] sm:$0xff] %vm3111, %v3076
      %3133 = vst.msk [vmem:[%s282 + $0xa8] sm:$0xff] %vm3111, %v3079
      %3134 = vst.msk [vmem:[%s282 + $0xb0] sm:$0xff] %vm3111, %v3082
      %3135 = vst.msk [vmem:[%s282 + $0xb8] sm:$0xff] %vm3111, %v3085
      %3136 = vst.msk [vmem:[%s282 + $0xc0] sm:$0xff] %vm3111, %v3088
      %3137 = vst.msk [vmem:[%s282 + $0xc8] sm:$0xff] %vm3111, %v3091
      %3138 = vst.msk [vmem:[%s282 + $0xd0] sm:$0xff] %vm3111, %v3094
      %3139 = vst.msk [vmem:[%s282 + $0xd8] sm:$0xff] %vm3111, %v3097
      %3140 = vst.msk [vmem:[%s282 + $0xe0] sm:$0xff] %vm3111, %v3100
      %3141 = vst.msk [vmem:[%s282 + $0xe8] sm:$0xff] %vm3111, %v3103
      %3142 = vst.msk [vmem:[%s282 + $0xf0] sm:$0xff] %vm3111, %v3106
      %3143 = vst.msk [vmem:[%s282 + $0xf8] sm:$0xff] %vm3111, %v3109
      %s3144 = smul.u32 32, %s17
      %p3145 = scmp.lt.s32.totalorder %s3144, 95
      %s3146 = scalar_select %p3145, %s3144, 95
      %s3147 = smul.addr %s3146, 8
      %s3148 = scalar_lea.vmem %s6, %s3147
      // Predicated region
      $region45: #{_features_and_predictions.3} parent=43 // pred_check
        %p3149 = pneg %p173
      $region46: #{_features_and_predictions.3} parent=43 // pred_check_branch
        %3151 = sbr.rel (%p3149) target = $region48
      $region47: #{_features_and_predictions.3} parent=43 // pred_region
        %s3152 = smul.u32 32, %s17
      $region48: #{_features_and_predictions.3} parent=43 // pred_fallthru
        _
    $region44: #{_features_and_predictions.3} parent=5 // pred_fallthru
      _
    %p3153 = scmp.le.s32.totalorder 2, %s12
    // Predicated region
    $region49: #{_features_and_predictions.3} parent=5 // pred_check
      %p3154 = pneg %p3153
    $region50: #{_features_and_predictions.3} parent=5 // pred_check_branch
      %3156 = sbr.rel (%p3154) target = $region52
    $region51: #{_features_and_predictions.3} parent=5 // pred_region
      %s3157 = ssub.s32 %s12, 2
      // Predicated region
      $region53: #{_features_and_predictions.3} parent=51 // pred_check
        %p3158 = pneg %p179
      $region54: #{_features_and_predictions.3} parent=51 // pred_check_branch
        %3160 = sbr.rel (%p3158) target = $region56
      $region55: #{_features_and_predictions.3} parent=51 // pred_region
        %s3161 = smul.u32 32, %s18
        %p3162 = scmp.lt.s32.totalorder %s3161, 95
        %s3163 = scalar_select %p3162, %s3161, 95
        %s3164 = smul.addr %s3163, 8
        %s3165 = scalar_lea.vmem %s6, %s3164
      $region56: #{_features_and_predictions.3} parent=51 // pred_fallthru
        _
    $region52: #{_features_and_predictions.3} parent=5 // pred_fallthru
      _
  $region6: #{_features_and_predictions.3} parent=0 // loop_footer
    %s16 = sadd.s32 1, %s12
  $region7: #{_features_and_predictions.3} parent=0 // loop_footer_branch
    %11 = sbr.rel target = $region3
  $region8: #{_features_and_predictions.3} parent=0 // loop_exit
    _

</llo_original>
